<compile_context>
chip_gen: v7x
topology: tpu7x:2x2x1
jax: 0.10.0
libtpu: 0.0.40
codegen_flags: <defaults>
</compile_context>

<pallas_src>
import functools

import jax
import jax.numpy as jnp
from jax.experimental import pallas as pl
from jax.experimental.pallas import tpu as pltpu


# ----------------------------- kernel helpers ------------------------------

def _layernorm(x, w, b, eps=1e-5):
    """LayerNorm with f32 statistics; returns f32."""
    xf = x.astype(jnp.float32)
    mu = jnp.mean(xf, axis=-1, keepdims=True)
    var = jnp.mean(jnp.square(xf - mu), axis=-1, keepdims=True)
    y = (xf - mu) * jax.lax.rsqrt(var + eps)
    return y * w.astype(jnp.float32) + b.astype(jnp.float32)


def _attention(xq, xkv, Wq, bq, Wk, bk, Wv, bv, Wo, bo, n_heads, causal):
    """Multi-head attention on (S, E) tiles. Matmul inputs in xq.dtype (bf16),
    accumulation / softmax stats in f32. Returns f32 (S, E)."""
    S, E = xq.shape
    Skv = xkv.shape[0]
    Dh = E // n_heads
    cdt = xq.dtype
    scale = 1.0 / (Dh ** 0.5)

    # full-width (K = E) projections on the MXU, f32 accumulation
    q = jnp.dot(xq, Wq, preferred_element_type=jnp.float32) + bq.astype(jnp.float32)
    k = jnp.dot(xkv, Wk, preferred_element_type=jnp.float32) + bk.astype(jnp.float32)
    v = jnp.dot(xkv, Wv, preferred_element_type=jnp.float32) + bv.astype(jnp.float32)
    q = (q * scale).astype(cdt)        # fold 1/sqrt(Dh) into q once
    k = k.astype(cdt)
    v = v.astype(cdt)

    if causal:
        row = jax.lax.broadcasted_iota(jnp.int32, (S, Skv), 0)
        col = jax.lax.broadcasted_iota(jnp.int32, (S, Skv), 1)
        keep = col <= row

    heads = []
    for h in range(n_heads):                       # static unroll over heads
        sl = slice(h * Dh, (h + 1) * Dh)
        qh, kh, vh = q[:, sl], k[:, sl], v[:, sl]
        # q @ k^T without materializing the transpose
        s = jax.lax.dot_general(qh, kh, (((1,), (1,)), ((), ())),
                                preferred_element_type=jnp.float32)
        if causal:
            s = jnp.where(keep, s, -1e30)
        m = jnp.max(s, axis=-1, keepdims=True)     # f32 softmax stats
        p = jnp.exp(s - m)
        l = jnp.sum(p, axis=-1, keepdims=True)
        oh = jnp.dot(p.astype(cdt), vh, preferred_element_type=jnp.float32)
        heads.append(oh * pl.reciprocal(l, approx=True))

    # one fused (S, E) @ (E, E) output projection (full-K MXU utilization)
    ctx = jnp.concatenate(heads, axis=-1)
    return (jnp.dot(ctx.astype(cdt), Wo, preferred_element_type=jnp.float32)
            + bo.astype(jnp.float32))


# ------------------------------- the kernel --------------------------------

def decoder_kernel(*refs, n_heads, cross):
    if cross:
        x_ref, enc_ref = refs[0], refs[1]
        prm = refs[2:-1]
    else:
        x_ref, enc_ref = refs[0], None
        prm = refs[1:-1]
    out_ref = refs[-1]
    (n1w, n1b,
     q1w, q1b, k1w, k1b, v1w, v1b, o1w, o1b,
     n2w, n2b,
     q2w, q2b, k2w, k2b, v2w, v2b, o2w, o2b,
     m1w, m1b, m2w, m2b) = prm

    cdt = x_ref.dtype
    x = x_ref[0]                                   # (S, E), native (bf16) dtype
    res = x.astype(jnp.float32)                    # residual stream kept in f32

    # --- block 1: prenorm + causal self-attention + residual ---
    h = _layernorm(x, n1w[...], n1b[...]).astype(cdt)
    attn1 = _attention(h, h,
                       q1w[...], q1b[...], k1w[...], k1b[...],
                       v1w[...], v1b[...], o1w[...], o1b[...],
                       n_heads, causal=True)
    res = res + attn1

    # --- block 2: prenorm + (self or cross) attention + MLP + residual ---
    h = _layernorm(res, n2w[...], n2b[...]).astype(cdt)
    if cross:
        kv = enc_ref[0]
        attn2 = _attention(h, kv,
                           q2w[...], q2b[...], k2w[...], k2b[...],
                           v2w[...], v2b[...], o2w[...], o2b[...],
                           n_heads, causal=False)
    else:
        attn2 = _attention(h, h,
                           q2w[...], q2b[...], k2w[...], k2b[...],
                           v2w[...], v2b[...], o2w[...], o2b[...],
                           n_heads, causal=True)

    hid = jnp.maximum(
        jnp.dot(attn2.astype(cdt), m1w[...], preferred_element_type=jnp.float32)
        + m1b[...].astype(jnp.float32), 0.0)
    mlp = (jnp.dot(hid.astype(cdt), m2w[...], preferred_element_type=jnp.float32)
           + m2b[...].astype(jnp.float32))

    out_ref[0] = (res + mlp).astype(out_ref.dtype)


# -------------------------------- wrapper ----------------------------------

def decoder_forward(x, params, n_heads, encoder_output=None):
    B, S, E = x.shape
    cross = encoder_output is not None

    kernel = functools.partial(decoder_kernel, n_heads=n_heads, cross=cross)

    act_spec = pl.BlockSpec((1, S, E), lambda b: (b, 0, 0))
    in_specs = [act_spec]
    inputs = [x]
    if cross:
        S_enc = encoder_output.shape[1]
        in_specs.append(pl.BlockSpec((1, S_enc, E), lambda b: (b, 0, 0)))
        inputs.append(encoder_output)
    in_specs += [pl.BlockSpec(p.shape, lambda b: (0, 0)) for p in params]
    inputs += list(params)

    # Scoped-VMEM budget: double-buffered params + activations + slack, capped
    # at 64 MiB so it is valid on v7x as well as v5e/v6e.
    param_bytes = sum(int(p.size) * p.dtype.itemsize for p in params)
    act_bytes = (S + (encoder_output.shape[1] if cross else 0)) * E * x.dtype.itemsize
    vmem_limit = int(min(4 * param_bytes + 16 * act_bytes + (8 << 20), 64 << 20))

    return pl.pallas_call(
        kernel,
        out_shape=jax.ShapeDtypeStruct((B, S, E), x.dtype),
        grid_spec=pltpu.PrefetchScalarGridSpec(
            num_scalar_prefetch=0,
            grid=(B,),
            in_specs=in_specs,
            out_specs=act_spec,
        ),
        compiler_params=pltpu.CompilerParams(
            dimension_semantics=("parallel",),
            vmem_limit_bytes=vmem_limit),
    )(*inputs)


# ----------------------------- pure-JAX reference ---------------------------

def decoder_reference(x, params, n_heads, encoder_output=None):
    # f32 reference on the same (already bf16-quantized) values
    x = x.astype(jnp.float32)
    params = [p.astype(jnp.float32) for p in params]
    if encoder_output is not None:
        encoder_output = encoder_output.astype(jnp.float32)

    (n1w, n1b,
     q1w, q1b, k1w, k1b, v1w, v1b, o1w, o1b,
     n2w, n2b,
     q2w, q2b, k2w, k2b, v2w, v2b, o2w, o2b,
     m1w, m1b, m2w, m2b) = params

    def ln(h, w, b, eps=1e-5):
        mu = jnp.mean(h, axis=-1, keepdims=True)
        var = jnp.mean((h - mu) ** 2, axis=-1, keepdims=True)
        return (h - mu) / jnp.sqrt(var + eps) * w + b

    def attn(xq, xkv, Wq, bq, Wk, bk, Wv, bv, Wo, bo, causal):
        B, S, E = xq.shape
        Skv = xkv.shape[1]
        Dh = E // n_heads
        q = (xq @ Wq + bq).reshape(B, S, n_heads, Dh).transpose(0, 2, 1, 3)
        k = (xkv @ Wk + bk).reshape(B, Skv, n_heads, Dh).transpose(0, 2, 1, 3)
        v = (xkv @ Wv + bv).reshape(B, Skv, n_heads, Dh).transpose(0, 2, 1, 3)
        s = jnp.einsum("bhqd,bhkd->bhqk", q, k) / (Dh ** 0.5)
        if causal:
            keep = jnp.tril(jnp.ones((S, Skv), bool))
            s = jnp.where(keep, s, -1e30)
        p = jax.nn.softmax(s, axis=-1)
        o = jnp.einsum("bhqk,bhkd->bhqd", p, v)
        o = o.transpose(0, 2, 1, 3).reshape(B, S, E)
        return o @ Wo + bo

    skip1 = x
    h = ln(x, n1w, n1b)
    h = attn(h, h, q1w, q1b, k1w, k1b, v1w, v1b, o1w, o1b, causal=True)
    x = h + skip1
    skip2 = x
    h = ln(x, n2w, n2b)
    if encoder_output is None:
        h = attn(h, h, q2w, q2b, k2w, k2b, v2w, v2b, o2w, o2b, causal=True)
    else:
        h = attn(h, encoder_output, q2w, q2b, k2w, k2b, v2w, v2b, o2w, o2b,
                 causal=False)
    h = jnp.maximum(h @ m1w + m1b, 0.0) @ m2w + m2b
    return h + skip2


# --------------------------------- main -------------------------------------

def init_params(key, emb_dim, hidden_dim, dtype=jnp.bfloat16):
    def lin(k, n_in, n_out, scale=0.05):
        kw, kb = jax.random.split(k)
        w = (scale * jax.random.normal(kw, (n_in, n_out), jnp.float32)).astype(dtype)
        b = (scale * jax.random.normal(kb, (1, n_out), jnp.float32)).astype(dtype)
        return w, b

    keys = jax.random.split(key, 10)
    n1w = jnp.ones((1, emb_dim), dtype)
    n1b = jnp.zeros((1, emb_dim), dtype)
    q1w, q1b = lin(keys[0], emb_dim, emb_dim)
    k1w, k1b = lin(keys[1], emb_dim, emb_dim)
    v1w, v1b = lin(keys[2], emb_dim, emb_dim)
    o1w, o1b = lin(keys[3], emb_dim, emb_dim)
    n2w = jnp.ones((1, emb_dim), dtype)
    n2b = jnp.zeros((1, emb_dim), dtype)
    q2w, q2b = lin(keys[4], emb_dim, emb_dim)
    k2w, k2b = lin(keys[5], emb_dim, emb_dim)
    v2w, v2b = lin(keys[6], emb_dim, emb_dim)
    o2w, o2b = lin(keys[7], emb_dim, emb_dim)
    m1w, m1b = lin(keys[8], emb_dim, hidden_dim)
    m2w, m2b = lin(keys[9], hidden_dim, emb_dim)
    return (n1w, n1b,
            q1w, q1b, k1w, k1b, v1w, v1b, o1w, o1b,
            n2w, n2b,
            q2w, q2b, k2w, k2b, v2w, v2b, o2w, o2b,
            m1w, m1b, m2w, m2b)


if __name__ == "__main__":
    # Lane-aligned small dims: E, HID, Dh multiples of 128; S multiple of 8.
    B, S, E, H, HID = 2, 16, 256, 2, 512
    dt = jnp.bfloat16

    root = jax.random.PRNGKey(0)
    kx, kenc, kp = jax.random.split(root, 3)
    x = jax.random.normal(kx, (B, S, E), jnp.float32).astype(dt)
    enc = jax.random.normal(kenc, (B, S, E), jnp.float32).astype(dt)
    params = init_params(kp, E, HID, dt)

    # decoder self-attention only path (encoder_output=None)
    out = decoder_forward(x, params, n_heads=H, encoder_output=None)
    out = jax.block_until_ready(out)
    ref = decoder_reference(x, params, n_heads=H, encoder_output=None)
    assert jnp.allclose(out.astype(jnp.float32), ref, rtol=6e-2, atol=6e-2), \
        "self-attn path mismatch"

    # cross-attention path (encoder_output provided)
    out_c = decoder_forward(x, params, n_heads=H, encoder_output=enc)
    out_c = jax.block_until_ready(out_c)
    ref_c = decoder_reference(x, params, n_heads=H, encoder_output=enc)
    assert jnp.allclose(out_c.astype(jnp.float32), ref_c, rtol=6e-2, atol=6e-2), \
        "cross-attn path mismatch"

    print("KERNEL_OK")
</pallas_src>

<mosaic_0001>
module attributes {stable_mosaic.version = 11 : i64} {
  func.func @decoder_kernel(%arg0: i32, %arg1: memref<1x16x256xbf16, #tpu.memory_space<vmem>>, %arg2: memref<1x256xbf16, #tpu.memory_space<vmem>>, %arg3: memref<1x256xbf16, #tpu.memory_space<vmem>>, %arg4: memref<256x256xbf16, #tpu.memory_space<vmem>>, %arg5: memref<1x256xbf16, #tpu.memory_space<vmem>>, %arg6: memref<256x256xbf16, #tpu.memory_space<vmem>>, %arg7: memref<1x256xbf16, #tpu.memory_space<vmem>>, %arg8: memref<256x256xbf16, #tpu.memory_space<vmem>>, %arg9: memref<1x256xbf16, #tpu.memory_space<vmem>>, %arg10: memref<256x256xbf16, #tpu.memory_space<vmem>>, %arg11: memref<1x256xbf16, #tpu.memory_space<vmem>>, %arg12: memref<1x256xbf16, #tpu.memory_space<vmem>>, %arg13: memref<1x256xbf16, #tpu.memory_space<vmem>>, %arg14: memref<256x256xbf16, #tpu.memory_space<vmem>>, %arg15: memref<1x256xbf16, #tpu.memory_space<vmem>>, %arg16: memref<256x256xbf16, #tpu.memory_space<vmem>>, %arg17: memref<1x256xbf16, #tpu.memory_space<vmem>>, %arg18: memref<256x256xbf16, #tpu.memory_space<vmem>>, %arg19: memref<1x256xbf16, #tpu.memory_space<vmem>>, %arg20: memref<256x256xbf16, #tpu.memory_space<vmem>>, %arg21: memref<1x256xbf16, #tpu.memory_space<vmem>>, %arg22: memref<256x512xbf16, #tpu.memory_space<vmem>>, %arg23: memref<1x512xbf16, #tpu.memory_space<vmem>>, %arg24: memref<512x256xbf16, #tpu.memory_space<vmem>>, %arg25: memref<1x256xbf16, #tpu.memory_space<vmem>>, %arg26: memref<1x16x256xbf16, #tpu.memory_space<vmem>>) attributes {dimension_semantics = [#tpu.dimension_semantics<parallel>], iteration_bounds = array<i64: 2>, scalar_prefetch = 0 : i64, scratch_operands = 0 : i64, tpu.core_type = #tpu.core_type<tc>, window_params = [{transform_indices = @transform_0, window_bounds = array<i64: 1, 16, 256>}, {pipeline_mode = #tpu.pipeline_mode<synchronous>, transform_indices = @transform_1, window_bounds = array<i64: 1, 256>}, {pipeline_mode = #tpu.pipeline_mode<synchronous>, transform_indices = @transform_2, window_bounds = array<i64: 1, 256>}, {pipeline_mode = #tpu.pipeline_mode<synchronous>, transform_indices = @transform_3, window_bounds = array<i64: 256, 256>}, {pipeline_mode = #tpu.pipeline_mode<synchronous>, transform_indices = @transform_4, window_bounds = array<i64: 1, 256>}, {pipeline_mode = #tpu.pipeline_mode<synchronous>, transform_indices = @transform_5, window_bounds = array<i64: 256, 256>}, {pipeline_mode = #tpu.pipeline_mode<synchronous>, transform_indices = @transform_6, window_bounds = array<i64: 1, 256>}, {pipeline_mode = #tpu.pipeline_mode<synchronous>, transform_indices = @transform_7, window_bounds = array<i64: 256, 256>}, {pipeline_mode = #tpu.pipeline_mode<synchronous>, transform_indices = @transform_8, window_bounds = array<i64: 1, 256>}, {pipeline_mode = #tpu.pipeline_mode<synchronous>, transform_indices = @transform_9, window_bounds = array<i64: 256, 256>}, {pipeline_mode = #tpu.pipeline_mode<synchronous>, transform_indices = @transform_10, window_bounds = array<i64: 1, 256>}, {pipeline_mode = #tpu.pipeline_mode<synchronous>, transform_indices = @transform_11, window_bounds = array<i64: 1, 256>}, {pipeline_mode = #tpu.pipeline_mode<synchronous>, transform_indices = @transform_12, window_bounds = array<i64: 1, 256>}, {pipeline_mode = #tpu.pipeline_mode<synchronous>, transform_indices = @transform_13, window_bounds = array<i64: 256, 256>}, {pipeline_mode = #tpu.pipeline_mode<synchronous>, transform_indices = @transform_14, window_bounds = array<i64: 1, 256>}, {pipeline_mode = #tpu.pipeline_mode<synchronous>, transform_indices = @transform_15, window_bounds = array<i64: 256, 256>}, {pipeline_mode = #tpu.pipeline_mode<synchronous>, transform_indices = @transform_16, window_bounds = array<i64: 1, 256>}, {pipeline_mode = #tpu.pipeline_mode<synchronous>, transform_indices = @transform_17, window_bounds = array<i64: 256, 256>}, {pipeline_mode = #tpu.pipeline_mode<synchronous>, transform_indices = @transform_18, window_bounds = array<i64: 1, 256>}, {pipeline_mode = #tpu.pipeline_mode<synchronous>, transform_indices = @transform_19, window_bounds = array<i64: 256, 256>}, {pipeline_mode = #tpu.pipeline_mode<synchronous>, transform_indices = @transform_20, window_bounds = array<i64: 1, 256>}, {pipeline_mode = #tpu.pipeline_mode<synchronous>, transform_indices = @transform_21, window_bounds = array<i64: 256, 512>}, {pipeline_mode = #tpu.pipeline_mode<synchronous>, transform_indices = @transform_22, window_bounds = array<i64: 1, 512>}, {pipeline_mode = #tpu.pipeline_mode<synchronous>, transform_indices = @transform_23, window_bounds = array<i64: 512, 256>}, {pipeline_mode = #tpu.pipeline_mode<synchronous>, transform_indices = @transform_24, window_bounds = array<i64: 1, 256>}, {transform_indices = @transform_25, window_bounds = array<i64: 1, 16, 256>}]} {
    %c0 = arith.constant 0 : index
    %c0_0 = arith.constant 0 : index
    %c0_1 = arith.constant 0 : index
    %0 = vector.load %arg1[%c0, %c0_0, %c0_1] : memref<1x16x256xbf16, #tpu.memory_space<vmem>>, vector<1x16x256xbf16>
    %1 = vector.shape_cast %0 : vector<1x16x256xbf16> to vector<16x256xbf16>
    %2 = arith.extf %1 : vector<16x256xbf16> to vector<16x256xf32>
    %c0_2 = arith.constant 0 : index
    %c0_3 = arith.constant 0 : index
    %3 = vector.load %arg2[%c0_2, %c0_3] : memref<1x256xbf16, #tpu.memory_space<vmem>>, vector<1x256xbf16>
    %c0_4 = arith.constant 0 : index
    %c0_5 = arith.constant 0 : index
    %4 = vector.load %arg3[%c0_4, %c0_5] : memref<1x256xbf16, #tpu.memory_space<vmem>>, vector<1x256xbf16>
    %5 = arith.extf %1 : vector<16x256xbf16> to vector<16x256xf32>
    %cst = arith.constant dense<0.000000e+00> : vector<16xf32>
    %6 = vector.multi_reduction <add>, %5, %cst [1] : vector<16x256xf32> to vector<16xf32>
    %7 = vector.shape_cast %6 : vector<16xf32> to vector<16x1xf32>
    %cst_6 = arith.constant 2.560000e+02 : f32
    %8 = vector.broadcast %cst_6 : f32 to vector<16x1xf32>
    %9 = arith.divf %7, %8 : vector<16x1xf32>
    %10 = vector.broadcast %9 : vector<16x1xf32> to vector<16x256xf32>
    %11 = arith.subf %5, %10 : vector<16x256xf32>
    %12 = arith.mulf %11, %11 : vector<16x256xf32>
    %cst_7 = arith.constant dense<0.000000e+00> : vector<16xf32>
    %13 = vector.multi_reduction <add>, %12, %cst_7 [1] : vector<16x256xf32> to vector<16xf32>
    %14 = vector.shape_cast %13 : vector<16xf32> to vector<16x1xf32>
    %cst_8 = arith.constant 2.560000e+02 : f32
    %15 = vector.broadcast %cst_8 : f32 to vector<16x1xf32>
    %16 = arith.divf %14, %15 : vector<16x1xf32>
    %17 = vector.broadcast %9 : vector<16x1xf32> to vector<16x256xf32>
    %18 = arith.subf %5, %17 : vector<16x256xf32>
    %cst_9 = arith.constant 9.99999974E-6 : f32
    %19 = vector.broadcast %cst_9 : f32 to vector<16x1xf32>
    %20 = arith.addf %16, %19 : vector<16x1xf32>
    %21 = math.rsqrt %20 : vector<16x1xf32>
    %22 = vector.broadcast %21 : vector<16x1xf32> to vector<16x256xf32>
    %23 = arith.mulf %18, %22 : vector<16x256xf32>
    %24 = arith.extf %3 : vector<1x256xbf16> to vector<1x256xf32>
    %25 = vector.broadcast %24 : vector<1x256xf32> to vector<16x256xf32>
    %26 = arith.mulf %23, %25 : vector<16x256xf32>
    %27 = arith.extf %4 : vector<1x256xbf16> to vector<1x256xf32>
    %28 = vector.broadcast %27 : vector<1x256xf32> to vector<16x256xf32>
    %29 = arith.addf %26, %28 : vector<16x256xf32>
    %30 = arith.truncf %29 : vector<16x256xf32> to vector<16x256xbf16>
    %c0_10 = arith.constant 0 : index
    %c0_11 = arith.constant 0 : index
    %31 = vector.load %arg4[%c0_10, %c0_11] : memref<256x256xbf16, #tpu.memory_space<vmem>>, vector<256x256xbf16>
    %c0_12 = arith.constant 0 : index
    %c0_13 = arith.constant 0 : index
    %32 = vector.load %arg5[%c0_12, %c0_13] : memref<1x256xbf16, #tpu.memory_space<vmem>>, vector<1x256xbf16>
    %c0_14 = arith.constant 0 : index
    %c0_15 = arith.constant 0 : index
    %33 = vector.load %arg6[%c0_14, %c0_15] : memref<256x256xbf16, #tpu.memory_space<vmem>>, vector<256x256xbf16>
    %c0_16 = arith.constant 0 : index
    %c0_17 = arith.constant 0 : index
    %34 = vector.load %arg7[%c0_16, %c0_17] : memref<1x256xbf16, #tpu.memory_space<vmem>>, vector<1x256xbf16>
    %c0_18 = arith.constant 0 : index
    %c0_19 = arith.constant 0 : index
    %35 = vector.load %arg8[%c0_18, %c0_19] : memref<256x256xbf16, #tpu.memory_space<vmem>>, vector<256x256xbf16>
    %c0_20 = arith.constant 0 : index
    %c0_21 = arith.constant 0 : index
    %36 = vector.load %arg9[%c0_20, %c0_21] : memref<1x256xbf16, #tpu.memory_space<vmem>>, vector<1x256xbf16>
    %c0_22 = arith.constant 0 : index
    %c0_23 = arith.constant 0 : index
    %37 = vector.load %arg10[%c0_22, %c0_23] : memref<256x256xbf16, #tpu.memory_space<vmem>>, vector<256x256xbf16>
    %c0_24 = arith.constant 0 : index
    %c0_25 = arith.constant 0 : index
    %38 = vector.load %arg11[%c0_24, %c0_25] : memref<1x256xbf16, #tpu.memory_space<vmem>>, vector<1x256xbf16>
    %cst_26 = arith.constant dense<0.000000e+00> : vector<16x256xf32>
    %39 = tpu.matmul %30, %31, %cst_26 {dimension_numbers = #tpu.dot_dimension_numbers<[1], [0], [0], [1], [0, 0, 1, 1], [], []>} : vector<16x256xbf16>, vector<256x256xbf16>, vector<16x256xf32> -> vector<16x256xf32>
    %40 = arith.extf %32 : vector<1x256xbf16> to vector<1x256xf32>
    %41 = vector.broadcast %40 : vector<1x256xf32> to vector<16x256xf32>
    %42 = arith.addf %39, %41 : vector<16x256xf32>
    %cst_27 = arith.constant dense<0.000000e+00> : vector<16x256xf32>
    %43 = tpu.matmul %30, %33, %cst_27 {dimension_numbers = #tpu.dot_dimension_numbers<[1], [0], [0], [1], [0, 0, 1, 1], [], []>} : vector<16x256xbf16>, vector<256x256xbf16>, vector<16x256xf32> -> vector<16x256xf32>
    %44 = arith.extf %34 : vector<1x256xbf16> to vector<1x256xf32>
    %45 = vector.broadcast %44 : vector<1x256xf32> to vector<16x256xf32>
    %46 = arith.addf %43, %45 : vector<16x256xf32>
    %cst_28 = arith.constant dense<0.000000e+00> : vector<16x256xf32>
    %47 = tpu.matmul %30, %35, %cst_28 {dimension_numbers = #tpu.dot_dimension_numbers<[1], [0], [0], [1], [0, 0, 1, 1], [], []>} : vector<16x256xbf16>, vector<256x256xbf16>, vector<16x256xf32> -> vector<16x256xf32>
    %48 = arith.extf %36 : vector<1x256xbf16> to vector<1x256xf32>
    %49 = vector.broadcast %48 : vector<1x256xf32> to vector<16x256xf32>
    %50 = arith.addf %47, %49 : vector<16x256xf32>
    %cst_29 = arith.constant 0.0883883461 : f32
    %51 = vector.broadcast %cst_29 : f32 to vector<16x256xf32>
    %52 = arith.mulf %42, %51 : vector<16x256xf32>
    %53 = arith.truncf %52 : vector<16x256xf32> to vector<16x256xbf16>
    %54 = arith.truncf %46 : vector<16x256xf32> to vector<16x256xbf16>
    %55 = arith.truncf %50 : vector<16x256xf32> to vector<16x256xbf16>
    %56 = tpu.iota {dimensions = array<i32: 0>} : vector<16x16xi32>
    %57 = tpu.iota {dimensions = array<i32: 1>} : vector<16x16xi32>
    %58 = arith.cmpi sle, %57, %56 : vector<16x16xi32>
    %59 = vector.extract_strided_slice %53 {offsets = [0, 0], sizes = [16, 128], strides = [1, 1]} : vector<16x256xbf16> to vector<16x128xbf16>
    %60 = vector.extract_strided_slice %54 {offsets = [0, 0], sizes = [16, 128], strides = [1, 1]} : vector<16x256xbf16> to vector<16x128xbf16>
    %61 = vector.extract_strided_slice %55 {offsets = [0, 0], sizes = [16, 128], strides = [1, 1]} : vector<16x256xbf16> to vector<16x128xbf16>
    %cst_30 = arith.constant dense<0.000000e+00> : vector<16x16xf32>
    %62 = tpu.matmul %59, %60, %cst_30 {dimension_numbers = #tpu.dot_dimension_numbers<[1], [1], [0], [0], [0, 0, 1, 0], [], []>} : vector<16x128xbf16>, vector<16x128xbf16>, vector<16x16xf32> -> vector<16x16xf32>
    %cst_31 = arith.constant -1.000000e+30 : f32
    %63 = vector.broadcast %cst_31 : f32 to vector<16x16xf32>
    %64 = arith.select %58, %62, %63 : vector<16x16xi1>, vector<16x16xf32>
    %cst_32 = arith.constant dense<0xFF800000> : vector<16xf32>
    %65 = vector.multi_reduction <maximumf>, %64, %cst_32 [1] : vector<16x16xf32> to vector<16xf32>
    %66 = vector.shape_cast %65 : vector<16xf32> to vector<16x1xf32>
    %67 = vector.broadcast %66 : vector<16x1xf32> to vector<16x16xf32>
    %68 = arith.subf %64, %67 : vector<16x16xf32>
    %69 = math.exp %68 : vector<16x16xf32>
    %cst_33 = arith.constant dense<0.000000e+00> : vector<16xf32>
    %70 = vector.multi_reduction <add>, %69, %cst_33 [1] : vector<16x16xf32> to vector<16xf32>
    %71 = vector.shape_cast %70 : vector<16xf32> to vector<16x1xf32>
    %72 = arith.truncf %69 : vector<16x16xf32> to vector<16x16xbf16>
    %cst_34 = arith.constant dense<0.000000e+00> : vector<16x128xf32>
    %73 = tpu.matmul %72, %61, %cst_34 {dimension_numbers = #tpu.dot_dimension_numbers<[1], [0], [0], [1], [0, 0, 1, 1], [], []>} : vector<16x16xbf16>, vector<16x128xbf16>, vector<16x128xf32> -> vector<16x128xf32>
    %74 = tpu.reciprocal %71 {approx = true} : vector<16x1xf32> -> vector<16x1xf32>
    %75 = vector.broadcast %74 : vector<16x1xf32> to vector<16x128xf32>
    %76 = arith.mulf %73, %75 : vector<16x128xf32>
    %77 = vector.extract_strided_slice %53 {offsets = [0, 128], sizes = [16, 128], strides = [1, 1]} : vector<16x256xbf16> to vector<16x128xbf16>
    %78 = vector.extract_strided_slice %54 {offsets = [0, 128], sizes = [16, 128], strides = [1, 1]} : vector<16x256xbf16> to vector<16x128xbf16>
    %79 = vector.extract_strided_slice %55 {offsets = [0, 128], sizes = [16, 128], strides = [1, 1]} : vector<16x256xbf16> to vector<16x128xbf16>
    %cst_35 = arith.constant dense<0.000000e+00> : vector<16x16xf32>
    %80 = tpu.matmul %77, %78, %cst_35 {dimension_numbers = #tpu.dot_dimension_numbers<[1], [1], [0], [0], [0, 0, 1, 0], [], []>} : vector<16x128xbf16>, vector<16x128xbf16>, vector<16x16xf32> -> vector<16x16xf32>
    %cst_36 = arith.constant -1.000000e+30 : f32
    %81 = vector.broadcast %cst_36 : f32 to vector<16x16xf32>
    %82 = arith.select %58, %80, %81 : vector<16x16xi1>, vector<16x16xf32>
    %cst_37 = arith.constant dense<0xFF800000> : vector<16xf32>
    %83 = vector.multi_reduction <maximumf>, %82, %cst_37 [1] : vector<16x16xf32> to vector<16xf32>
    %84 = vector.shape_cast %83 : vector<16xf32> to vector<16x1xf32>
    %85 = vector.broadcast %84 : vector<16x1xf32> to vector<16x16xf32>
    %86 = arith.subf %82, %85 : vector<16x16xf32>
    %87 = math.exp %86 : vector<16x16xf32>
    %cst_38 = arith.constant dense<0.000000e+00> : vector<16xf32>
    %88 = vector.multi_reduction <add>, %87, %cst_38 [1] : vector<16x16xf32> to vector<16xf32>
    %89 = vector.shape_cast %88 : vector<16xf32> to vector<16x1xf32>
    %90 = arith.truncf %87 : vector<16x16xf32> to vector<16x16xbf16>
    %cst_39 = arith.constant dense<0.000000e+00> : vector<16x128xf32>
    %91 = tpu.matmul %90, %79, %cst_39 {dimension_numbers = #tpu.dot_dimension_numbers<[1], [0], [0], [1], [0, 0, 1, 1], [], []>} : vector<16x16xbf16>, vector<16x128xbf16>, vector<16x128xf32> -> vector<16x128xf32>
    %92 = tpu.reciprocal %89 {approx = true} : vector<16x1xf32> -> vector<16x1xf32>
    %93 = vector.broadcast %92 : vector<16x1xf32> to vector<16x128xf32>
    %94 = arith.mulf %91, %93 : vector<16x128xf32>
    %95 = tpu.concatenate %76, %94 in 1 : vector<16x128xf32>, vector<16x128xf32> -> vector<16x256xf32>
    %96 = arith.truncf %95 : vector<16x256xf32> to vector<16x256xbf16>
    %cst_40 = arith.constant dense<0.000000e+00> : vector<16x256xf32>
    %97 = tpu.matmul %96, %37, %cst_40 {dimension_numbers = #tpu.dot_dimension_numbers<[1], [0], [0], [1], [0, 0, 1, 1], [], []>} : vector<16x256xbf16>, vector<256x256xbf16>, vector<16x256xf32> -> vector<16x256xf32>
    %98 = arith.extf %38 : vector<1x256xbf16> to vector<1x256xf32>
    %99 = vector.broadcast %98 : vector<1x256xf32> to vector<16x256xf32>
    %100 = arith.addf %97, %99 : vector<16x256xf32>
    %101 = arith.addf %2, %100 : vector<16x256xf32>
    %c0_41 = arith.constant 0 : index
    %c0_42 = arith.constant 0 : index
    %102 = vector.load %arg12[%c0_41, %c0_42] : memref<1x256xbf16, #tpu.memory_space<vmem>>, vector<1x256xbf16>
    %c0_43 = arith.constant 0 : index
    %c0_44 = arith.constant 0 : index
    %103 = vector.load %arg13[%c0_43, %c0_44] : memref<1x256xbf16, #tpu.memory_space<vmem>>, vector<1x256xbf16>
    %cst_45 = arith.constant dense<0.000000e+00> : vector<16xf32>
    %104 = vector.multi_reduction <add>, %101, %cst_45 [1] : vector<16x256xf32> to vector<16xf32>
    %105 = vector.shape_cast %104 : vector<16xf32> to vector<16x1xf32>
    %cst_46 = arith.constant 2.560000e+02 : f32
    %106 = vector.broadcast %cst_46 : f32 to vector<16x1xf32>
    %107 = arith.divf %105, %106 : vector<16x1xf32>
    %108 = vector.broadcast %107 : vector<16x1xf32> to vector<16x256xf32>
    %109 = arith.subf %101, %108 : vector<16x256xf32>
    %110 = arith.mulf %109, %109 : vector<16x256xf32>
    %cst_47 = arith.constant dense<0.000000e+00> : vector<16xf32>
    %111 = vector.multi_reduction <add>, %110, %cst_47 [1] : vector<16x256xf32> to vector<16xf32>
    %112 = vector.shape_cast %111 : vector<16xf32> to vector<16x1xf32>
    %cst_48 = arith.constant 2.560000e+02 : f32
    %113 = vector.broadcast %cst_48 : f32 to vector<16x1xf32>
    %114 = arith.divf %112, %113 : vector<16x1xf32>
    %115 = vector.broadcast %107 : vector<16x1xf32> to vector<16x256xf32>
    %116 = arith.subf %101, %115 : vector<16x256xf32>
    %cst_49 = arith.constant 9.99999974E-6 : f32
    %117 = vector.broadcast %cst_49 : f32 to vector<16x1xf32>
    %118 = arith.addf %114, %117 : vector<16x1xf32>
    %119 = math.rsqrt %118 : vector<16x1xf32>
    %120 = vector.broadcast %119 : vector<16x1xf32> to vector<16x256xf32>
    %121 = arith.mulf %116, %120 : vector<16x256xf32>
    %122 = arith.extf %102 : vector<1x256xbf16> to vector<1x256xf32>
    %123 = vector.broadcast %122 : vector<1x256xf32> to vector<16x256xf32>
    %124 = arith.mulf %121, %123 : vector<16x256xf32>
    %125 = arith.extf %103 : vector<1x256xbf16> to vector<1x256xf32>
    %126 = vector.broadcast %125 : vector<1x256xf32> to vector<16x256xf32>
    %127 = arith.addf %124, %126 : vector<16x256xf32>
    %128 = arith.truncf %127 : vector<16x256xf32> to vector<16x256xbf16>
    %c0_50 = arith.constant 0 : index
    %c0_51 = arith.constant 0 : index
    %129 = vector.load %arg14[%c0_50, %c0_51] : memref<256x256xbf16, #tpu.memory_space<vmem>>, vector<256x256xbf16>
    %c0_52 = arith.constant 0 : index
    %c0_53 = arith.constant 0 : index
    %130 = vector.load %arg15[%c0_52, %c0_53] : memref<1x256xbf16, #tpu.memory_space<vmem>>, vector<1x256xbf16>
    %c0_54 = arith.constant 0 : index
    %c0_55 = arith.constant 0 : index
    %131 = vector.load %arg16[%c0_54, %c0_55] : memref<256x256xbf16, #tpu.memory_space<vmem>>, vector<256x256xbf16>
    %c0_56 = arith.constant 0 : index
    %c0_57 = arith.constant 0 : index
    %132 = vector.load %arg17[%c0_56, %c0_57] : memref<1x256xbf16, #tpu.memory_space<vmem>>, vector<1x256xbf16>
    %c0_58 = arith.constant 0 : index
    %c0_59 = arith.constant 0 : index
    %133 = vector.load %arg18[%c0_58, %c0_59] : memref<256x256xbf16, #tpu.memory_space<vmem>>, vector<256x256xbf16>
    %c0_60 = arith.constant 0 : index
    %c0_61 = arith.constant 0 : index
    %134 = vector.load %arg19[%c0_60, %c0_61] : memref<1x256xbf16, #tpu.memory_space<vmem>>, vector<1x256xbf16>
    %c0_62 = arith.constant 0 : index
    %c0_63 = arith.constant 0 : index
    %135 = vector.load %arg20[%c0_62, %c0_63] : memref<256x256xbf16, #tpu.memory_space<vmem>>, vector<256x256xbf16>
    %c0_64 = arith.constant 0 : index
    %c0_65 = arith.constant 0 : index
    %136 = vector.load %arg21[%c0_64, %c0_65] : memref<1x256xbf16, #tpu.memory_space<vmem>>, vector<1x256xbf16>
    %cst_66 = arith.constant dense<0.000000e+00> : vector<16x256xf32>
    %137 = tpu.matmul %128, %129, %cst_66 {dimension_numbers = #tpu.dot_dimension_numbers<[1], [0], [0], [1], [0, 0, 1, 1], [], []>} : vector<16x256xbf16>, vector<256x256xbf16>, vector<16x256xf32> -> vector<16x256xf32>
    %138 = arith.extf %130 : vector<1x256xbf16> to vector<1x256xf32>
    %139 = vector.broadcast %138 : vector<1x256xf32> to vector<16x256xf32>
    %140 = arith.addf %137, %139 : vector<16x256xf32>
    %cst_67 = arith.constant dense<0.000000e+00> : vector<16x256xf32>
    %141 = tpu.matmul %128, %131, %cst_67 {dimension_numbers = #tpu.dot_dimension_numbers<[1], [0], [0], [1], [0, 0, 1, 1], [], []>} : vector<16x256xbf16>, vector<256x256xbf16>, vector<16x256xf32> -> vector<16x256xf32>
    %142 = arith.extf %132 : vector<1x256xbf16> to vector<1x256xf32>
    %143 = vector.broadcast %142 : vector<1x256xf32> to vector<16x256xf32>
    %144 = arith.addf %141, %143 : vector<16x256xf32>
    %cst_68 = arith.constant dense<0.000000e+00> : vector<16x256xf32>
    %145 = tpu.matmul %128, %133, %cst_68 {dimension_numbers = #tpu.dot_dimension_numbers<[1], [0], [0], [1], [0, 0, 1, 1], [], []>} : vector<16x256xbf16>, vector<256x256xbf16>, vector<16x256xf32> -> vector<16x256xf32>
    %146 = arith.extf %134 : vector<1x256xbf16> to vector<1x256xf32>
    %147 = vector.broadcast %146 : vector<1x256xf32> to vector<16x256xf32>
    %148 = arith.addf %145, %147 : vector<16x256xf32>
    %cst_69 = arith.constant 0.0883883461 : f32
    %149 = vector.broadcast %cst_69 : f32 to vector<16x256xf32>
    %150 = arith.mulf %140, %149 : vector<16x256xf32>
    %151 = arith.truncf %150 : vector<16x256xf32> to vector<16x256xbf16>
    %152 = arith.truncf %144 : vector<16x256xf32> to vector<16x256xbf16>
    %153 = arith.truncf %148 : vector<16x256xf32> to vector<16x256xbf16>
    %154 = tpu.iota {dimensions = array<i32: 0>} : vector<16x16xi32>
    %155 = tpu.iota {dimensions = array<i32: 1>} : vector<16x16xi32>
    %156 = arith.cmpi sle, %155, %154 : vector<16x16xi32>
    %157 = vector.extract_strided_slice %151 {offsets = [0, 0], sizes = [16, 128], strides = [1, 1]} : vector<16x256xbf16> to vector<16x128xbf16>
    %158 = vector.extract_strided_slice %152 {offsets = [0, 0], sizes = [16, 128], strides = [1, 1]} : vector<16x256xbf16> to vector<16x128xbf16>
    %159 = vector.extract_strided_slice %153 {offsets = [0, 0], sizes = [16, 128], strides = [1, 1]} : vector<16x256xbf16> to vector<16x128xbf16>
    %cst_70 = arith.constant dense<0.000000e+00> : vector<16x16xf32>
    %160 = tpu.matmul %157, %158, %cst_70 {dimension_numbers = #tpu.dot_dimension_numbers<[1], [1], [0], [0], [0, 0, 1, 0], [], []>} : vector<16x128xbf16>, vector<16x128xbf16>, vector<16x16xf32> -> vector<16x16xf32>
    %cst_71 = arith.constant -1.000000e+30 : f32
    %161 = vector.broadcast %cst_71 : f32 to vector<16x16xf32>
    %162 = arith.select %156, %160, %161 : vector<16x16xi1>, vector<16x16xf32>
    %cst_72 = arith.constant dense<0xFF800000> : vector<16xf32>
    %163 = vector.multi_reduction <maximumf>, %162, %cst_72 [1] : vector<16x16xf32> to vector<16xf32>
    %164 = vector.shape_cast %163 : vector<16xf32> to vector<16x1xf32>
    %165 = vector.broadcast %164 : vector<16x1xf32> to vector<16x16xf32>
    %166 = arith.subf %162, %165 : vector<16x16xf32>
    %167 = math.exp %166 : vector<16x16xf32>
    %cst_73 = arith.constant dense<0.000000e+00> : vector<16xf32>
    %168 = vector.multi_reduction <add>, %167, %cst_73 [1] : vector<16x16xf32> to vector<16xf32>
    %169 = vector.shape_cast %168 : vector<16xf32> to vector<16x1xf32>
    %170 = arith.truncf %167 : vector<16x16xf32> to vector<16x16xbf16>
    %cst_74 = arith.constant dense<0.000000e+00> : vector<16x128xf32>
    %171 = tpu.matmul %170, %159, %cst_74 {dimension_numbers = #tpu.dot_dimension_numbers<[1], [0], [0], [1], [0, 0, 1, 1], [], []>} : vector<16x16xbf16>, vector<16x128xbf16>, vector<16x128xf32> -> vector<16x128xf32>
    %172 = tpu.reciprocal %169 {approx = true} : vector<16x1xf32> -> vector<16x1xf32>
    %173 = vector.broadcast %172 : vector<16x1xf32> to vector<16x128xf32>
    %174 = arith.mulf %171, %173 : vector<16x128xf32>
    %175 = vector.extract_strided_slice %151 {offsets = [0, 128], sizes = [16, 128], strides = [1, 1]} : vector<16x256xbf16> to vector<16x128xbf16>
    %176 = vector.extract_strided_slice %152 {offsets = [0, 128], sizes = [16, 128], strides = [1, 1]} : vector<16x256xbf16> to vector<16x128xbf16>
    %177 = vector.extract_strided_slice %153 {offsets = [0, 128], sizes = [16, 128], strides = [1, 1]} : vector<16x256xbf16> to vector<16x128xbf16>
    %cst_75 = arith.constant dense<0.000000e+00> : vector<16x16xf32>
    %178 = tpu.matmul %175, %176, %cst_75 {dimension_numbers = #tpu.dot_dimension_numbers<[1], [1], [0], [0], [0, 0, 1, 0], [], []>} : vector<16x128xbf16>, vector<16x128xbf16>, vector<16x16xf32> -> vector<16x16xf32>
    %cst_76 = arith.constant -1.000000e+30 : f32
    %179 = vector.broadcast %cst_76 : f32 to vector<16x16xf32>
    %180 = arith.select %156, %178, %179 : vector<16x16xi1>, vector<16x16xf32>
    %cst_77 = arith.constant dense<0xFF800000> : vector<16xf32>
    %181 = vector.multi_reduction <maximumf>, %180, %cst_77 [1] : vector<16x16xf32> to vector<16xf32>
    %182 = vector.shape_cast %181 : vector<16xf32> to vector<16x1xf32>
    %183 = vector.broadcast %182 : vector<16x1xf32> to vector<16x16xf32>
    %184 = arith.subf %180, %183 : vector<16x16xf32>
    %185 = math.exp %184 : vector<16x16xf32>
    %cst_78 = arith.constant dense<0.000000e+00> : vector<16xf32>
    %186 = vector.multi_reduction <add>, %185, %cst_78 [1] : vector<16x16xf32> to vector<16xf32>
    %187 = vector.shape_cast %186 : vector<16xf32> to vector<16x1xf32>
    %188 = arith.truncf %185 : vector<16x16xf32> to vector<16x16xbf16>
    %cst_79 = arith.constant dense<0.000000e+00> : vector<16x128xf32>
    %189 = tpu.matmul %188, %177, %cst_79 {dimension_numbers = #tpu.dot_dimension_numbers<[1], [0], [0], [1], [0, 0, 1, 1], [], []>} : vector<16x16xbf16>, vector<16x128xbf16>, vector<16x128xf32> -> vector<16x128xf32>
    %190 = tpu.reciprocal %187 {approx = true} : vector<16x1xf32> -> vector<16x1xf32>
    %191 = vector.broadcast %190 : vector<16x1xf32> to vector<16x128xf32>
    %192 = arith.mulf %189, %191 : vector<16x128xf32>
    %193 = tpu.concatenate %174, %192 in 1 : vector<16x128xf32>, vector<16x128xf32> -> vector<16x256xf32>
    %194 = arith.truncf %193 : vector<16x256xf32> to vector<16x256xbf16>
    %cst_80 = arith.constant dense<0.000000e+00> : vector<16x256xf32>
    %195 = tpu.matmul %194, %135, %cst_80 {dimension_numbers = #tpu.dot_dimension_numbers<[1], [0], [0], [1], [0, 0, 1, 1], [], []>} : vector<16x256xbf16>, vector<256x256xbf16>, vector<16x256xf32> -> vector<16x256xf32>
    %196 = arith.extf %136 : vector<1x256xbf16> to vector<1x256xf32>
    %197 = vector.broadcast %196 : vector<1x256xf32> to vector<16x256xf32>
    %198 = arith.addf %195, %197 : vector<16x256xf32>
    %199 = arith.truncf %198 : vector<16x256xf32> to vector<16x256xbf16>
    %c0_81 = arith.constant 0 : index
    %c0_82 = arith.constant 0 : index
    %200 = vector.load %arg22[%c0_81, %c0_82] : memref<256x512xbf16, #tpu.memory_space<vmem>>, vector<256x512xbf16>
    %cst_83 = arith.constant dense<0.000000e+00> : vector<16x512xf32>
    %201 = tpu.matmul %199, %200, %cst_83 {dimension_numbers = #tpu.dot_dimension_numbers<[1], [0], [0], [1], [0, 0, 1, 1], [], []>} : vector<16x256xbf16>, vector<256x512xbf16>, vector<16x512xf32> -> vector<16x512xf32>
    %c0_84 = arith.constant 0 : index
    %c0_85 = arith.constant 0 : index
    %202 = vector.load %arg23[%c0_84, %c0_85] : memref<1x512xbf16, #tpu.memory_space<vmem>>, vector<1x512xbf16>
    %203 = arith.extf %202 : vector<1x512xbf16> to vector<1x512xf32>
    %204 = vector.broadcast %203 : vector<1x512xf32> to vector<16x512xf32>
    %205 = arith.addf %201, %204 : vector<16x512xf32>
    %cst_86 = arith.constant 0.000000e+00 : f32
    %206 = vector.broadcast %cst_86 : f32 to vector<16x512xf32>
    %207 = arith.maximumf %205, %206 : vector<16x512xf32>
    %208 = arith.truncf %207 : vector<16x512xf32> to vector<16x512xbf16>
    %c0_87 = arith.constant 0 : index
    %c0_88 = arith.constant 0 : index
    %209 = vector.load %arg24[%c0_87, %c0_88] : memref<512x256xbf16, #tpu.memory_space<vmem>>, vector<512x256xbf16>
    %cst_89 = arith.constant dense<0.000000e+00> : vector<16x256xf32>
    %210 = tpu.matmul %208, %209, %cst_89 {dimension_numbers = #tpu.dot_dimension_numbers<[1], [0], [0], [1], [0, 0, 1, 1], [], []>} : vector<16x512xbf16>, vector<512x256xbf16>, vector<16x256xf32> -> vector<16x256xf32>
    %c0_90 = arith.constant 0 : index
    %c0_91 = arith.constant 0 : index
    %211 = vector.load %arg25[%c0_90, %c0_91] : memref<1x256xbf16, #tpu.memory_space<vmem>>, vector<1x256xbf16>
    %212 = arith.extf %211 : vector<1x256xbf16> to vector<1x256xf32>
    %213 = vector.broadcast %212 : vector<1x256xf32> to vector<16x256xf32>
    %214 = arith.addf %210, %213 : vector<16x256xf32>
    %215 = arith.addf %101, %214 : vector<16x256xf32>
    %216 = arith.truncf %215 : vector<16x256xf32> to vector<16x256xbf16>
    %c0_92 = arith.constant 0 : index
    %c0_93 = arith.constant 0 : index
    %c0_94 = arith.constant 0 : index
    %217 = vector.load %arg26[%c0_92, %c0_93, %c0_94] : memref<1x16x256xbf16, #tpu.memory_space<vmem>>, vector<1x16x256xbf16>
    %218 = vector.shape_cast %217 : vector<1x16x256xbf16> to vector<16x256xbf16>
    %219 = vector.shape_cast %216 : vector<16x256xbf16> to vector<1x16x256xbf16>
    tpu.vector_store %arg26[%c0_92, %c0_93, %c0_94], %219 {strides = array<i32>} : memref<1x16x256xbf16, #tpu.memory_space<vmem>>, vector<1x16x256xbf16>,
    return
  }
  func.func @transform_0(%arg0: i32) -> (i32, i32, i32) {
    %c0_i32 = arith.constant 0 : i32
    %c0_i32_0 = arith.constant 0 : i32
    %c0_i32_1 = arith.constant 0 : i32
    return %arg0, %c0_i32, %c0_i32_0 : i32, i32, i32
  }
  func.func @transform_1(%arg0: i32) -> (i32, i32) {
    %c0_i32 = arith.constant 0 : i32
    %c0_i32_0 = arith.constant 0 : i32
    %c0_i32_1 = arith.constant 0 : i32
    return %c0_i32, %c0_i32_0 : i32, i32
  }
  func.func @transform_2(%arg0: i32) -> (i32, i32) {
    %c0_i32 = arith.constant 0 : i32
    %c0_i32_0 = arith.constant 0 : i32
    %c0_i32_1 = arith.constant 0 : i32
    return %c0_i32, %c0_i32_0 : i32, i32
  }
  func.func @transform_3(%arg0: i32) -> (i32, i32) {
    %c0_i32 = arith.constant 0 : i32
    %c0_i32_0 = arith.constant 0 : i32
    %c0_i32_1 = arith.constant 0 : i32
    return %c0_i32, %c0_i32_0 : i32, i32
  }
  func.func @transform_4(%arg0: i32) -> (i32, i32) {
    %c0_i32 = arith.constant 0 : i32
    %c0_i32_0 = arith.constant 0 : i32
    %c0_i32_1 = arith.constant 0 : i32
    return %c0_i32, %c0_i32_0 : i32, i32
  }
  func.func @transform_5(%arg0: i32) -> (i32, i32) {
    %c0_i32 = arith.constant 0 : i32
    %c0_i32_0 = arith.constant 0 : i32
    %c0_i32_1 = arith.constant 0 : i32
    return %c0_i32, %c0_i32_0 : i32, i32
  }
  func.func @transform_6(%arg0: i32) -> (i32, i32) {
    %c0_i32 = arith.constant 0 : i32
    %c0_i32_0 = arith.constant 0 : i32
    %c0_i32_1 = arith.constant 0 : i32
    return %c0_i32, %c0_i32_0 : i32, i32
  }
  func.func @transform_7(%arg0: i32) -> (i32, i32) {
    %c0_i32 = arith.constant 0 : i32
    %c0_i32_0 = arith.constant 0 : i32
    %c0_i32_1 = arith.constant 0 : i32
    return %c0_i32, %c0_i32_0 : i32, i32
  }
  func.func @transform_8(%arg0: i32) -> (i32, i32) {
    %c0_i32 = arith.constant 0 : i32
    %c0_i32_0 = arith.constant 0 : i32
    %c0_i32_1 = arith.constant 0 : i32
    return %c0_i32, %c0_i32_0 : i32, i32
  }
  func.func @transform_9(%arg0: i32) -> (i32, i32) {
    %c0_i32 = arith.constant 0 : i32
    %c0_i32_0 = arith.constant 0 : i32
    %c0_i32_1 = arith.constant 0 : i32
    return %c0_i32, %c0_i32_0 : i32, i32
  }
  func.func @transform_10(%arg0: i32) -> (i32, i32) {
    %c0_i32 = arith.constant 0 : i32
    %c0_i32_0 = arith.constant 0 : i32
    %c0_i32_1 = arith.constant 0 : i32
    return %c0_i32, %c0_i32_0 : i32, i32
  }
  func.func @transform_11(%arg0: i32) -> (i32, i32) {
    %c0_i32 = arith.constant 0 : i32
    %c0_i32_0 = arith.constant 0 : i32
    %c0_i32_1 = arith.constant 0 : i32
    return %c0_i32, %c0_i32_0 : i32, i32
  }
  func.func @transform_12(%arg0: i32) -> (i32, i32) {
    %c0_i32 = arith.constant 0 : i32
    %c0_i32_0 = arith.constant 0 : i32
    %c0_i32_1 = arith.constant 0 : i32
    return %c0_i32, %c0_i32_0 : i32, i32
  }
  func.func @transform_13(%arg0: i32) -> (i32, i32) {
    %c0_i32 = arith.constant 0 : i32
    %c0_i32_0 = arith.constant 0 : i32
    %c0_i32_1 = arith.constant 0 : i32
    return %c0_i32, %c0_i32_0 : i32, i32
  }
  func.func @transform_14(%arg0: i32) -> (i32, i32) {
    %c0_i32 = arith.constant 0 : i32
    %c0_i32_0 = arith.constant 0 : i32
    %c0_i32_1 = arith.constant 0 : i32
    return %c0_i32, %c0_i32_0 : i32, i32
  }
  func.func @transform_15(%arg0: i32) -> (i32, i32) {
    %c0_i32 = arith.constant 0 : i32
    %c0_i32_0 = arith.constant 0 : i32
    %c0_i32_1 = arith.constant 0 : i32
    return %c0_i32, %c0_i32_0 : i32, i32
  }
  func.func @transform_16(%arg0: i32) -> (i32, i32) {
    %c0_i32 = arith.constant 0 : i32
    %c0_i32_0 = arith.constant 0 : i32
    %c0_i32_1 = arith.constant 0 : i32
    return %c0_i32, %c0_i32_0 : i32, i32
  }
  func.func @transform_17(%arg0: i32) -> (i32, i32) {
    %c0_i32 = arith.constant 0 : i32
    %c0_i32_0 = arith.constant 0 : i32
    %c0_i32_1 = arith.constant 0 : i32
    return %c0_i32, %c0_i32_0 : i32, i32
  }
  func.func @transform_18(%arg0: i32) -> (i32, i32) {
    %c0_i32 = arith.constant 0 : i32
    %c0_i32_0 = arith.constant 0 : i32
    %c0_i32_1 = arith.constant 0 : i32
    return %c0_i32, %c0_i32_0 : i32, i32
  }
  func.func @transform_19(%arg0: i32) -> (i32, i32) {
    %c0_i32 = arith.constant 0 : i32
    %c0_i32_0 = arith.constant 0 : i32
    %c0_i32_1 = arith.constant 0 : i32
    return %c0_i32, %c0_i32_0 : i32, i32
  }
  func.func @transform_20(%arg0: i32) -> (i32, i32) {
    %c0_i32 = arith.constant 0 : i32
    %c0_i32_0 = arith.constant 0 : i32
    %c0_i32_1 = arith.constant 0 : i32
    return %c0_i32, %c0_i32_0 : i32, i32
  }
  func.func @transform_21(%arg0: i32) -> (i32, i32) {
    %c0_i32 = arith.constant 0 : i32
    %c0_i32_0 = arith.constant 0 : i32
    %c0_i32_1 = arith.constant 0 : i32
    return %c0_i32, %c0_i32_0 : i32, i32
  }
  func.func @transform_22(%arg0: i32) -> (i32, i32) {
    %c0_i32 = arith.constant 0 : i32
    %c0_i32_0 = arith.constant 0 : i32
    %c0_i32_1 = arith.constant 0 : i32
    return %c0_i32, %c0_i32_0 : i32, i32
  }
  func.func @transform_23(%arg0: i32) -> (i32, i32) {
    %c0_i32 = arith.constant 0 : i32
    %c0_i32_0 = arith.constant 0 : i32
    %c0_i32_1 = arith.constant 0 : i32
    return %c0_i32, %c0_i32_0 : i32, i32
  }
  func.func @transform_24(%arg0: i32) -> (i32, i32) {
    %c0_i32 = arith.constant 0 : i32
    %c0_i32_0 = arith.constant 0 : i32
    %c0_i32_1 = arith.constant 0 : i32
    return %c0_i32, %c0_i32_0 : i32, i32
  }
  func.func @transform_25(%arg0: i32) -> (i32, i32, i32) {
    %c0_i32 = arith.constant 0 : i32
    %c0_i32_0 = arith.constant 0 : i32
    %c0_i32_1 = arith.constant 0 : i32
    return %arg0, %c0_i32, %c0_i32_0 : i32, i32, i32
  }
}

</mosaic_0001>

<llo_original>
// kernel: tpu_custom_call.1
$region0: #{tpu_custom_call.1}
  #allocation0 [shape = 'u32[]', space=smem, size = 0x4, offset = 0x4, fixed_abs, tag = 'smem constant byte address 0x4 - core index']
  #allocation1 [shape = 'u32[144,128]{1,0:T(1,128)}', space=vmem, size = 0x12000, scoped, tag = 'internal scratch']
  %s0 = inlined_call_operand.hbm [shape: bf16[2,16,256], index: 0, kind: input, shape index: {}]
  %s1 = inlined_call_operand.vmem [shape: bf16[1,256], index: 1, kind: input, shape index: {}]
  %s2 = inlined_call_operand.hbm [shape: bf16[1,256], index: 2, kind: input, shape index: {}]
  %s3 = inlined_call_operand.hbm [shape: bf16[256,256], index: 3, kind: input, shape index: {}]
  %s4 = inlined_call_operand.vmem [shape: bf16[1,256], index: 4, kind: input, shape index: {}]
  %s5 = inlined_call_operand.hbm [shape: bf16[256,256], index: 5, kind: input, shape index: {}]
  %s6 = inlined_call_operand.vmem [shape: bf16[1,256], index: 6, kind: input, shape index: {}]
  %s7 = inlined_call_operand.hbm [shape: bf16[256,256], index: 7, kind: input, shape index: {}]
  %s8 = inlined_call_operand.vmem [shape: bf16[1,256], index: 8, kind: input, shape index: {}]
  %s9 = inlined_call_operand.hbm [shape: bf16[256,256], index: 9, kind: input, shape index: {}]
  %s10 = inlined_call_operand.vmem [shape: bf16[1,256], index: 10, kind: input, shape index: {}]
  %s11 = inlined_call_operand.vmem [shape: bf16[1,256], index: 11, kind: input, shape index: {}]
  %s12 = inlined_call_operand.vmem [shape: bf16[1,256], index: 12, kind: input, shape index: {}]
  %s13 = inlined_call_operand.hbm [shape: bf16[256,256], index: 13, kind: input, shape index: {}]
  %s14 = inlined_call_operand.vmem [shape: bf16[1,256], index: 14, kind: input, shape index: {}]
  %s15 = inlined_call_operand.hbm [shape: bf16[256,256], index: 15, kind: input, shape index: {}]
  %s16 = inlined_call_operand.vmem [shape: bf16[1,256], index: 16, kind: input, shape index: {}]
  %s17 = inlined_call_operand.hbm [shape: bf16[256,256], index: 17, kind: input, shape index: {}]
  %s18 = inlined_call_operand.vmem [shape: bf16[1,256], index: 18, kind: input, shape index: {}]
  %s19 = inlined_call_operand.hbm [shape: bf16[256,256], index: 19, kind: input, shape index: {}]
  %s20 = inlined_call_operand.vmem [shape: bf16[1,256], index: 20, kind: input, shape index: {}]
  %s21 = inlined_call_operand.hbm [shape: bf16[256,512], index: 21, kind: input, shape index: {}]
  %s22 = inlined_call_operand.vmem [shape: bf16[1,512], index: 22, kind: input, shape index: {}]
  %s23 = inlined_call_operand.hbm [shape: bf16[512,256], index: 23, kind: input, shape index: {}]
  %s24 = inlined_call_operand.vmem [shape: bf16[1,256], index: 24, kind: input, shape index: {}]
  %s25 = inlined_call_operand.hbm [shape: bf16[2,16,256], index: 25, kind: output, shape index: {}]
  %s26 = sld [smem:[#allocation0]]
  $region181: #{tpu_custom_call.1} parent=0
    _
  %s28 = ssub.s32 1, %s26
  %s29 = scalar_select 0, %s28, %s26
  $region1: #{tpu_custom_call.1} parent=0
    #allocation2 [shape = 'u8[16384]{0}', space=vmem, size = 0x4000, scoped, tag = 'input window, operand 0']
    #allocation3 [shape = 's32[2]{0}', space=sflag, size = 0x8, scoped, tag = 'scoped memory for tpu_custom_call.1']
    #allocation4 [shape = 's32[2]{0}', space=sflag, size = 0x8, scoped, tag = 'scoped memory for tpu_custom_call.1']
    #allocation5 [shape = 'u8[1024]{0}', space=vmem, size = 0x400, scoped, tag = 'input window, operand 2, single buffered']
    #allocation6 [shape = 's32[1]{0}', space=sflag, size = 0x4, scoped, tag = 'scoped memory for tpu_custom_call.1']
    #allocation7 [shape = 'u8[131072]{0}', space=vmem, size = 0x20000, scoped, tag = 'input window, operand 3, single buffered']
    #allocation8 [shape = 'u8[131072]{0}', space=vmem, size = 0x20000, scoped, tag = 'input window, operand 5, single buffered']
    #allocation9 [shape = 's32[1]{0}', space=sflag, size = 0x4, scoped, tag = 'scoped memory for tpu_custom_call.1']
    #allocation10 [shape = 'u8[131072]{0}', space=vmem, size = 0x20000, scoped, tag = 'input window, operand 7, single buffered']
    #allocation11 [shape = 'u8[131072]{0}', space=vmem, size = 0x20000, scoped, tag = 'input window, operand 9, single buffered']
    #allocation12 [shape = 's32[1]{0}', space=sflag, size = 0x4, scoped, tag = 'scoped memory for tpu_custom_call.1']
    #allocation13 [shape = 'u8[131072]{0}', space=vmem, size = 0x20000, scoped, tag = 'input window, operand 13, single buffered']
    #allocation14 [shape = 'u8[131072]{0}', space=vmem, size = 0x20000, scoped, tag = 'input window, operand 15, single buffered']
    #allocation15 [shape = 's32[1]{0}', space=sflag, size = 0x4, scoped, tag = 'scoped memory for tpu_custom_call.1']
    #allocation16 [shape = 'u8[131072]{0}', space=vmem, size = 0x20000, scoped, tag = 'input window, operand 17, single buffered']
    #allocation17 [shape = 'u8[131072]{0}', space=vmem, size = 0x20000, scoped, tag = 'input window, operand 19, single buffered']
    #allocation18 [shape = 's32[1]{0}', space=sflag, size = 0x4, scoped, tag = 'scoped memory for tpu_custom_call.1']
    #allocation19 [shape = 'u8[262144]{0}', space=vmem, size = 0x40000, scoped, tag = 'input window, operand 21, single buffered']
    #allocation20 [shape = 'u8[262144]{0}', space=vmem, size = 0x40000, scoped, tag = 'input window, operand 23, single buffered']
    #allocation21 [shape = 's32[1]{0}', space=sflag, size = 0x4, scoped, tag = 'scoped memory for tpu_custom_call.1']
    #allocation22 [shape = 'u8[16384]{0}', space=vmem, size = 0x4000, scoped, tag = 'output window, operand 0']
    %30 = vsyncpa [#allocation3], 0
    %s31 = scalar_lea.sflag [#allocation3], 1
    %32 = vsyncpa %s31, 0
    %33 = vsyncpa [#allocation6], 0
    %34 = vsyncpa [#allocation9], 0
    %35 = vsyncpa [#allocation12], 0
    %36 = vsyncpa [#allocation15], 0
    %37 = vsyncpa [#allocation18], 0
    %38 = vsyncpa [#allocation21], 0
    %39 = vsyncpa [#allocation4], 0
    %s40 = scalar_lea.sflag [#allocation4], 1
    %41 = vsyncpa %s40, 0
    loop: start=0, step=1, limit=4
    $region2: #{tpu_custom_call.1} parent=1 // loop_pre_header
      _
    $region3: #{tpu_custom_call.1} parent=1 // loop_header
      %s43 = sphi 0, %s47
      %p44 = scmp.ge.s32.totalorder %s43, 4
      %s53 = sphi 0, %s55
      %s56 = sphi 0, %s53
      %s57 = sphi 0, %s56
      %s73 = sphi 0, %s57
      %s77 = sphi 0, %s77
      %s79 = sphi 0, %s77
      %s80 = sphi 0, %s79
      %s94 = sphi 0, %s80
      %s98 = sphi 0, %s98
      %s100 = sphi 0, %s98
      %s101 = sphi 0, %s100
      %s115 = sphi 0, %s101
      %s119 = sphi 0, %s119
      %s121 = sphi 0, %s119
      %s122 = sphi 0, %s121
      %s136 = sphi 0, %s122
      %s140 = sphi 0, %s140
      %s142 = sphi 0, %s140
      %s143 = sphi 0, %s142
      %s157 = sphi 0, %s143
      %s161 = sphi 0, %s161
      %s163 = sphi 0, %s161
      %s164 = sphi 0, %s163
      %s178 = sphi 0, %s164
      %s182 = sphi 0, %s182
      %s184 = sphi 0, %s182
      %s185 = sphi 0, %s184
      %s199 = sphi 0, %s185
      %s203 = sphi 0, %s203
      %s205 = sphi 0, %s203
      %s206 = sphi 0, %s205
      %s220 = sphi 0, %s206
      %s224 = sphi 0, %s224
      %s226 = sphi 0, %s224
      %s227 = sphi 0, %s226
      %s241 = sphi 0, %s227
      %s245 = sphi 0, %s245
      %s247 = sphi 0, %s245
      %s248 = sphi 0, %s247
      %s262 = sphi 0, %s248
      %s266 = sphi 0, %s266
      %s268 = sphi 0, %s266
      %s269 = sphi 0, %s268
      %s283 = sphi 0, %s269
      %s287 = sphi 0, %s287
      %s289 = sphi 0, %s287
      %s290 = sphi 0, %s289
      %s304 = sphi 0, %s290
      %s308 = sphi 0, %s308
      %s310 = sphi 0, %s308
      %s311 = sphi 0, %s310
      %s325 = sphi 0, %s311
      %s329 = sphi 0, %s329
      %s331 = sphi 0, %s329
      %s332 = sphi 0, %s331
      %s346 = sphi 0, %s332
      %s350 = sphi 0, %s350
      %s352 = sphi 0, %s350
      %s353 = sphi 0, %s352
      %s367 = sphi 0, %s353
      %s371 = sphi 0, %s371
      %s373 = sphi 0, %s371
      %s374 = sphi 0, %s373
      %s388 = sphi 0, %s374
      %s392 = sphi 0, %s392
      %s394 = sphi 0, %s392
      %s395 = sphi 0, %s394
      %s409 = sphi 0, %s395
      %s413 = sphi 0, %s413
      %s415 = sphi 0, %s413
      %s416 = sphi 0, %s415
      %s430 = sphi 0, %s416
      %s434 = sphi 0, %s434
      %s436 = sphi 0, %s434
      %s437 = sphi 0, %s436
      %s451 = sphi 0, %s437
      %s455 = sphi 0, %s455
      %s457 = sphi 0, %s455
      %s458 = sphi 0, %s457
      %s472 = sphi 0, %s458
      %s476 = sphi 0, %s476
      %s478 = sphi 0, %s476
      %s479 = sphi 0, %s478
      %s493 = sphi 0, %s479
      %s497 = sphi 0, %s497
      %s499 = sphi 0, %s497
      %s500 = sphi 0, %s499
      %s514 = sphi 0, %s500
      %s518 = sphi 0, %s518
      %s520 = sphi 0, %s518
      %s521 = sphi 0, %s520
      %s535 = sphi 0, %s521
      %s539 = sphi 0, %s539
      %s541 = sphi 0, %s539
      %s542 = sphi 0, %s541
      %s556 = sphi 0, %s542
      %s560 = sphi 0, %s560
      %s562 = sphi 0, %s560
      %s563 = sphi 0, %s562
      %s577 = sphi 0, %s563
      %s583 = sphi 0, %s585
      %s586 = sphi 0, %s583
      %s587 = sphi 0, %s586
      %s603 = sphi 0, %s587
    $region4: #{tpu_custom_call.1} parent=1 // loop_header_branch
      %46 = sbr.rel (%p44) target = $region8
    $region5: #{tpu_custom_call.1} parent=1 // loop_body
      %s48 = ssub.s32 %s43, 1
      %s49 = ssub.s32 %s43, 2
      %s50 = sadd.s32 %s43, 1
      %s51 = ssub.s32 %s43, %s50
      %p52 = scmp.eq.s32.totalorder %s51, 0
      %s54 = sadd.s32 %s53, 1
      %s55 = scalar_select %p52, %s53, %s54
      %p58 = pneg %p52
      %p59 = scmp.eq.s32.totalorder %s43, 1
      %p60 = por %p58, %p59
      %p61 = scmp.ne.s32.totalorder %s53, %s56
      %p62 = scmp.eq.s32.totalorder %s43, 0
      %p63 = por %p61, %p62
      %p64 = scmp.ne.s32.totalorder %s53, %s56
      %p65 = scmp.eq.s32.totalorder %s48, 1
      %p66 = por %p64, %p65
      %p67 = scmp.ne.s32.totalorder %s56, %s57
      %p68 = scmp.eq.s32.totalorder %s48, 0
      %p69 = por %p67, %p68
      %p70 = scmp.ne.s32.totalorder %s56, %s57
      %p71 = scmp.eq.s32.totalorder %s49, 1
      %p72 = por %p70, %p71
      %p74 = scmp.ne.s32.totalorder %s57, %s73
      %p75 = scmp.eq.s32.totalorder %s49, 0
      %p76 = por %p74, %p75
      %s78 = sadd.s32 %s77, 1
      %p81 = scmp.eq.s32.totalorder %s43, 1
      %p82 = scmp.ne.s32.totalorder %s77, %s79
      %p83 = scmp.eq.s32.totalorder %s43, 0
      %p84 = por %p82, %p83
      %p85 = scmp.ne.s32.totalorder %s77, %s79
      %p86 = scmp.eq.s32.totalorder %s48, 1
      %p87 = por %p85, %p86
      %p88 = scmp.ne.s32.totalorder %s79, %s80
      %p89 = scmp.eq.s32.totalorder %s48, 0
      %p90 = por %p88, %p89
      %p91 = scmp.ne.s32.totalorder %s79, %s80
      %p92 = scmp.eq.s32.totalorder %s49, 1
      %p93 = por %p91, %p92
      %p95 = scmp.ne.s32.totalorder %s80, %s94
      %p96 = scmp.eq.s32.totalorder %s49, 0
      %p97 = por %p95, %p96
      %s99 = sadd.s32 %s98, 1
      %p102 = scmp.eq.s32.totalorder %s43, 1
      %p103 = scmp.ne.s32.totalorder %s98, %s100
      %p104 = scmp.eq.s32.totalorder %s43, 0
      %p105 = por %p103, %p104
      %p106 = scmp.ne.s32.totalorder %s98, %s100
      %p107 = scmp.eq.s32.totalorder %s48, 1
      %p108 = por %p106, %p107
      %p109 = scmp.ne.s32.totalorder %s100, %s101
      %p110 = scmp.eq.s32.totalorder %s48, 0
      %p111 = por %p109, %p110
      %p112 = scmp.ne.s32.totalorder %s100, %s101
      %p113 = scmp.eq.s32.totalorder %s49, 1
      %p114 = por %p112, %p113
      %p116 = scmp.ne.s32.totalorder %s101, %s115
      %p117 = scmp.eq.s32.totalorder %s49, 0
      %p118 = por %p116, %p117
      %s120 = sadd.s32 %s119, 1
      %p123 = scmp.eq.s32.totalorder %s43, 1
      %p124 = scmp.ne.s32.totalorder %s119, %s121
      %p125 = scmp.eq.s32.totalorder %s43, 0
      %p126 = por %p124, %p125
      %p127 = scmp.ne.s32.totalorder %s119, %s121
      %p128 = scmp.eq.s32.totalorder %s48, 1
      %p129 = por %p127, %p128
      %p130 = scmp.ne.s32.totalorder %s121, %s122
      %p131 = scmp.eq.s32.totalorder %s48, 0
      %p132 = por %p130, %p131
      %p133 = scmp.ne.s32.totalorder %s121, %s122
      %p134 = scmp.eq.s32.totalorder %s49, 1
      %p135 = por %p133, %p134
      %p137 = scmp.ne.s32.totalorder %s122, %s136
      %p138 = scmp.eq.s32.totalorder %s49, 0
      %p139 = por %p137, %p138
      %s141 = sadd.s32 %s140, 1
      %p144 = scmp.eq.s32.totalorder %s43, 1
      %p145 = scmp.ne.s32.totalorder %s140, %s142
      %p146 = scmp.eq.s32.totalorder %s43, 0
      %p147 = por %p145, %p146
      %p148 = scmp.ne.s32.totalorder %s140, %s142
      %p149 = scmp.eq.s32.totalorder %s48, 1
      %p150 = por %p148, %p149
      %p151 = scmp.ne.s32.totalorder %s142, %s143
      %p152 = scmp.eq.s32.totalorder %s48, 0
      %p153 = por %p151, %p152
      %p154 = scmp.ne.s32.totalorder %s142, %s143
      %p155 = scmp.eq.s32.totalorder %s49, 1
      %p156 = por %p154, %p155
      %p158 = scmp.ne.s32.totalorder %s143, %s157
      %p159 = scmp.eq.s32.totalorder %s49, 0
      %p160 = por %p158, %p159
      %s162 = sadd.s32 %s161, 1
      %p165 = scmp.eq.s32.totalorder %s43, 1
      %p166 = scmp.ne.s32.totalorder %s161, %s163
      %p167 = scmp.eq.s32.totalorder %s43, 0
      %p168 = por %p166, %p167
      %p169 = scmp.ne.s32.totalorder %s161, %s163
      %p170 = scmp.eq.s32.totalorder %s48, 1
      %p171 = por %p169, %p170
      %p172 = scmp.ne.s32.totalorder %s163, %s164
      %p173 = scmp.eq.s32.totalorder %s48, 0
      %p174 = por %p172, %p173
      %p175 = scmp.ne.s32.totalorder %s163, %s164
      %p176 = scmp.eq.s32.totalorder %s49, 1
      %p177 = por %p175, %p176
      %p179 = scmp.ne.s32.totalorder %s164, %s178
      %p180 = scmp.eq.s32.totalorder %s49, 0
      %p181 = por %p179, %p180
      %s183 = sadd.s32 %s182, 1
      %p186 = scmp.eq.s32.totalorder %s43, 1
      %p187 = scmp.ne.s32.totalorder %s182, %s184
      %p188 = scmp.eq.s32.totalorder %s43, 0
      %p189 = por %p187, %p188
      %p190 = scmp.ne.s32.totalorder %s182, %s184
      %p191 = scmp.eq.s32.totalorder %s48, 1
      %p192 = por %p190, %p191
      %p193 = scmp.ne.s32.totalorder %s184, %s185
      %p194 = scmp.eq.s32.totalorder %s48, 0
      %p195 = por %p193, %p194
      %p196 = scmp.ne.s32.totalorder %s184, %s185
      %p197 = scmp.eq.s32.totalorder %s49, 1
      %p198 = por %p196, %p197
      %p200 = scmp.ne.s32.totalorder %s185, %s199
      %p201 = scmp.eq.s32.totalorder %s49, 0
      %p202 = por %p200, %p201
      %s204 = sadd.s32 %s203, 1
      %p207 = scmp.eq.s32.totalorder %s43, 1
      %p208 = scmp.ne.s32.totalorder %s203, %s205
      %p209 = scmp.eq.s32.totalorder %s43, 0
      %p210 = por %p208, %p209
      %p211 = scmp.ne.s32.totalorder %s203, %s205
      %p212 = scmp.eq.s32.totalorder %s48, 1
      %p213 = por %p211, %p212
      %p214 = scmp.ne.s32.totalorder %s205, %s206
      %p215 = scmp.eq.s32.totalorder %s48, 0
      %p216 = por %p214, %p215
      %p217 = scmp.ne.s32.totalorder %s205, %s206
      %p218 = scmp.eq.s32.totalorder %s49, 1
      %p219 = por %p217, %p218
      %p221 = scmp.ne.s32.totalorder %s206, %s220
      %p222 = scmp.eq.s32.totalorder %s49, 0
      %p223 = por %p221, %p222
      %s225 = sadd.s32 %s224, 1
      %p228 = scmp.eq.s32.totalorder %s43, 1
      %p229 = scmp.ne.s32.totalorder %s224, %s226
      %p230 = scmp.eq.s32.totalorder %s43, 0
      %p231 = por %p229, %p230
      %p232 = scmp.ne.s32.totalorder %s224, %s226
      %p233 = scmp.eq.s32.totalorder %s48, 1
      %p234 = por %p232, %p233
      %p235 = scmp.ne.s32.totalorder %s226, %s227
      %p236 = scmp.eq.s32.totalorder %s48, 0
      %p237 = por %p235, %p236
      %p238 = scmp.ne.s32.totalorder %s226, %s227
      %p239 = scmp.eq.s32.totalorder %s49, 1
      %p240 = por %p238, %p239
      %p242 = scmp.ne.s32.totalorder %s227, %s241
      %p243 = scmp.eq.s32.totalorder %s49, 0
      %p244 = por %p242, %p243
      %s246 = sadd.s32 %s245, 1
      %p249 = scmp.eq.s32.totalorder %s43, 1
      %p250 = scmp.ne.s32.totalorder %s245, %s247
      %p251 = scmp.eq.s32.totalorder %s43, 0
      %p252 = por %p250, %p251
      %p253 = scmp.ne.s32.totalorder %s245, %s247
      %p254 = scmp.eq.s32.totalorder %s48, 1
      %p255 = por %p253, %p254
      %p256 = scmp.ne.s32.totalorder %s247, %s248
      %p257 = scmp.eq.s32.totalorder %s48, 0
      %p258 = por %p256, %p257
      %p259 = scmp.ne.s32.totalorder %s247, %s248
      %p260 = scmp.eq.s32.totalorder %s49, 1
      %p261 = por %p259, %p260
      %p263 = scmp.ne.s32.totalorder %s248, %s262
      %p264 = scmp.eq.s32.totalorder %s49, 0
      %p265 = por %p263, %p264
      %s267 = sadd.s32 %s266, 1
      %p270 = scmp.eq.s32.totalorder %s43, 1
      %p271 = scmp.ne.s32.totalorder %s266, %s268
      %p272 = scmp.eq.s32.totalorder %s43, 0
      %p273 = por %p271, %p272
      %p274 = scmp.ne.s32.totalorder %s266, %s268
      %p275 = scmp.eq.s32.totalorder %s48, 1
      %p276 = por %p274, %p275
      %p277 = scmp.ne.s32.totalorder %s268, %s269
      %p278 = scmp.eq.s32.totalorder %s48, 0
      %p279 = por %p277, %p278
      %p280 = scmp.ne.s32.totalorder %s268, %s269
      %p281 = scmp.eq.s32.totalorder %s49, 1
      %p282 = por %p280, %p281
      %p284 = scmp.ne.s32.totalorder %s269, %s283
      %p285 = scmp.eq.s32.totalorder %s49, 0
      %p286 = por %p284, %p285
      %s288 = sadd.s32 %s287, 1
      %p291 = scmp.eq.s32.totalorder %s43, 1
      %p292 = scmp.ne.s32.totalorder %s287, %s289
      %p293 = scmp.eq.s32.totalorder %s43, 0
      %p294 = por %p292, %p293
      %p295 = scmp.ne.s32.totalorder %s287, %s289
      %p296 = scmp.eq.s32.totalorder %s48, 1
      %p297 = por %p295, %p296
      %p298 = scmp.ne.s32.totalorder %s289, %s290
      %p299 = scmp.eq.s32.totalorder %s48, 0
      %p300 = por %p298, %p299
      %p301 = scmp.ne.s32.totalorder %s289, %s290
      %p302 = scmp.eq.s32.totalorder %s49, 1
      %p303 = por %p301, %p302
      %p305 = scmp.ne.s32.totalorder %s290, %s304
      %p306 = scmp.eq.s32.totalorder %s49, 0
      %p307 = por %p305, %p306
      %s309 = sadd.s32 %s308, 1
      %p312 = scmp.eq.s32.totalorder %s43, 1
      %p313 = scmp.ne.s32.totalorder %s308, %s310
      %p314 = scmp.eq.s32.totalorder %s43, 0
      %p315 = por %p313, %p314
      %p316 = scmp.ne.s32.totalorder %s308, %s310
      %p317 = scmp.eq.s32.totalorder %s48, 1
      %p318 = por %p316, %p317
      %p319 = scmp.ne.s32.totalorder %s310, %s311
      %p320 = scmp.eq.s32.totalorder %s48, 0
      %p321 = por %p319, %p320
      %p322 = scmp.ne.s32.totalorder %s310, %s311
      %p323 = scmp.eq.s32.totalorder %s49, 1
      %p324 = por %p322, %p323
      %p326 = scmp.ne.s32.totalorder %s311, %s325
      %p327 = scmp.eq.s32.totalorder %s49, 0
      %p328 = por %p326, %p327
      %s330 = sadd.s32 %s329, 1
      %p333 = scmp.eq.s32.totalorder %s43, 1
      %p334 = scmp.ne.s32.totalorder %s329, %s331
      %p335 = scmp.eq.s32.totalorder %s43, 0
      %p336 = por %p334, %p335
      %p337 = scmp.ne.s32.totalorder %s329, %s331
      %p338 = scmp.eq.s32.totalorder %s48, 1
      %p339 = por %p337, %p338
      %p340 = scmp.ne.s32.totalorder %s331, %s332
      %p341 = scmp.eq.s32.totalorder %s48, 0
      %p342 = por %p340, %p341
      %p343 = scmp.ne.s32.totalorder %s331, %s332
      %p344 = scmp.eq.s32.totalorder %s49, 1
      %p345 = por %p343, %p344
      %p347 = scmp.ne.s32.totalorder %s332, %s346
      %p348 = scmp.eq.s32.totalorder %s49, 0
      %p349 = por %p347, %p348
      %s351 = sadd.s32 %s350, 1
      %p354 = scmp.eq.s32.totalorder %s43, 1
      %p355 = scmp.ne.s32.totalorder %s350, %s352
      %p356 = scmp.eq.s32.totalorder %s43, 0
      %p357 = por %p355, %p356
      %p358 = scmp.ne.s32.totalorder %s350, %s352
      %p359 = scmp.eq.s32.totalorder %s48, 1
      %p360 = por %p358, %p359
      %p361 = scmp.ne.s32.totalorder %s352, %s353
      %p362 = scmp.eq.s32.totalorder %s48, 0
      %p363 = por %p361, %p362
      %p364 = scmp.ne.s32.totalorder %s352, %s353
      %p365 = scmp.eq.s32.totalorder %s49, 1
      %p366 = por %p364, %p365
      %p368 = scmp.ne.s32.totalorder %s353, %s367
      %p369 = scmp.eq.s32.totalorder %s49, 0
      %p370 = por %p368, %p369
      %s372 = sadd.s32 %s371, 1
      %p375 = scmp.eq.s32.totalorder %s43, 1
      %p376 = scmp.ne.s32.totalorder %s371, %s373
      %p377 = scmp.eq.s32.totalorder %s43, 0
      %p378 = por %p376, %p377
      %p379 = scmp.ne.s32.totalorder %s371, %s373
      %p380 = scmp.eq.s32.totalorder %s48, 1
      %p381 = por %p379, %p380
      %p382 = scmp.ne.s32.totalorder %s373, %s374
      %p383 = scmp.eq.s32.totalorder %s48, 0
      %p384 = por %p382, %p383
      %p385 = scmp.ne.s32.totalorder %s373, %s374
      %p386 = scmp.eq.s32.totalorder %s49, 1
      %p387 = por %p385, %p386
      %p389 = scmp.ne.s32.totalorder %s374, %s388
      %p390 = scmp.eq.s32.totalorder %s49, 0
      %p391 = por %p389, %p390
      %s393 = sadd.s32 %s392, 1
      %p396 = scmp.eq.s32.totalorder %s43, 1
      %p397 = scmp.ne.s32.totalorder %s392, %s394
      %p398 = scmp.eq.s32.totalorder %s43, 0
      %p399 = por %p397, %p398
      %p400 = scmp.ne.s32.totalorder %s392, %s394
      %p401 = scmp.eq.s32.totalorder %s48, 1
      %p402 = por %p400, %p401
      %p403 = scmp.ne.s32.totalorder %s394, %s395
      %p404 = scmp.eq.s32.totalorder %s48, 0
      %p405 = por %p403, %p404
      %p406 = scmp.ne.s32.totalorder %s394, %s395
      %p407 = scmp.eq.s32.totalorder %s49, 1
      %p408 = por %p406, %p407
      %p410 = scmp.ne.s32.totalorder %s395, %s409
      %p411 = scmp.eq.s32.totalorder %s49, 0
      %p412 = por %p410, %p411
      %s414 = sadd.s32 %s413, 1
      %p417 = scmp.eq.s32.totalorder %s43, 1
      %p418 = scmp.ne.s32.totalorder %s413, %s415
      %p419 = scmp.eq.s32.totalorder %s43, 0
      %p420 = por %p418, %p419
      %p421 = scmp.ne.s32.totalorder %s413, %s415
      %p422 = scmp.eq.s32.totalorder %s48, 1
      %p423 = por %p421, %p422
      %p424 = scmp.ne.s32.totalorder %s415, %s416
      %p425 = scmp.eq.s32.totalorder %s48, 0
      %p426 = por %p424, %p425
      %p427 = scmp.ne.s32.totalorder %s415, %s416
      %p428 = scmp.eq.s32.totalorder %s49, 1
      %p429 = por %p427, %p428
      %p431 = scmp.ne.s32.totalorder %s416, %s430
      %p432 = scmp.eq.s32.totalorder %s49, 0
      %p433 = por %p431, %p432
      %s435 = sadd.s32 %s434, 1
      %p438 = scmp.eq.s32.totalorder %s43, 1
      %p439 = scmp.ne.s32.totalorder %s434, %s436
      %p440 = scmp.eq.s32.totalorder %s43, 0
      %p441 = por %p439, %p440
      %p442 = scmp.ne.s32.totalorder %s434, %s436
      %p443 = scmp.eq.s32.totalorder %s48, 1
      %p444 = por %p442, %p443
      %p445 = scmp.ne.s32.totalorder %s436, %s437
      %p446 = scmp.eq.s32.totalorder %s48, 0
      %p447 = por %p445, %p446
      %p448 = scmp.ne.s32.totalorder %s436, %s437
      %p449 = scmp.eq.s32.totalorder %s49, 1
      %p450 = por %p448, %p449
      %p452 = scmp.ne.s32.totalorder %s437, %s451
      %p453 = scmp.eq.s32.totalorder %s49, 0
      %p454 = por %p452, %p453
      %s456 = sadd.s32 %s455, 1
      %p459 = scmp.eq.s32.totalorder %s43, 1
      %p460 = scmp.ne.s32.totalorder %s455, %s457
      %p461 = scmp.eq.s32.totalorder %s43, 0
      %p462 = por %p460, %p461
      %p463 = scmp.ne.s32.totalorder %s455, %s457
      %p464 = scmp.eq.s32.totalorder %s48, 1
      %p465 = por %p463, %p464
      %p466 = scmp.ne.s32.totalorder %s457, %s458
      %p467 = scmp.eq.s32.totalorder %s48, 0
      %p468 = por %p466, %p467
      %p469 = scmp.ne.s32.totalorder %s457, %s458
      %p470 = scmp.eq.s32.totalorder %s49, 1
      %p471 = por %p469, %p470
      %p473 = scmp.ne.s32.totalorder %s458, %s472
      %p474 = scmp.eq.s32.totalorder %s49, 0
      %p475 = por %p473, %p474
      %s477 = sadd.s32 %s476, 1
      %p480 = scmp.eq.s32.totalorder %s43, 1
      %p481 = scmp.ne.s32.totalorder %s476, %s478
      %p482 = scmp.eq.s32.totalorder %s43, 0
      %p483 = por %p481, %p482
      %p484 = scmp.ne.s32.totalorder %s476, %s478
      %p485 = scmp.eq.s32.totalorder %s48, 1
      %p486 = por %p484, %p485
      %p487 = scmp.ne.s32.totalorder %s478, %s479
      %p488 = scmp.eq.s32.totalorder %s48, 0
      %p489 = por %p487, %p488
      %p490 = scmp.ne.s32.totalorder %s478, %s479
      %p491 = scmp.eq.s32.totalorder %s49, 1
      %p492 = por %p490, %p491
      %p494 = scmp.ne.s32.totalorder %s479, %s493
      %p495 = scmp.eq.s32.totalorder %s49, 0
      %p496 = por %p494, %p495
      %s498 = sadd.s32 %s497, 1
      %p501 = scmp.eq.s32.totalorder %s43, 1
      %p502 = scmp.ne.s32.totalorder %s497, %s499
      %p503 = scmp.eq.s32.totalorder %s43, 0
      %p504 = por %p502, %p503
      %p505 = scmp.ne.s32.totalorder %s497, %s499
      %p506 = scmp.eq.s32.totalorder %s48, 1
      %p507 = por %p505, %p506
      %p508 = scmp.ne.s32.totalorder %s499, %s500
      %p509 = scmp.eq.s32.totalorder %s48, 0
      %p510 = por %p508, %p509
      %p511 = scmp.ne.s32.totalorder %s499, %s500
      %p512 = scmp.eq.s32.totalorder %s49, 1
      %p513 = por %p511, %p512
      %p515 = scmp.ne.s32.totalorder %s500, %s514
      %p516 = scmp.eq.s32.totalorder %s49, 0
      %p517 = por %p515, %p516
      %s519 = sadd.s32 %s518, 1
      %p522 = scmp.eq.s32.totalorder %s43, 1
      %p523 = scmp.ne.s32.totalorder %s518, %s520
      %p524 = scmp.eq.s32.totalorder %s43, 0
      %p525 = por %p523, %p524
      %p526 = scmp.ne.s32.totalorder %s518, %s520
      %p527 = scmp.eq.s32.totalorder %s48, 1
      %p528 = por %p526, %p527
      %p529 = scmp.ne.s32.totalorder %s520, %s521
      %p530 = scmp.eq.s32.totalorder %s48, 0
      %p531 = por %p529, %p530
      %p532 = scmp.ne.s32.totalorder %s520, %s521
      %p533 = scmp.eq.s32.totalorder %s49, 1
      %p534 = por %p532, %p533
      %p536 = scmp.ne.s32.totalorder %s521, %s535
      %p537 = scmp.eq.s32.totalorder %s49, 0
      %p538 = por %p536, %p537
      %s540 = sadd.s32 %s539, 1
      %p543 = scmp.eq.s32.totalorder %s43, 1
      %p544 = scmp.ne.s32.totalorder %s539, %s541
      %p545 = scmp.eq.s32.totalorder %s43, 0
      %p546 = por %p544, %p545
      %p547 = scmp.ne.s32.totalorder %s539, %s541
      %p548 = scmp.eq.s32.totalorder %s48, 1
      %p549 = por %p547, %p548
      %p550 = scmp.ne.s32.totalorder %s541, %s542
      %p551 = scmp.eq.s32.totalorder %s48, 0
      %p552 = por %p550, %p551
      %p553 = scmp.ne.s32.totalorder %s541, %s542
      %p554 = scmp.eq.s32.totalorder %s49, 1
      %p555 = por %p553, %p554
      %p557 = scmp.ne.s32.totalorder %s542, %s556
      %p558 = scmp.eq.s32.totalorder %s49, 0
      %p559 = por %p557, %p558
      %s561 = sadd.s32 %s560, 1
      %p564 = scmp.eq.s32.totalorder %s43, 1
      %p565 = scmp.ne.s32.totalorder %s560, %s562
      %p566 = scmp.eq.s32.totalorder %s43, 0
      %p567 = por %p565, %p566
      %p568 = scmp.ne.s32.totalorder %s560, %s562
      %p569 = scmp.eq.s32.totalorder %s48, 1
      %p570 = por %p568, %p569
      %p571 = scmp.ne.s32.totalorder %s562, %s563
      %p572 = scmp.eq.s32.totalorder %s48, 0
      %p573 = por %p571, %p572
      %p574 = scmp.ne.s32.totalorder %s562, %s563
      %p575 = scmp.eq.s32.totalorder %s49, 1
      %p576 = por %p574, %p575
      %p578 = scmp.ne.s32.totalorder %s563, %s577
      %p579 = scmp.eq.s32.totalorder %s49, 0
      %p580 = por %p578, %p579
      %s581 = ssub.s32 %s43, %s50
      %p582 = scmp.eq.s32.totalorder %s581, 0
      %s584 = sadd.s32 %s583, 1
      %s585 = scalar_select %p582, %s583, %s584
      %p588 = pneg %p582
      %p589 = scmp.eq.s32.totalorder %s43, 1
      %p590 = por %p588, %p589
      %p591 = scmp.ne.s32.totalorder %s583, %s586
      %p592 = scmp.eq.s32.totalorder %s43, 0
      %p593 = por %p591, %p592
      %p594 = scmp.ne.s32.totalorder %s583, %s586
      %p595 = scmp.eq.s32.totalorder %s48, 1
      %p596 = por %p594, %p595
      %p597 = scmp.ne.s32.totalorder %s586, %s587
      %p598 = scmp.eq.s32.totalorder %s48, 0
      %p599 = por %p597, %p598
      %p600 = scmp.ne.s32.totalorder %s586, %s587
      %p601 = scmp.eq.s32.totalorder %s49, 1
      %p602 = por %p600, %p601
      %p604 = scmp.ne.s32.totalorder %s587, %s603
      %p605 = scmp.eq.s32.totalorder %s49, 0
      %p606 = por %p604, %p605
      %p607 = scmp.le.s32.totalorder 1, %s43
      %p608 = scmp.lt.s32.totalorder %s43, 3
      %p609 = pnand %p607, %p608
      %p610 = pneg %p609
      // Predicated region
      $region9: #{tpu_custom_call.1} parent=5 // pred_check
        _
      $region10: #{tpu_custom_call.1} parent=5 // pred_check_branch
        %612 = sbr.rel (%p609) target = $region12
      $region11: #{tpu_custom_call.1} parent=5 // pred_region
        %s613 = ssub.s32 %s43, 1
        // Predicated region
        $region13: #{tpu_custom_call.1} parent=11 // pred_check
          %p614 = pneg %p90
        $region14: #{tpu_custom_call.1} parent=11 // pred_check_branch
          %616 = sbr.rel (%p614) target = $region16
        $region15: #{tpu_custom_call.1} parent=11 // pred_region
          _
        $region16: #{tpu_custom_call.1} parent=11 // pred_fallthru
          _
        // Predicated region
        $region17: #{tpu_custom_call.1} parent=11 // pred_check
          %p617 = pneg %p111
        $region18: #{tpu_custom_call.1} parent=11 // pred_check_branch
          %619 = sbr.rel (%p617) target = $region20
        $region19: #{tpu_custom_call.1} parent=11 // pred_region
          %s621 = ssub.s32 32, 32
          %622 = vsyncadd [#allocation6], %s621
          %s624 = sshll.u32 [#allocation5], 4
          %s625 = int_to_ptr.vmem [resolvable:$true] %s624
          %627 = dma.hbm_to_vmem [thread:$0]  %s2, 32, %s625, [#allocation6]
        $region20: #{tpu_custom_call.1} parent=11 // pred_fallthru
          _
        // Predicated region
        $region21: #{tpu_custom_call.1} parent=11 // pred_check
          %p628 = pneg %p132
        $region22: #{tpu_custom_call.1} parent=11 // pred_check_branch
          %630 = sbr.rel (%p628) target = $region24
        $region23: #{tpu_custom_call.1} parent=11 // pred_region
          %s632 = ssub.s32 4096, 4096
          %633 = vsyncadd [#allocation6], %s632
          %s634 = sshll.u32 [#allocation7], 4
          %s635 = int_to_ptr.vmem [resolvable:$true] %s634
          %640 = dma.hbm_to_vmem [thread:$0]  %s3, 4096, %s635, [#allocation6], 128, 128, 8
        $region24: #{tpu_custom_call.1} parent=11 // pred_fallthru
          _
        // Predicated region
        $region25: #{tpu_custom_call.1} parent=11 // pred_check
          %p641 = pneg %p153
        $region26: #{tpu_custom_call.1} parent=11 // pred_check_branch
          %643 = sbr.rel (%p641) target = $region28
        $region27: #{tpu_custom_call.1} parent=11 // pred_region
          _
        $region28: #{tpu_custom_call.1} parent=11 // pred_fallthru
          _
        // Predicated region
        $region29: #{tpu_custom_call.1} parent=11 // pred_check
          %p644 = pneg %p174
        $region30: #{tpu_custom_call.1} parent=11 // pred_check_branch
          %646 = sbr.rel (%p644) target = $region32
        $region31: #{tpu_custom_call.1} parent=11 // pred_region
          %s648 = ssub.s32 4096, 4096
          %649 = vsyncadd [#allocation9], %s648
          %s650 = sshll.u32 [#allocation8], 4
          %s651 = int_to_ptr.vmem [resolvable:$true] %s650
          %656 = dma.hbm_to_vmem [thread:$0]  %s5, 4096, %s651, [#allocation9], 128, 128, 8
        $region32: #{tpu_custom_call.1} parent=11 // pred_fallthru
          _
        // Predicated region
        $region33: #{tpu_custom_call.1} parent=11 // pred_check
          %p657 = pneg %p195
        $region34: #{tpu_custom_call.1} parent=11 // pred_check_branch
          %659 = sbr.rel (%p657) target = $region36
        $region35: #{tpu_custom_call.1} parent=11 // pred_region
          _
        $region36: #{tpu_custom_call.1} parent=11 // pred_fallthru
          _
        // Predicated region
        $region37: #{tpu_custom_call.1} parent=11 // pred_check
          %p660 = pneg %p216
        $region38: #{tpu_custom_call.1} parent=11 // pred_check_branch
          %662 = sbr.rel (%p660) target = $region40
        $region39: #{tpu_custom_call.1} parent=11 // pred_region
          %s664 = ssub.s32 4096, 4096
          %665 = vsyncadd [#allocation9], %s664
          %s666 = sshll.u32 [#allocation10], 4
          %s667 = int_to_ptr.vmem [resolvable:$true] %s666
          %672 = dma.hbm_to_vmem [thread:$0]  %s7, 4096, %s667, [#allocation9], 128, 128, 8
        $region40: #{tpu_custom_call.1} parent=11 // pred_fallthru
          _
        // Predicated region
        $region41: #{tpu_custom_call.1} parent=11 // pred_check
          %p673 = pneg %p237
        $region42: #{tpu_custom_call.1} parent=11 // pred_check_branch
          %675 = sbr.rel (%p673) target = $region44
        $region43: #{tpu_custom_call.1} parent=11 // pred_region
          _
        $region44: #{tpu_custom_call.1} parent=11 // pred_fallthru
          _
        // Predicated region
        $region45: #{tpu_custom_call.1} parent=11 // pred_check
          %p676 = pneg %p258
        $region46: #{tpu_custom_call.1} parent=11 // pred_check_branch
          %678 = sbr.rel (%p676) target = $region48
        $region47: #{tpu_custom_call.1} parent=11 // pred_region
          %s680 = ssub.s32 4096, 4096
          %681 = vsyncadd [#allocation12], %s680
          %s682 = sshll.u32 [#allocation11], 4
          %s683 = int_to_ptr.vmem [resolvable:$true] %s682
          %688 = dma.hbm_to_vmem [thread:$0]  %s9, 4096, %s683, [#allocation12], 128, 128, 8
        $region48: #{tpu_custom_call.1} parent=11 // pred_fallthru
          _
        // Predicated region
        $region49: #{tpu_custom_call.1} parent=11 // pred_check
          %p689 = pneg %p279
        $region50: #{tpu_custom_call.1} parent=11 // pred_check_branch
          %691 = sbr.rel (%p689) target = $region52
        $region51: #{tpu_custom_call.1} parent=11 // pred_region
          _
        $region52: #{tpu_custom_call.1} parent=11 // pred_fallthru
          _
        // Predicated region
        $region53: #{tpu_custom_call.1} parent=11 // pred_check
          %p692 = pneg %p300
        $region54: #{tpu_custom_call.1} parent=11 // pred_check_branch
          %694 = sbr.rel (%p692) target = $region56
        $region55: #{tpu_custom_call.1} parent=11 // pred_region
          _
        $region56: #{tpu_custom_call.1} parent=11 // pred_fallthru
          _
        // Predicated region
        $region57: #{tpu_custom_call.1} parent=11 // pred_check
          %p695 = pneg %p321
        $region58: #{tpu_custom_call.1} parent=11 // pred_check_branch
          %697 = sbr.rel (%p695) target = $region60
        $region59: #{tpu_custom_call.1} parent=11 // pred_region
          _
        $region60: #{tpu_custom_call.1} parent=11 // pred_fallthru
          _
        // Predicated region
        $region61: #{tpu_custom_call.1} parent=11 // pred_check
          %p698 = pneg %p342
        $region62: #{tpu_custom_call.1} parent=11 // pred_check_branch
          %700 = sbr.rel (%p698) target = $region64
        $region63: #{tpu_custom_call.1} parent=11 // pred_region
          %s702 = ssub.s32 4096, 4096
          %703 = vsyncadd [#allocation12], %s702
          %s704 = sshll.u32 [#allocation13], 4
          %s705 = int_to_ptr.vmem [resolvable:$true] %s704
          %710 = dma.hbm_to_vmem [thread:$0]  %s13, 4096, %s705, [#allocation12], 128, 128, 8
        $region64: #{tpu_custom_call.1} parent=11 // pred_fallthru
          _
        // Predicated region
        $region65: #{tpu_custom_call.1} parent=11 // pred_check
          %p711 = pneg %p363
        $region66: #{tpu_custom_call.1} parent=11 // pred_check_branch
          %713 = sbr.rel (%p711) target = $region68
        $region67: #{tpu_custom_call.1} parent=11 // pred_region
          _
        $region68: #{tpu_custom_call.1} parent=11 // pred_fallthru
          _
        // Predicated region
        $region69: #{tpu_custom_call.1} parent=11 // pred_check
          %p714 = pneg %p384
        $region70: #{tpu_custom_call.1} parent=11 // pred_check_branch
          %716 = sbr.rel (%p714) target = $region72
        $region71: #{tpu_custom_call.1} parent=11 // pred_region
          %s718 = ssub.s32 4096, 4096
          %719 = vsyncadd [#allocation15], %s718
          %s720 = sshll.u32 [#allocation14], 4
          %s721 = int_to_ptr.vmem [resolvable:$true] %s720
          %726 = dma.hbm_to_vmem [thread:$0]  %s15, 4096, %s721, [#allocation15], 128, 128, 8
        $region72: #{tpu_custom_call.1} parent=11 // pred_fallthru
          _
        // Predicated region
        $region73: #{tpu_custom_call.1} parent=11 // pred_check
          %p727 = pneg %p405
        $region74: #{tpu_custom_call.1} parent=11 // pred_check_branch
          %729 = sbr.rel (%p727) target = $region76
        $region75: #{tpu_custom_call.1} parent=11 // pred_region
          _
        $region76: #{tpu_custom_call.1} parent=11 // pred_fallthru
          _
        // Predicated region
        $region77: #{tpu_custom_call.1} parent=11 // pred_check
          %p730 = pneg %p426
        $region78: #{tpu_custom_call.1} parent=11 // pred_check_branch
          %732 = sbr.rel (%p730) target = $region80
        $region79: #{tpu_custom_call.1} parent=11 // pred_region
          %s734 = ssub.s32 4096, 4096
          %735 = vsyncadd [#allocation15], %s734
          %s736 = sshll.u32 [#allocation16], 4
          %s737 = int_to_ptr.vmem [resolvable:$true] %s736
          %742 = dma.hbm_to_vmem [thread:$0]  %s17, 4096, %s737, [#allocation15], 128, 128, 8
        $region80: #{tpu_custom_call.1} parent=11 // pred_fallthru
          _
        // Predicated region
        $region81: #{tpu_custom_call.1} parent=11 // pred_check
          %p743 = pneg %p447
        $region82: #{tpu_custom_call.1} parent=11 // pred_check_branch
          %745 = sbr.rel (%p743) target = $region84
        $region83: #{tpu_custom_call.1} parent=11 // pred_region
          _
        $region84: #{tpu_custom_call.1} parent=11 // pred_fallthru
          _
        // Predicated region
        $region85: #{tpu_custom_call.1} parent=11 // pred_check
          %p746 = pneg %p468
        $region86: #{tpu_custom_call.1} parent=11 // pred_check_branch
          %748 = sbr.rel (%p746) target = $region88
        $region87: #{tpu_custom_call.1} parent=11 // pred_region
          %s750 = ssub.s32 4096, 4096
          %751 = vsyncadd [#allocation18], %s750
          %s752 = sshll.u32 [#allocation17], 4
          %s753 = int_to_ptr.vmem [resolvable:$true] %s752
          %758 = dma.hbm_to_vmem [thread:$0]  %s19, 4096, %s753, [#allocation18], 128, 128, 8
        $region88: #{tpu_custom_call.1} parent=11 // pred_fallthru
          _
        // Predicated region
        $region89: #{tpu_custom_call.1} parent=11 // pred_check
          %p759 = pneg %p489
        $region90: #{tpu_custom_call.1} parent=11 // pred_check_branch
          %761 = sbr.rel (%p759) target = $region92
        $region91: #{tpu_custom_call.1} parent=11 // pred_region
          _
        $region92: #{tpu_custom_call.1} parent=11 // pred_fallthru
          _
        // Predicated region
        $region93: #{tpu_custom_call.1} parent=11 // pred_check
          %p762 = pneg %p510
        $region94: #{tpu_custom_call.1} parent=11 // pred_check_branch
          %764 = sbr.rel (%p762) target = $region96
        $region95: #{tpu_custom_call.1} parent=11 // pred_region
          %s766 = ssub.s32 8192, 8192
          %767 = vsyncadd [#allocation18], %s766
          %s768 = sshll.u32 [#allocation19], 4
          %s769 = int_to_ptr.vmem [resolvable:$true] %s768
          %774 = dma.hbm_to_vmem [thread:$0]  %s21, 8192, %s769, [#allocation18], 256, 256, 16
        $region96: #{tpu_custom_call.1} parent=11 // pred_fallthru
          _
        // Predicated region
        $region97: #{tpu_custom_call.1} parent=11 // pred_check
          %p775 = pneg %p531
        $region98: #{tpu_custom_call.1} parent=11 // pred_check_branch
          %777 = sbr.rel (%p775) target = $region100
        $region99: #{tpu_custom_call.1} parent=11 // pred_region
          _
        $region100: #{tpu_custom_call.1} parent=11 // pred_fallthru
          _
        // Predicated region
        $region101: #{tpu_custom_call.1} parent=11 // pred_check
          %p778 = pneg %p552
        $region102: #{tpu_custom_call.1} parent=11 // pred_check_branch
          %780 = sbr.rel (%p778) target = $region104
        $region103: #{tpu_custom_call.1} parent=11 // pred_region
          %s782 = ssub.s32 8192, 8192
          %783 = vsyncadd [#allocation21], %s782
          %s784 = sshll.u32 [#allocation20], 4
          %s785 = int_to_ptr.vmem [resolvable:$true] %s784
          %790 = dma.hbm_to_vmem [thread:$0]  %s23, 8192, %s785, [#allocation21], 128, 128, 8
        $region104: #{tpu_custom_call.1} parent=11 // pred_fallthru
          _
        // Predicated region
        $region105: #{tpu_custom_call.1} parent=11 // pred_check
          %p791 = pneg %p573
        $region106: #{tpu_custom_call.1} parent=11 // pred_check_branch
          %793 = sbr.rel (%p791) target = $region108
        $region107: #{tpu_custom_call.1} parent=11 // pred_region
          _
        $region108: #{tpu_custom_call.1} parent=11 // pred_fallthru
          _
      $region12: #{tpu_custom_call.1} parent=5 // pred_fallthru
        _
      %p794 = scmp.lt.s32.totalorder %s43, 2
      // Predicated region
      $region109: #{tpu_custom_call.1} parent=5 // pred_check
        %p795 = pneg %p794
      $region110: #{tpu_custom_call.1} parent=5 // pred_check_branch
        %797 = sbr.rel (%p795) target = $region112
      $region111: #{tpu_custom_call.1} parent=5 // pred_region
        // Predicated region
        $region113: #{tpu_custom_call.1} parent=111 // pred_check
          %p798 = pneg %p63
        $region114: #{tpu_custom_call.1} parent=111 // pred_check_branch
          %800 = sbr.rel (%p798) target = $region116
        $region115: #{tpu_custom_call.1} parent=111 // pred_region
          %s801 = sand.u32 %s53, 1
          %s802 = scalar_lea.sflag [#allocation3], %s801
          %s803 = sand.u32 %s53, 1
          %s804 = smul.addr %s803, 16
          %s805 = scalar_lea.vmem [#allocation2], %s804
          %s807 = ssub.s32 256, 256
          %808 = vsyncadd %s802, %s807
          %s809 = smul.addr %s43, 4
          %s810 = smul.addr %s809, 64
          %s811 = scalar_lea.hbm %s0, %s810
          %s812 = sshll.u32 %s805, 4
          %s813 = int_to_ptr.vmem [resolvable:$true] %s812
          %818 = dma.hbm_to_vmem [thread:$0]  %s811, 256, %s813, %s802, 128, 128, 8
        $region116: #{tpu_custom_call.1} parent=111 // pred_fallthru
          _
      $region112: #{tpu_custom_call.1} parent=5 // pred_fallthru
        _
      %p819 = scmp.le.s32.totalorder 1, %s43
      %p820 = scmp.lt.s32.totalorder %s43, 3
      %p821 = pnand %p819, %p820
      %p822 = pneg %p821
      // Predicated region
      $region117: #{tpu_custom_call.1} parent=5 // pred_check
        _
      $region118: #{tpu_custom_call.1} parent=5 // pred_check_branch
        %824 = sbr.rel (%p821) target = $region120
      $region119: #{tpu_custom_call.1} parent=5 // pred_region
        %s825 = ssub.s32 %s43, 1
        %s826 = sand.u32 %s56, 1
        %s827 = scalar_lea.sflag [#allocation3], %s826
        %s828 = sand.u32 %s56, 1
        %s829 = smul.addr %s828, 16
        %s830 = scalar_lea.vmem [#allocation2], %s829
        // Predicated region
        $region121: #{tpu_custom_call.1} parent=119 // pred_check
          %p831 = pneg %p69
        $region122: #{tpu_custom_call.1} parent=119 // pred_check_branch
          %833 = sbr.rel (%p831) target = $region124
        $region123: #{tpu_custom_call.1} parent=119 // pred_region
          %834 = dma.done %s827, 256
        $region124: #{tpu_custom_call.1} parent=119 // pred_fallthru
          _
        // Predicated region
        $region125: #{tpu_custom_call.1} parent=119 // pred_check
          %p835 = pneg %p111
        $region126: #{tpu_custom_call.1} parent=119 // pred_check_branch
          %837 = sbr.rel (%p835) target = $region128
        $region127: #{tpu_custom_call.1} parent=119 // pred_region
          %838 = dma.done [#allocation6], 32
        $region128: #{tpu_custom_call.1} parent=119 // pred_fallthru
          _
        // Predicated region
        $region129: #{tpu_custom_call.1} parent=119 // pred_check
          %p839 = pneg %p132
        $region130: #{tpu_custom_call.1} parent=119 // pred_check_branch
          %841 = sbr.rel (%p839) target = $region132
        $region131: #{tpu_custom_call.1} parent=119 // pred_region
          %842 = dma.done [#allocation6], 4096
        $region132: #{tpu_custom_call.1} parent=119 // pred_fallthru
          _
        // Predicated region
        $region133: #{tpu_custom_call.1} parent=119 // pred_check
          %p843 = pneg %p174
        $region134: #{tpu_custom_call.1} parent=119 // pred_check_branch
          %845 = sbr.rel (%p843) target = $region136
        $region135: #{tpu_custom_call.1} parent=119 // pred_region
          %846 = dma.done [#allocation9], 4096
        $region136: #{tpu_custom_call.1} parent=119 // pred_fallthru
          _
        // Predicated region
        $region137: #{tpu_custom_call.1} parent=119 // pred_check
          %p847 = pneg %p216
        $region138: #{tpu_custom_call.1} parent=119 // pred_check_branch
          %849 = sbr.rel (%p847) target = $region140
        $region139: #{tpu_custom_call.1} parent=119 // pred_region
          %850 = dma.done [#allocation9], 4096
        $region140: #{tpu_custom_call.1} parent=119 // pred_fallthru
          _
        // Predicated region
        $region141: #{tpu_custom_call.1} parent=119 // pred_check
          %p851 = pneg %p258
        $region142: #{tpu_custom_call.1} parent=119 // pred_check_branch
          %853 = sbr.rel (%p851) target = $region144
        $region143: #{tpu_custom_call.1} parent=119 // pred_region
          %854 = dma.done [#allocation12], 4096
        $region144: #{tpu_custom_call.1} parent=119 // pred_fallthru
          _
        // Predicated region
        $region145: #{tpu_custom_call.1} parent=119 // pred_check
          %p855 = pneg %p342
        $region146: #{tpu_custom_call.1} parent=119 // pred_check_branch
          %857 = sbr.rel (%p855) target = $region148
        $region147: #{tpu_custom_call.1} parent=119 // pred_region
          %858 = dma.done [#allocation12], 4096
        $region148: #{tpu_custom_call.1} parent=119 // pred_fallthru
          _
        // Predicated region
        $region149: #{tpu_custom_call.1} parent=119 // pred_check
          %p859 = pneg %p384
        $region150: #{tpu_custom_call.1} parent=119 // pred_check_branch
          %861 = sbr.rel (%p859) target = $region152
        $region151: #{tpu_custom_call.1} parent=119 // pred_region
          %862 = dma.done [#allocation15], 4096
        $region152: #{tpu_custom_call.1} parent=119 // pred_fallthru
          _
        // Predicated region
        $region153: #{tpu_custom_call.1} parent=119 // pred_check
          %p863 = pneg %p426
        $region154: #{tpu_custom_call.1} parent=119 // pred_check_branch
          %865 = sbr.rel (%p863) target = $region156
        $region155: #{tpu_custom_call.1} parent=119 // pred_region
          %866 = dma.done [#allocation15], 4096
        $region156: #{tpu_custom_call.1} parent=119 // pred_fallthru
          _
        // Predicated region
        $region157: #{tpu_custom_call.1} parent=119 // pred_check
          %p867 = pneg %p468
        $region158: #{tpu_custom_call.1} parent=119 // pred_check_branch
          %869 = sbr.rel (%p867) target = $region160
        $region159: #{tpu_custom_call.1} parent=119 // pred_region
          %870 = dma.done [#allocation18], 4096
        $region160: #{tpu_custom_call.1} parent=119 // pred_fallthru
          _
        // Predicated region
        $region161: #{tpu_custom_call.1} parent=119 // pred_check
          %p871 = pneg %p510
        $region162: #{tpu_custom_call.1} parent=119 // pred_check_branch
          %873 = sbr.rel (%p871) target = $region164
        $region163: #{tpu_custom_call.1} parent=119 // pred_region
          %874 = dma.done [#allocation18], 8192
        $region164: #{tpu_custom_call.1} parent=119 // pred_fallthru
          _
        // Predicated region
        $region165: #{tpu_custom_call.1} parent=119 // pred_check
          %p875 = pneg %p552
        $region166: #{tpu_custom_call.1} parent=119 // pred_check_branch
          %877 = sbr.rel (%p875) target = $region168
        $region167: #{tpu_custom_call.1} parent=119 // pred_region
          %878 = dma.done [#allocation21], 8192
        $region168: #{tpu_custom_call.1} parent=119 // pred_fallthru
          _
        %s879 = sand.u32 %s56, 1
        %s880 = scalar_lea.sflag [#allocation3], %s879
        %s881 = sand.u32 %s56, 1
        %s882 = smul.addr %s881, 16
        %s883 = scalar_lea.vmem [#allocation2], %s882
        %p884 = pneg %p69
        %p885 = pneg %p66
        %p886 = pneg %p90
        %p887 = pneg %p87
        %p888 = pneg %p111
        %p889 = pneg %p108
        %p890 = pneg %p132
        %p891 = pneg %p129
        %p892 = pneg %p153
        %p893 = pneg %p150
        %p894 = pneg %p174
        %p895 = pneg %p171
        %p896 = pneg %p195
        %p897 = pneg %p192
        %p898 = pneg %p216
        %p899 = pneg %p213
        %p900 = pneg %p237
        %p901 = pneg %p234
        %p902 = pneg %p258
        %p903 = pneg %p255
        %p904 = pneg %p279
        %p905 = pneg %p276
        %p906 = pneg %p300
        %p907 = pneg %p297
        %p908 = pneg %p321
        %p909 = pneg %p318
        %p910 = pneg %p342
        %p911 = pneg %p339
        %p912 = pneg %p363
        %p913 = pneg %p360
        %p914 = pneg %p384
        %p915 = pneg %p381
        %p916 = pneg %p405
        %p917 = pneg %p402
        %p918 = pneg %p426
        %p919 = pneg %p423
        %p920 = pneg %p447
        %p921 = pneg %p444
        %p922 = pneg %p468
        %p923 = pneg %p465
        %p924 = pneg %p489
        %p925 = pneg %p486
        %p926 = pneg %p510
        %p927 = pneg %p507
        %p928 = pneg %p531
        %p929 = pneg %p528
        %p930 = pneg %p552
        %p931 = pneg %p549
        %p932 = pneg %p573
        %p933 = pneg %p570
        %p934 = pneg %p599
        %p935 = pneg %p596
        %s936 = sand.u32 %s586, 1
        %s937 = scalar_lea.sflag [#allocation4], %s936
        %s938 = sand.u32 %s586, 1
        %s939 = smul.addr %s938, 16
        %s940 = scalar_lea.vmem [#allocation22], %s939
        %v942 = vld [vmem:[%s830] sm:$0xff]
        %v943 = vld [vmem:[%s830 + $0x8] sm:$0xff]
        %v944 = vunpack.c.l.bf16 %v942
        %v945 = vunpack.c.h.bf16 %v942
        %v946 = vunpack.c.l.bf16 %v943
        %v947 = vunpack.c.h.bf16 %v943
        %v948 = vld [vmem:[%s1] sm:$0x3]
        %v949 = vld [vmem:[#allocation5] sm:$0x3]
        %v950 = vadd.f32 %v944, %v945
        %951 = vadd.xlane.f32.xlu0 %v950
        %v952 = vpop.xlane.xlu0 %951
        %v953 = vadd.f32 %v946, %v947
        %954 = vadd.xlane.f32.xlu0 %v953
        %v955 = vpop.xlane.xlu0 %954
        %v956 = vrcp.pop 256.0
        %v957 = vmul.f32 %v952, %v956
        %v958 = vmul.f32 %v955, %v956
        %v959 = vsub.f32 %v944, %v957
        %v960 = vsub.f32 %v945, %v957
        %v961 = vsub.f32 %v946, %v958
        %v962 = vsub.f32 %v947, %v958
        %v963 = vmul.f32 %v959, %v959
        %v964 = vmul.f32 %v960, %v960
        %v965 = vmul.f32 %v961, %v961
        %v966 = vmul.f32 %v962, %v962
        %v967 = vadd.f32 %v963, %v964
        %968 = vadd.xlane.f32.xlu0 %v967
        %v969 = vpop.xlane.xlu0 %968
        %v970 = vadd.f32 %v965, %v966
        %971 = vadd.xlane.f32.xlu0 %v970
        %v972 = vpop.xlane.xlu0 %971
        %v973 = vmul.f32 %v969, %v956
        %v974 = vmul.f32 %v972, %v956
        %v975 = vadd.f32 %v973, 1e-05
        %v976 = vadd.f32 %v974, 1e-05
        %v977 = vrsqrt.pop %v975
        %v978 = vrsqrt.pop %v976
        %v979 = vmul.f32 %v959, %v977
        %v980 = vmul.f32 %v960, %v977
        %v981 = vmul.f32 %v961, %v978
        %v982 = vmul.f32 %v962, %v978
        %v983 = vunpack.c.l.bf16 %v948
        %v985 = vlaneseq
        %v986 = vshrl.u32 %v985, 7
        %v987 = vsub.s32 0, %v986
        %v988 = vrot.slane %v983, %v987
        %v989 = vlaneseq
        %v990 = vshrl.u32 %v989, 7
        %v991 = vsub.s32 2, %v990
        %v992 = vrot.slane %v983, %v991
        %v995 = vlaneseq
        %v996 = vshrl.u32 %v995, 7
        %v997 = vsub.s32 0, %v996
        %v998 = vrot.slane %v988, %v997
        %v999 = vlaneseq
        %v1000 = vshrl.u32 %v999, 7
        %v1001 = vsub.s32 0, %v1000
        %v1002 = vrot.slane %v992, %v1001
        %v1003 = vmul.f32 %v979, %v998
        %v1004 = vmul.f32 %v980, %v1002
        %v1005 = vmul.f32 %v981, %v998
        %v1006 = vmul.f32 %v982, %v1002
        %v1007 = vunpack.c.l.bf16 %v949
        %v1009 = vlaneseq
        %v1010 = vshrl.u32 %v1009, 7
        %v1011 = vsub.s32 0, %v1010
        %v1012 = vrot.slane %v1007, %v1011
        %v1013 = vlaneseq
        %v1014 = vshrl.u32 %v1013, 7
        %v1015 = vsub.s32 2, %v1014
        %v1016 = vrot.slane %v1007, %v1015
        %v1019 = vlaneseq
        %v1020 = vshrl.u32 %v1019, 7
        %v1021 = vsub.s32 0, %v1020
        %v1022 = vrot.slane %v1012, %v1021
        %v1023 = vlaneseq
        %v1024 = vshrl.u32 %v1023, 7
        %v1025 = vsub.s32 0, %v1024
        %v1026 = vrot.slane %v1016, %v1025
        %v1027 = vadd.f32 %v1003, %v1022
        %v1028 = vadd.f32 %v1004, %v1026
        %v1029 = vadd.f32 %v1005, %v1022
        %v1030 = vadd.f32 %v1006, %v1026
        %v1031 = vpack.c.bf16 %v1029, %v1027
        %v1032 = vpack.c.bf16 %v1030, %v1028
        %v1033 = vld [vmem:[#allocation7] sm:$0xff]
        %v1034 = vld [vmem:[#allocation7 + $0x8] sm:$0xff]
        %v1035 = vld [vmem:[#allocation7 + $0x10] sm:$0xff]
        %v1036 = vld [vmem:[#allocation7 + $0x18] sm:$0xff]
        %v1037 = vld [vmem:[#allocation7 + $0x20] sm:$0xff]
        %v1038 = vld [vmem:[#allocation7 + $0x28] sm:$0xff]
        %v1039 = vld [vmem:[#allocation7 + $0x30] sm:$0xff]
        %v1040 = vld [vmem:[#allocation7 + $0x38] sm:$0xff]
        %v1041 = vld [vmem:[#allocation7 + $0x40] sm:$0xff]
        %v1042 = vld [vmem:[#allocation7 + $0x48] sm:$0xff]
        %v1043 = vld [vmem:[#allocation7 + $0x50] sm:$0xff]
        %v1044 = vld [vmem:[#allocation7 + $0x58] sm:$0xff]
        %v1045 = vld [vmem:[#allocation7 + $0x60] sm:$0xff]
        %v1046 = vld [vmem:[#allocation7 + $0x68] sm:$0xff]
        %v1047 = vld [vmem:[#allocation7 + $0x70] sm:$0xff]
        %v1048 = vld [vmem:[#allocation7 + $0x78] sm:$0xff]
        %v1049 = vld [vmem:[#allocation7 + $0x80] sm:$0xff]
        %v1050 = vld [vmem:[#allocation7 + $0x88] sm:$0xff]
        %v1051 = vld [vmem:[#allocation7 + $0x90] sm:$0xff]
        %v1052 = vld [vmem:[#allocation7 + $0x98] sm:$0xff]
        %v1053 = vld [vmem:[#allocation7 + $0xa0] sm:$0xff]
        %v1054 = vld [vmem:[#allocation7 + $0xa8] sm:$0xff]
        %v1055 = vld [vmem:[#allocation7 + $0xb0] sm:$0xff]
        %v1056 = vld [vmem:[#allocation7 + $0xb8] sm:$0xff]
        %v1057 = vld [vmem:[#allocation7 + $0xc0] sm:$0xff]
        %v1058 = vld [vmem:[#allocation7 + $0xc8] sm:$0xff]
        %v1059 = vld [vmem:[#allocation7 + $0xd0] sm:$0xff]
        %v1060 = vld [vmem:[#allocation7 + $0xd8] sm:$0xff]
        %v1061 = vld [vmem:[#allocation7 + $0xe0] sm:$0xff]
        %v1062 = vld [vmem:[#allocation7 + $0xe8] sm:$0xff]
        %v1063 = vld [vmem:[#allocation7 + $0xf0] sm:$0xff]
        %v1064 = vld [vmem:[#allocation7 + $0xf8] sm:$0xff]
        %v1065 = vld [vmem:[%s4] sm:$0x3]
        %v1066 = vld [vmem:[#allocation8] sm:$0xff]
        %v1067 = vld [vmem:[#allocation8 + $0x8] sm:$0xff]
        %v1068 = vld [vmem:[#allocation8 + $0x10] sm:$0xff]
        %v1069 = vld [vmem:[#allocation8 + $0x18] sm:$0xff]
        %v1070 = vld [vmem:[#allocation8 + $0x20] sm:$0xff]
        %v1071 = vld [vmem:[#allocation8 + $0x28] sm:$0xff]
        %v1072 = vld [vmem:[#allocation8 + $0x30] sm:$0xff]
        %v1073 = vld [vmem:[#allocation8 + $0x38] sm:$0xff]
        %v1074 = vld [vmem:[#allocation8 + $0x40] sm:$0xff]
        %v1075 = vld [vmem:[#allocation8 + $0x48] sm:$0xff]
        %v1076 = vld [vmem:[#allocation8 + $0x50] sm:$0xff]
        %v1077 = vld [vmem:[#allocation8 + $0x58] sm:$0xff]
        %v1078 = vld [vmem:[#allocation8 + $0x60] sm:$0xff]
        %v1079 = vld [vmem:[#allocation8 + $0x68] sm:$0xff]
        %v1080 = vld [vmem:[#allocation8 + $0x70] sm:$0xff]
        %v1081 = vld [vmem:[#allocation8 + $0x78] sm:$0xff]
        %v1082 = vld [vmem:[#allocation8 + $0x80] sm:$0xff]
        %v1083 = vld [vmem:[#allocation8 + $0x88] sm:$0xff]
        %v1084 = vld [vmem:[#allocation8 + $0x90] sm:$0xff]
        %v1085 = vld [vmem:[#allocation8 + $0x98] sm:$0xff]
        %v1086 = vld [vmem:[#allocation8 + $0xa0] sm:$0xff]
        %v1087 = vld [vmem:[#allocation8 + $0xa8] sm:$0xff]
        %v1088 = vld [vmem:[#allocation8 + $0xb0] sm:$0xff]
        %v1089 = vld [vmem:[#allocation8 + $0xb8] sm:$0xff]
        %v1090 = vld [vmem:[#allocation8 + $0xc0] sm:$0xff]
        %v1091 = vld [vmem:[#allocation8 + $0xc8] sm:$0xff]
        %v1092 = vld [vmem:[#allocation8 + $0xd0] sm:$0xff]
        %v1093 = vld [vmem:[#allocation8 + $0xd8] sm:$0xff]
        %v1094 = vld [vmem:[#allocation8 + $0xe0] sm:$0xff]
        %v1095 = vld [vmem:[#allocation8 + $0xe8] sm:$0xff]
        %v1096 = vld [vmem:[#allocation8 + $0xf0] sm:$0xff]
        %v1097 = vld [vmem:[#allocation8 + $0xf8] sm:$0xff]
        %v1098 = vld [vmem:[%s6] sm:$0x3]
        %v1099 = vld [vmem:[#allocation10] sm:$0xff]
        %v1100 = vld [vmem:[#allocation10 + $0x8] sm:$0xff]
        %v1101 = vld [vmem:[#allocation10 + $0x10] sm:$0xff]
        %v1102 = vld [vmem:[#allocation10 + $0x18] sm:$0xff]
        %v1103 = vld [vmem:[#allocation10 + $0x20] sm:$0xff]
        %v1104 = vld [vmem:[#allocation10 + $0x28] sm:$0xff]
        %v1105 = vld [vmem:[#allocation10 + $0x30] sm:$0xff]
        %v1106 = vld [vmem:[#allocation10 + $0x38] sm:$0xff]
        %v1107 = vld [vmem:[#allocation10 + $0x40] sm:$0xff]
        %v1108 = vld [vmem:[#allocation10 + $0x48] sm:$0xff]
        %v1109 = vld [vmem:[#allocation10 + $0x50] sm:$0xff]
        %v1110 = vld [vmem:[#allocation10 + $0x58] sm:$0xff]
        %v1111 = vld [vmem:[#allocation10 + $0x60] sm:$0xff]
        %v1112 = vld [vmem:[#allocation10 + $0x68] sm:$0xff]
        %v1113 = vld [vmem:[#allocation10 + $0x70] sm:$0xff]
        %v1114 = vld [vmem:[#allocation10 + $0x78] sm:$0xff]
        %v1115 = vld [vmem:[#allocation10 + $0x80] sm:$0xff]
        %v1116 = vld [vmem:[#allocation10 + $0x88] sm:$0xff]
        %v1117 = vld [vmem:[#allocation10 + $0x90] sm:$0xff]
        %v1118 = vld [vmem:[#allocation10 + $0x98] sm:$0xff]
        %v1119 = vld [vmem:[#allocation10 + $0xa0] sm:$0xff]
        %v1120 = vld [vmem:[#allocation10 + $0xa8] sm:$0xff]
        %v1121 = vld [vmem:[#allocation10 + $0xb0] sm:$0xff]
        %v1122 = vld [vmem:[#allocation10 + $0xb8] sm:$0xff]
        %v1123 = vld [vmem:[#allocation10 + $0xc0] sm:$0xff]
        %v1124 = vld [vmem:[#allocation10 + $0xc8] sm:$0xff]
        %v1125 = vld [vmem:[#allocation10 + $0xd0] sm:$0xff]
        %v1126 = vld [vmem:[#allocation10 + $0xd8] sm:$0xff]
        %v1127 = vld [vmem:[#allocation10 + $0xe0] sm:$0xff]
        %v1128 = vld [vmem:[#allocation10 + $0xe8] sm:$0xff]
        %v1129 = vld [vmem:[#allocation10 + $0xf0] sm:$0xff]
        %v1130 = vld [vmem:[#allocation10 + $0xf8] sm:$0xff]
        %v1131 = vld [vmem:[%s8] sm:$0x3]
        %v1132 = vld [vmem:[#allocation11] sm:$0xff]
        %v1133 = vld [vmem:[#allocation11 + $0x8] sm:$0xff]
        %v1134 = vld [vmem:[#allocation11 + $0x10] sm:$0xff]
        %v1135 = vld [vmem:[#allocation11 + $0x18] sm:$0xff]
        %v1136 = vld [vmem:[#allocation11 + $0x20] sm:$0xff]
        %v1137 = vld [vmem:[#allocation11 + $0x28] sm:$0xff]
        %v1138 = vld [vmem:[#allocation11 + $0x30] sm:$0xff]
        %v1139 = vld [vmem:[#allocation11 + $0x38] sm:$0xff]
        %v1140 = vld [vmem:[#allocation11 + $0x40] sm:$0xff]
        %v1141 = vld [vmem:[#allocation11 + $0x48] sm:$0xff]
        %v1142 = vld [vmem:[#allocation11 + $0x50] sm:$0xff]
        %v1143 = vld [vmem:[#allocation11 + $0x58] sm:$0xff]
        %v1144 = vld [vmem:[#allocation11 + $0x60] sm:$0xff]
        %v1145 = vld [vmem:[#allocation11 + $0x68] sm:$0xff]
        %v1146 = vld [vmem:[#allocation11 + $0x70] sm:$0xff]
        %v1147 = vld [vmem:[#allocation11 + $0x78] sm:$0xff]
        %v1148 = vld [vmem:[#allocation11 + $0x80] sm:$0xff]
        %v1149 = vld [vmem:[#allocation11 + $0x88] sm:$0xff]
        %v1150 = vld [vmem:[#allocation11 + $0x90] sm:$0xff]
        %v1151 = vld [vmem:[#allocation11 + $0x98] sm:$0xff]
        %v1152 = vld [vmem:[#allocation11 + $0xa0] sm:$0xff]
        %v1153 = vld [vmem:[#allocation11 + $0xa8] sm:$0xff]
        %v1154 = vld [vmem:[#allocation11 + $0xb0] sm:$0xff]
        %v1155 = vld [vmem:[#allocation11 + $0xb8] sm:$0xff]
        %v1156 = vld [vmem:[#allocation11 + $0xc0] sm:$0xff]
        %v1157 = vld [vmem:[#allocation11 + $0xc8] sm:$0xff]
        %v1158 = vld [vmem:[#allocation11 + $0xd0] sm:$0xff]
        %v1159 = vld [vmem:[#allocation11 + $0xd8] sm:$0xff]
        %v1160 = vld [vmem:[#allocation11 + $0xe0] sm:$0xff]
        %v1161 = vld [vmem:[#allocation11 + $0xe8] sm:$0xff]
        %v1162 = vld [vmem:[#allocation11 + $0xf0] sm:$0xff]
        %v1163 = vld [vmem:[#allocation11 + $0xf8] sm:$0xff]
        %v1164 = vld [vmem:[%s10] sm:$0x3]
        %v1165 = vunpack.c.l.bf16 %v1065
        %v1167 = vlaneseq
        %v1168 = vshrl.u32 %v1167, 7
        %v1169 = vsub.s32 0, %v1168
        %v1170 = vrot.slane %v1165, %v1169
        %v1171 = vlaneseq
        %v1172 = vshrl.u32 %v1171, 7
        %v1173 = vsub.s32 2, %v1172
        %v1174 = vrot.slane %v1165, %v1173
        %v1177 = vlaneseq
        %v1178 = vshrl.u32 %v1177, 7
        %v1179 = vsub.s32 0, %v1178
        %v1180 = vrot.slane %v1170, %v1179
        %v1181 = vlaneseq
        %v1182 = vshrl.u32 %v1181, 7
        %v1183 = vsub.s32 0, %v1182
        %v1184 = vrot.slane %v1174, %v1183
        %v1217 = vunpack.c.l.b16 %v1033
        %v1218 = vunpack.c.h.b16 %v1033
        %v1219 = vunpack.c.l.b16 %v1034
        %v1220 = vunpack.c.h.b16 %v1034
        %v1221 = vunpack.c.l.b16 %v1035
        %v1222 = vunpack.c.h.b16 %v1035
        %v1223 = vunpack.c.l.b16 %v1036
        %v1224 = vunpack.c.h.b16 %v1036
        %v1225 = vunpack.c.l.b16 %v1037
        %v1226 = vunpack.c.h.b16 %v1037
        %v1227 = vunpack.c.l.b16 %v1038
        %v1228 = vunpack.c.h.b16 %v1038
        %v1229 = vunpack.c.l.b16 %v1039
        %v1230 = vunpack.c.h.b16 %v1039
        %v1231 = vunpack.c.l.b16 %v1040
        %v1232 = vunpack.c.h.b16 %v1040
        %v1233 = vunpack.c.l.b16 %v1041
        %v1234 = vunpack.c.h.b16 %v1041
        %v1235 = vunpack.c.l.b16 %v1042
        %v1236 = vunpack.c.h.b16 %v1042
        %v1237 = vunpack.c.l.b16 %v1043
        %v1238 = vunpack.c.h.b16 %v1043
        %v1239 = vunpack.c.l.b16 %v1044
        %v1240 = vunpack.c.h.b16 %v1044
        %v1241 = vunpack.c.l.b16 %v1045
        %v1242 = vunpack.c.h.b16 %v1045
        %v1243 = vunpack.c.l.b16 %v1046
        %v1244 = vunpack.c.h.b16 %v1046
        %v1245 = vunpack.c.l.b16 %v1047
        %v1246 = vunpack.c.h.b16 %v1047
        %v1247 = vunpack.c.l.b16 %v1048
        %v1248 = vunpack.c.h.b16 %v1048
        %v1249 = vunpack.c.l.b16 %v1049
        %v1250 = vunpack.c.h.b16 %v1049
        %v1251 = vunpack.c.l.b16 %v1050
        %v1252 = vunpack.c.h.b16 %v1050
        %v1253 = vunpack.c.l.b16 %v1051
        %v1254 = vunpack.c.h.b16 %v1051
        %v1255 = vunpack.c.l.b16 %v1052
        %v1256 = vunpack.c.h.b16 %v1052
        %v1257 = vunpack.c.l.b16 %v1053
        %v1258 = vunpack.c.h.b16 %v1053
        %v1259 = vunpack.c.l.b16 %v1054
        %v1260 = vunpack.c.h.b16 %v1054
        %v1261 = vunpack.c.l.b16 %v1055
        %v1262 = vunpack.c.h.b16 %v1055
        %v1263 = vunpack.c.l.b16 %v1056
        %v1264 = vunpack.c.h.b16 %v1056
        %v1265 = vunpack.c.l.b16 %v1057
        %v1266 = vunpack.c.h.b16 %v1057
        %v1267 = vunpack.c.l.b16 %v1058
        %v1268 = vunpack.c.h.b16 %v1058
        %v1269 = vunpack.c.l.b16 %v1059
        %v1270 = vunpack.c.h.b16 %v1059
        %v1271 = vunpack.c.l.b16 %v1060
        %v1272 = vunpack.c.h.b16 %v1060
        %v1273 = vunpack.c.l.b16 %v1061
        %v1274 = vunpack.c.h.b16 %v1061
        %v1275 = vunpack.c.l.b16 %v1062
        %v1276 = vunpack.c.h.b16 %v1062
        %v1277 = vunpack.c.l.b16 %v1063
        %v1278 = vunpack.c.h.b16 %v1063
        %v1279 = vunpack.c.l.b16 %v1064
        %v1280 = vunpack.c.h.b16 %v1064
        %v1281 = vpack.c.b16 %v1219, %v1217
        %v1282 = vpack.c.b16 %v1220, %v1218
        %v1283 = vpack.c.b16 %v1223, %v1221
        %v1284 = vpack.c.b16 %v1224, %v1222
        %v1285 = vpack.c.b16 %v1227, %v1225
        %v1286 = vpack.c.b16 %v1228, %v1226
        %v1287 = vpack.c.b16 %v1231, %v1229
        %v1288 = vpack.c.b16 %v1232, %v1230
        %v1289 = vpack.c.b16 %v1235, %v1233
        %v1290 = vpack.c.b16 %v1236, %v1234
        %v1291 = vpack.c.b16 %v1239, %v1237
        %v1292 = vpack.c.b16 %v1240, %v1238
        %v1293 = vpack.c.b16 %v1243, %v1241
        %v1294 = vpack.c.b16 %v1244, %v1242
        %v1295 = vpack.c.b16 %v1247, %v1245
        %v1296 = vpack.c.b16 %v1248, %v1246
        %v1297 = vpack.c.b16 %v1251, %v1249
        %v1298 = vpack.c.b16 %v1252, %v1250
        %v1299 = vpack.c.b16 %v1255, %v1253
        %v1300 = vpack.c.b16 %v1256, %v1254
        %v1301 = vpack.c.b16 %v1259, %v1257
        %v1302 = vpack.c.b16 %v1260, %v1258
        %v1303 = vpack.c.b16 %v1263, %v1261
        %v1304 = vpack.c.b16 %v1264, %v1262
        %v1305 = vpack.c.b16 %v1267, %v1265
        %v1306 = vpack.c.b16 %v1268, %v1266
        %v1307 = vpack.c.b16 %v1271, %v1269
        %v1308 = vpack.c.b16 %v1272, %v1270
        %v1309 = vpack.c.b16 %v1275, %v1273
        %v1310 = vpack.c.b16 %v1276, %v1274
        %v1311 = vpack.c.b16 %v1279, %v1277
        %v1312 = vpack.c.b16 %v1280, %v1278
        %1345 = vmatprep.subr.bf16.mxu0 %v1282
        %1346 = vmatpush1.bf16.msra.mxu0 %v1281
        %1347 = vmatprep.subr.bf16.mxu0 %v1284
        %1348 = vmatpush1.bf16.msra.mxu0 %v1283
        %1349 = vmatprep.subr.bf16.mxu0 %v1286
        %1350 = vmatpush1.bf16.msra.mxu0 %v1285
        %1351 = vmatprep.subr.bf16.mxu0 %v1288
        %1352 = vmatpush1.bf16.msra.mxu0 %v1287
        %1353 = vmatprep.subr.bf16.mxu0 %v1290
        %1354 = vmatpush1.bf16.msra.mxu0 %v1289
        %1355 = vmatprep.subr.bf16.mxu0 %v1292
        %1356 = vmatpush1.bf16.msra.mxu0 %v1291
        %1357 = vmatprep.subr.bf16.mxu0 %v1294
        %1358 = vmatpush1.bf16.msra.mxu0 %v1293
        %1359 = vmatprep.subr.bf16.mxu0 %v1296
        %1360 = vmatpush1.bf16.msra.mxu0 %v1295
        %1361 = vmatprep.subr.bf16.mxu0 %v1298
        %1362 = vmatpush1.bf16.msra.mxu0 %v1297
        %1363 = vmatprep.subr.bf16.mxu0 %v1300
        %1364 = vmatpush1.bf16.msra.mxu0 %v1299
        %1365 = vmatprep.subr.bf16.mxu0 %v1302
        %1366 = vmatpush1.bf16.msra.mxu0 %v1301
        %1367 = vmatprep.subr.bf16.mxu0 %v1304
        %1368 = vmatpush1.bf16.msra.mxu0 %v1303
        %1369 = vmatprep.subr.bf16.mxu0 %v1306
        %1370 = vmatpush1.bf16.msra.mxu0 %v1305
        %1371 = vmatprep.subr.bf16.mxu0 %v1308
        %1372 = vmatpush1.bf16.msra.mxu0 %v1307
        %1373 = vmatprep.subr.bf16.mxu0 %v1310
        %1374 = vmatpush1.bf16.msra.mxu0 %v1309
        %1375 = vmatprep.subr.bf16.mxu0 %v1312
        %1376 = vmatpush1.bf16.msra.mxu0 %v1311
        %1377 = vmatprep.mubr.bf16.mxu0 %v1032
        %1378 = vmatmul.mubr.bf16.gmra.mrb[0].mxu0 %v1031
        %v1379 = vpop.f32.mrb[0].mxu0
        %v1380 = vadd.f32 %v1180, %v1379
        %v1381 = vpop.f32.mrb[0].mxu0
        %v1382 = vadd.f32 %v1184, %v1381
        %v1383 = vpop.f32.mrb[0].mxu0
        %v1384 = vadd.f32 %v1180, %v1383
        %v1385 = vpop.f32.mrb[0].mxu0
        %v1386 = vadd.f32 %v1184, %v1385
        %1387 = vdwg.mxu0
        %v1388 = vunpack.c.l.bf16 %v1098
        %v1390 = vlaneseq
        %v1391 = vshrl.u32 %v1390, 7
        %v1392 = vsub.s32 0, %v1391
        %v1393 = vrot.slane %v1388, %v1392
        %v1394 = vlaneseq
        %v1395 = vshrl.u32 %v1394, 7
        %v1396 = vsub.s32 2, %v1395
        %v1397 = vrot.slane %v1388, %v1396
        %v1400 = vlaneseq
        %v1401 = vshrl.u32 %v1400, 7
        %v1402 = vsub.s32 0, %v1401
        %v1403 = vrot.slane %v1393, %v1402
        %v1404 = vlaneseq
        %v1405 = vshrl.u32 %v1404, 7
        %v1406 = vsub.s32 0, %v1405
        %v1407 = vrot.slane %v1397, %v1406
        %v1440 = vunpack.c.l.b16 %v1066
        %v1441 = vunpack.c.h.b16 %v1066
        %v1442 = vunpack.c.l.b16 %v1067
        %v1443 = vunpack.c.h.b16 %v1067
        %v1444 = vunpack.c.l.b16 %v1068
        %v1445 = vunpack.c.h.b16 %v1068
        %v1446 = vunpack.c.l.b16 %v1069
        %v1447 = vunpack.c.h.b16 %v1069
        %v1448 = vunpack.c.l.b16 %v1070
        %v1449 = vunpack.c.h.b16 %v1070
        %v1450 = vunpack.c.l.b16 %v1071
        %v1451 = vunpack.c.h.b16 %v1071
        %v1452 = vunpack.c.l.b16 %v1072
        %v1453 = vunpack.c.h.b16 %v1072
        %v1454 = vunpack.c.l.b16 %v1073
        %v1455 = vunpack.c.h.b16 %v1073
        %v1456 = vunpack.c.l.b16 %v1074
        %v1457 = vunpack.c.h.b16 %v1074
        %v1458 = vunpack.c.l.b16 %v1075
        %v1459 = vunpack.c.h.b16 %v1075
        %v1460 = vunpack.c.l.b16 %v1076
        %v1461 = vunpack.c.h.b16 %v1076
        %v1462 = vunpack.c.l.b16 %v1077
        %v1463 = vunpack.c.h.b16 %v1077
        %v1464 = vunpack.c.l.b16 %v1078
        %v1465 = vunpack.c.h.b16 %v1078
        %v1466 = vunpack.c.l.b16 %v1079
        %v1467 = vunpack.c.h.b16 %v1079
        %v1468 = vunpack.c.l.b16 %v1080
        %v1469 = vunpack.c.h.b16 %v1080
        %v1470 = vunpack.c.l.b16 %v1081
        %v1471 = vunpack.c.h.b16 %v1081
        %v1472 = vunpack.c.l.b16 %v1082
        %v1473 = vunpack.c.h.b16 %v1082
        %v1474 = vunpack.c.l.b16 %v1083
        %v1475 = vunpack.c.h.b16 %v1083
        %v1476 = vunpack.c.l.b16 %v1084
        %v1477 = vunpack.c.h.b16 %v1084
        %v1478 = vunpack.c.l.b16 %v1085
        %v1479 = vunpack.c.h.b16 %v1085
        %v1480 = vunpack.c.l.b16 %v1086
        %v1481 = vunpack.c.h.b16 %v1086
        %v1482 = vunpack.c.l.b16 %v1087
        %v1483 = vunpack.c.h.b16 %v1087
        %v1484 = vunpack.c.l.b16 %v1088
        %v1485 = vunpack.c.h.b16 %v1088
        %v1486 = vunpack.c.l.b16 %v1089
        %v1487 = vunpack.c.h.b16 %v1089
        %v1488 = vunpack.c.l.b16 %v1090
        %v1489 = vunpack.c.h.b16 %v1090
        %v1490 = vunpack.c.l.b16 %v1091
        %v1491 = vunpack.c.h.b16 %v1091
        %v1492 = vunpack.c.l.b16 %v1092
        %v1493 = vunpack.c.h.b16 %v1092
        %v1494 = vunpack.c.l.b16 %v1093
        %v1495 = vunpack.c.h.b16 %v1093
        %v1496 = vunpack.c.l.b16 %v1094
        %v1497 = vunpack.c.h.b16 %v1094
        %v1498 = vunpack.c.l.b16 %v1095
        %v1499 = vunpack.c.h.b16 %v1095
        %v1500 = vunpack.c.l.b16 %v1096
        %v1501 = vunpack.c.h.b16 %v1096
        %v1502 = vunpack.c.l.b16 %v1097
        %v1503 = vunpack.c.h.b16 %v1097
        %v1504 = vpack.c.b16 %v1442, %v1440
        %v1505 = vpack.c.b16 %v1443, %v1441
        %v1506 = vpack.c.b16 %v1446, %v1444
        %v1507 = vpack.c.b16 %v1447, %v1445
        %v1508 = vpack.c.b16 %v1450, %v1448
        %v1509 = vpack.c.b16 %v1451, %v1449
        %v1510 = vpack.c.b16 %v1454, %v1452
        %v1511 = vpack.c.b16 %v1455, %v1453
        %v1512 = vpack.c.b16 %v1458, %v1456
        %v1513 = vpack.c.b16 %v1459, %v1457
        %v1514 = vpack.c.b16 %v1462, %v1460
        %v1515 = vpack.c.b16 %v1463, %v1461
        %v1516 = vpack.c.b16 %v1466, %v1464
        %v1517 = vpack.c.b16 %v1467, %v1465
        %v1518 = vpack.c.b16 %v1470, %v1468
        %v1519 = vpack.c.b16 %v1471, %v1469
        %v1520 = vpack.c.b16 %v1474, %v1472
        %v1521 = vpack.c.b16 %v1475, %v1473
        %v1522 = vpack.c.b16 %v1478, %v1476
        %v1523 = vpack.c.b16 %v1479, %v1477
        %v1524 = vpack.c.b16 %v1482, %v1480
        %v1525 = vpack.c.b16 %v1483, %v1481
        %v1526 = vpack.c.b16 %v1486, %v1484
        %v1527 = vpack.c.b16 %v1487, %v1485
        %v1528 = vpack.c.b16 %v1490, %v1488
        %v1529 = vpack.c.b16 %v1491, %v1489
        %v1530 = vpack.c.b16 %v1494, %v1492
        %v1531 = vpack.c.b16 %v1495, %v1493
        %v1532 = vpack.c.b16 %v1498, %v1496
        %v1533 = vpack.c.b16 %v1499, %v1497
        %v1534 = vpack.c.b16 %v1502, %v1500
        %v1535 = vpack.c.b16 %v1503, %v1501
        %1568 = vmatprep.subr.bf16.mxu0 %v1505
        %1569 = vmatpush1.bf16.msra.mxu0 %v1504
        %1570 = vmatprep.subr.bf16.mxu0 %v1507
        %1571 = vmatpush1.bf16.msra.mxu0 %v1506
        %1572 = vmatprep.subr.bf16.mxu0 %v1509
        %1573 = vmatpush1.bf16.msra.mxu0 %v1508
        %1574 = vmatprep.subr.bf16.mxu0 %v1511
        %1575 = vmatpush1.bf16.msra.mxu0 %v1510
        %1576 = vmatprep.subr.bf16.mxu0 %v1513
        %1577 = vmatpush1.bf16.msra.mxu0 %v1512
        %1578 = vmatprep.subr.bf16.mxu0 %v1515
        %1579 = vmatpush1.bf16.msra.mxu0 %v1514
        %1580 = vmatprep.subr.bf16.mxu0 %v1517
        %1581 = vmatpush1.bf16.msra.mxu0 %v1516
        %1582 = vmatprep.subr.bf16.mxu0 %v1519
        %1583 = vmatpush1.bf16.msra.mxu0 %v1518
        %1584 = vmatprep.subr.bf16.mxu0 %v1521
        %1585 = vmatpush1.bf16.msra.mxu0 %v1520
        %1586 = vmatprep.subr.bf16.mxu0 %v1523
        %1587 = vmatpush1.bf16.msra.mxu0 %v1522
        %1588 = vmatprep.subr.bf16.mxu0 %v1525
        %1589 = vmatpush1.bf16.msra.mxu0 %v1524
        %1590 = vmatprep.subr.bf16.mxu0 %v1527
        %1591 = vmatpush1.bf16.msra.mxu0 %v1526
        %1592 = vmatprep.subr.bf16.mxu0 %v1529
        %1593 = vmatpush1.bf16.msra.mxu0 %v1528
        %1594 = vmatprep.subr.bf16.mxu0 %v1531
        %1595 = vmatpush1.bf16.msra.mxu0 %v1530
        %1596 = vmatprep.subr.bf16.mxu0 %v1533
        %1597 = vmatpush1.bf16.msra.mxu0 %v1532
        %1598 = vmatprep.subr.bf16.mxu0 %v1535
        %1599 = vmatpush1.bf16.msra.mxu0 %v1534
        %1600 = vmatprep.mubr.bf16.mxu0 %v1032
        %1601 = vmatmul.mubr.bf16.gmra.mrb[0].mxu0 %v1031
        %v1602 = vpop.f32.mrb[0].mxu0
        %v1603 = vadd.f32 %v1403, %v1602
        %v1604 = vpop.f32.mrb[0].mxu0
        %v1605 = vadd.f32 %v1407, %v1604
        %v1606 = vpop.f32.mrb[0].mxu0
        %v1607 = vadd.f32 %v1403, %v1606
        %v1608 = vpop.f32.mrb[0].mxu0
        %v1609 = vadd.f32 %v1407, %v1608
        %1610 = vdwg.mxu0
        %v1611 = vunpack.c.l.bf16 %v1131
        %v1613 = vlaneseq
        %v1614 = vshrl.u32 %v1613, 7
        %v1615 = vsub.s32 0, %v1614
        %v1616 = vrot.slane %v1611, %v1615
        %v1617 = vlaneseq
        %v1618 = vshrl.u32 %v1617, 7
        %v1619 = vsub.s32 2, %v1618
        %v1620 = vrot.slane %v1611, %v1619
        %v1623 = vlaneseq
        %v1624 = vshrl.u32 %v1623, 7
        %v1625 = vsub.s32 0, %v1624
        %v1626 = vrot.slane %v1616, %v1625
        %v1627 = vlaneseq
        %v1628 = vshrl.u32 %v1627, 7
        %v1629 = vsub.s32 0, %v1628
        %v1630 = vrot.slane %v1620, %v1629
        %v1663 = vunpack.c.l.b16 %v1099
        %v1664 = vunpack.c.h.b16 %v1099
        %v1665 = vunpack.c.l.b16 %v1100
        %v1666 = vunpack.c.h.b16 %v1100
        %v1667 = vunpack.c.l.b16 %v1101
        %v1668 = vunpack.c.h.b16 %v1101
        %v1669 = vunpack.c.l.b16 %v1102
        %v1670 = vunpack.c.h.b16 %v1102
        %v1671 = vunpack.c.l.b16 %v1103
        %v1672 = vunpack.c.h.b16 %v1103
        %v1673 = vunpack.c.l.b16 %v1104
        %v1674 = vunpack.c.h.b16 %v1104
        %v1675 = vunpack.c.l.b16 %v1105
        %v1676 = vunpack.c.h.b16 %v1105
        %v1677 = vunpack.c.l.b16 %v1106
        %v1678 = vunpack.c.h.b16 %v1106
        %v1679 = vunpack.c.l.b16 %v1107
        %v1680 = vunpack.c.h.b16 %v1107
        %v1681 = vunpack.c.l.b16 %v1108
        %v1682 = vunpack.c.h.b16 %v1108
        %v1683 = vunpack.c.l.b16 %v1109
        %v1684 = vunpack.c.h.b16 %v1109
        %v1685 = vunpack.c.l.b16 %v1110
        %v1686 = vunpack.c.h.b16 %v1110
        %v1687 = vunpack.c.l.b16 %v1111
        %v1688 = vunpack.c.h.b16 %v1111
        %v1689 = vunpack.c.l.b16 %v1112
        %v1690 = vunpack.c.h.b16 %v1112
        %v1691 = vunpack.c.l.b16 %v1113
        %v1692 = vunpack.c.h.b16 %v1113
        %v1693 = vunpack.c.l.b16 %v1114
        %v1694 = vunpack.c.h.b16 %v1114
        %v1695 = vunpack.c.l.b16 %v1115
        %v1696 = vunpack.c.h.b16 %v1115
        %v1697 = vunpack.c.l.b16 %v1116
        %v1698 = vunpack.c.h.b16 %v1116
        %v1699 = vunpack.c.l.b16 %v1117
        %v1700 = vunpack.c.h.b16 %v1117
        %v1701 = vunpack.c.l.b16 %v1118
        %v1702 = vunpack.c.h.b16 %v1118
        %v1703 = vunpack.c.l.b16 %v1119
        %v1704 = vunpack.c.h.b16 %v1119
        %v1705 = vunpack.c.l.b16 %v1120
        %v1706 = vunpack.c.h.b16 %v1120
        %v1707 = vunpack.c.l.b16 %v1121
        %v1708 = vunpack.c.h.b16 %v1121
        %v1709 = vunpack.c.l.b16 %v1122
        %v1710 = vunpack.c.h.b16 %v1122
        %v1711 = vunpack.c.l.b16 %v1123
        %v1712 = vunpack.c.h.b16 %v1123
        %v1713 = vunpack.c.l.b16 %v1124
        %v1714 = vunpack.c.h.b16 %v1124
        %v1715 = vunpack.c.l.b16 %v1125
        %v1716 = vunpack.c.h.b16 %v1125
        %v1717 = vunpack.c.l.b16 %v1126
        %v1718 = vunpack.c.h.b16 %v1126
        %v1719 = vunpack.c.l.b16 %v1127
        %v1720 = vunpack.c.h.b16 %v1127
        %v1721 = vunpack.c.l.b16 %v1128
        %v1722 = vunpack.c.h.b16 %v1128
        %v1723 = vunpack.c.l.b16 %v1129
        %v1724 = vunpack.c.h.b16 %v1129
        %v1725 = vunpack.c.l.b16 %v1130
        %v1726 = vunpack.c.h.b16 %v1130
        %v1727 = vpack.c.b16 %v1665, %v1663
        %v1728 = vpack.c.b16 %v1666, %v1664
        %v1729 = vpack.c.b16 %v1669, %v1667
        %v1730 = vpack.c.b16 %v1670, %v1668
        %v1731 = vpack.c.b16 %v1673, %v1671
        %v1732 = vpack.c.b16 %v1674, %v1672
        %v1733 = vpack.c.b16 %v1677, %v1675
        %v1734 = vpack.c.b16 %v1678, %v1676
        %v1735 = vpack.c.b16 %v1681, %v1679
        %v1736 = vpack.c.b16 %v1682, %v1680
        %v1737 = vpack.c.b16 %v1685, %v1683
        %v1738 = vpack.c.b16 %v1686, %v1684
        %v1739 = vpack.c.b16 %v1689, %v1687
        %v1740 = vpack.c.b16 %v1690, %v1688
        %v1741 = vpack.c.b16 %v1693, %v1691
        %v1742 = vpack.c.b16 %v1694, %v1692
        %v1743 = vpack.c.b16 %v1697, %v1695
        %v1744 = vpack.c.b16 %v1698, %v1696
        %v1745 = vpack.c.b16 %v1701, %v1699
        %v1746 = vpack.c.b16 %v1702, %v1700
        %v1747 = vpack.c.b16 %v1705, %v1703
        %v1748 = vpack.c.b16 %v1706, %v1704
        %v1749 = vpack.c.b16 %v1709, %v1707
        %v1750 = vpack.c.b16 %v1710, %v1708
        %v1751 = vpack.c.b16 %v1713, %v1711
        %v1752 = vpack.c.b16 %v1714, %v1712
        %v1753 = vpack.c.b16 %v1717, %v1715
        %v1754 = vpack.c.b16 %v1718, %v1716
        %v1755 = vpack.c.b16 %v1721, %v1719
        %v1756 = vpack.c.b16 %v1722, %v1720
        %v1757 = vpack.c.b16 %v1725, %v1723
        %v1758 = vpack.c.b16 %v1726, %v1724
        %1791 = vmatprep.subr.bf16.mxu0 %v1728
        %1792 = vmatpush1.bf16.msra.mxu0 %v1727
        %1793 = vmatprep.subr.bf16.mxu0 %v1730
        %1794 = vmatpush1.bf16.msra.mxu0 %v1729
        %1795 = vmatprep.subr.bf16.mxu0 %v1732
        %1796 = vmatpush1.bf16.msra.mxu0 %v1731
        %1797 = vmatprep.subr.bf16.mxu0 %v1734
        %1798 = vmatpush1.bf16.msra.mxu0 %v1733
        %1799 = vmatprep.subr.bf16.mxu0 %v1736
        %1800 = vmatpush1.bf16.msra.mxu0 %v1735
        %1801 = vmatprep.subr.bf16.mxu0 %v1738
        %1802 = vmatpush1.bf16.msra.mxu0 %v1737
        %1803 = vmatprep.subr.bf16.mxu0 %v1740
        %1804 = vmatpush1.bf16.msra.mxu0 %v1739
        %1805 = vmatprep.subr.bf16.mxu0 %v1742
        %1806 = vmatpush1.bf16.msra.mxu0 %v1741
        %1807 = vmatprep.subr.bf16.mxu0 %v1744
        %1808 = vmatpush1.bf16.msra.mxu0 %v1743
        %1809 = vmatprep.subr.bf16.mxu0 %v1746
        %1810 = vmatpush1.bf16.msra.mxu0 %v1745
        %1811 = vmatprep.subr.bf16.mxu0 %v1748
        %1812 = vmatpush1.bf16.msra.mxu0 %v1747
        %1813 = vmatprep.subr.bf16.mxu0 %v1750
        %1814 = vmatpush1.bf16.msra.mxu0 %v1749
        %1815 = vmatprep.subr.bf16.mxu0 %v1752
        %1816 = vmatpush1.bf16.msra.mxu0 %v1751
        %1817 = vmatprep.subr.bf16.mxu0 %v1754
        %1818 = vmatpush1.bf16.msra.mxu0 %v1753
        %1819 = vmatprep.subr.bf16.mxu0 %v1756
        %1820 = vmatpush1.bf16.msra.mxu0 %v1755
        %1821 = vmatprep.subr.bf16.mxu0 %v1758
        %1822 = vmatpush1.bf16.msra.mxu0 %v1757
        %1823 = vmatprep.mubr.bf16.mxu0 %v1032
        %1824 = vmatmul.mubr.bf16.gmra.mrb[0].mxu0 %v1031
        %v1825 = vpop.f32.mrb[0].mxu0
        %v1826 = vadd.f32 %v1626, %v1825
        %v1827 = vpop.f32.mrb[0].mxu0
        %v1828 = vadd.f32 %v1630, %v1827
        %v1829 = vpop.f32.mrb[0].mxu0
        %v1830 = vadd.f32 %v1626, %v1829
        %v1831 = vpop.f32.mrb[0].mxu0
        %v1832 = vadd.f32 %v1630, %v1831
        %1833 = vdwg.mxu0
        %v1834 = vmul.f32 %v1380, 0.088388346
        %v1835 = vmul.f32 %v1382, 0.088388346
        %v1836 = vmul.f32 %v1384, 0.088388346
        %v1837 = vmul.f32 %v1386, 0.088388346
        %v1838 = vpack.c.bf16 %v1836, %v1834
        %v1839 = vpack.c.bf16 %v1837, %v1835
        %v1840 = vpack.c.bf16 %v1607, %v1603
        %v1841 = vpack.c.bf16 %v1609, %v1605
        %v1842 = vpack.c.bf16 %v1830, %v1826
        %v1843 = vpack.c.bf16 %v1832, %v1828
        %v1844 = vlaneseq
        %v1845 = vshrl.u32 %v1844, 7
        %v1846 = vadd.s32 %v1845, 8
        %v1847 = vlaneseq
        %v1848 = vand.u32 %v1847, 127
        %vm1849 = vcmp.le.s32.totalorder %v1848, %v1845
        %vm1850 = vcmp.le.s32.totalorder %v1848, %v1846
        %1851 = vmatprep.subr.bf16.mxu0 0
        %1852 = vmatpush1.bf16.xpose.msra.mxu0 %v1840
        %1853 = vmatprep.subr.bf16.mxu0 0
        %1854 = vmatpush1.bf16.xpose.msra.mxu0 0
        %1855 = vmatprep.subr.bf16.mxu0 0
        %1856 = vmatpush1.bf16.xpose.msra.mxu0 0
        %1857 = vmatprep.subr.bf16.mxu0 0
        %1858 = vmatpush1.bf16.xpose.msra.mxu0 0
        %1859 = vmatprep.subr.bf16.mxu0 0
        %1860 = vmatpush1.bf16.xpose.msra.mxu0 0
        %1861 = vmatprep.subr.bf16.mxu0 0
        %1862 = vmatpush1.bf16.xpose.msra.mxu0 0
        %1863 = vmatprep.subr.bf16.mxu0 0
        %1864 = vmatpush1.bf16.xpose.msra.mxu0 0
        %1865 = vmatprep.subr.bf16.mxu0 0
        %1866 = vmatpush1.bf16.xpose.msra.mxu0 0
        %1867 = vmatprep.subr.bf16.mxu0 0
        %1868 = vmatpush1.bf16.xpose.msra.mxu0 0
        %1869 = vmatprep.subr.bf16.mxu0 0
        %1870 = vmatpush1.bf16.xpose.msra.mxu0 0
        %1871 = vmatprep.subr.bf16.mxu0 0
        %1872 = vmatpush1.bf16.xpose.msra.mxu0 0
        %1873 = vmatprep.subr.bf16.mxu0 0
        %1874 = vmatpush1.bf16.xpose.msra.mxu0 0
        %1875 = vmatprep.subr.bf16.mxu0 0
        %1876 = vmatpush1.bf16.xpose.msra.mxu0 0
        %1877 = vmatprep.subr.bf16.mxu0 0
        %1878 = vmatpush1.bf16.xpose.msra.mxu0 0
        %1879 = vmatprep.subr.bf16.mxu0 0
        %1880 = vmatpush1.bf16.xpose.msra.mxu0 0
        %1881 = vmatprep.subr.bf16.mxu0 0
        %1882 = vmatpush1.bf16.xpose.msra.mxu0 0
        %1883 = vmatprep.mubr.bf16.mxu0 0
        %1884 = vmatmul.mubr.bf16.gmra.mrb[0].mxu0 %v1838
        %v1885 = vpop.f32.mrb[0].mxu0
        %v1886 = vadd.f32 0.0, %v1885
        %v1887 = vpop.f32.mrb[0].mxu0
        %v1888 = vpop.f32.mrb[0].mxu0
        %v1889 = vadd.f32 0.0, %v1888
        %v1890 = vpop.f32.mrb[0].mxu0
        %1891 = vdwg.mxu0
        %v1892 = vsel %vm1849, %v1886, -1e+30
        %v1893 = vsel %vm1850, %v1889, -1e+30
        %vm1894 = vcmask 130048
        %v1895 = vsel %vm1894, %v1892, -inf
        %1896 = vmax.xlane.f32.xlu0 %v1895
        %v1897 = vpop.xlane.xlu0 %1896
        %v1898 = vsel %vm1894, %v1893, -inf
        %1899 = vmax.xlane.f32.xlu0 %v1898
        %v1900 = vpop.xlane.xlu0 %1899
        %v1901 = vsub.f32 %v1892, %v1897
        %v1902 = vsub.f32 %v1893, %v1900
        %v1903 = vmul.f32 %v1901, 1.442695
        %v1904 = vpow.pop %v1903
        %v1905 = vmul.f32 %v1902, 1.442695
        %v1906 = vpow.pop %v1905
        %v1907 = vsel %vm1894, %v1904, 0.0
        %1908 = vadd.xlane.f32.xlu0 %v1907
        %v1909 = vpop.xlane.xlu0 %1908
        %v1910 = vsel %vm1894, %v1906, 0.0
        %1911 = vadd.xlane.f32.xlu0 %v1910
        %v1912 = vpop.xlane.xlu0 %1911
        %v1913 = vpack.c.bf16 %v1906, %v1904
        %v1915 = vsel %vm1894, %v1913, 0
        %1917 = vmatprep.subr.bf16.mxu0 0
        %1918 = vmatpush1.bf16.msra.mxu0 %v1842
        %1919 = vmatprep.subr.bf16.mxu0 0
        %1920 = vmatpush1.bf16.msra.mxu0 0
        %1921 = vmatprep.subr.bf16.mxu0 0
        %1922 = vmatpush1.bf16.msra.mxu0 0
        %1923 = vmatprep.subr.bf16.mxu0 0
        %1924 = vmatpush1.bf16.msra.mxu0 0
        %1925 = vmatprep.subr.bf16.mxu0 0
        %1926 = vmatpush1.bf16.msra.mxu0 0
        %1927 = vmatprep.subr.bf16.mxu0 0
        %1928 = vmatpush1.bf16.msra.mxu0 0
        %1929 = vmatprep.subr.bf16.mxu0 0
        %1930 = vmatpush1.bf16.msra.mxu0 0
        %1931 = vmatprep.subr.bf16.mxu0 0
        %1932 = vmatpush1.bf16.msra.mxu0 0
        %1933 = vmatprep.subr.bf16.mxu0 0
        %1934 = vmatpush1.bf16.msra.mxu0 0
        %1935 = vmatprep.subr.bf16.mxu0 0
        %1936 = vmatpush1.bf16.msra.mxu0 0
        %1937 = vmatprep.subr.bf16.mxu0 0
        %1938 = vmatpush1.bf16.msra.mxu0 0
        %1939 = vmatprep.subr.bf16.mxu0 0
        %1940 = vmatpush1.bf16.msra.mxu0 0
        %1941 = vmatprep.subr.bf16.mxu0 0
        %1942 = vmatpush1.bf16.msra.mxu0 0
        %1943 = vmatprep.subr.bf16.mxu0 0
        %1944 = vmatpush1.bf16.msra.mxu0 0
        %1945 = vmatprep.subr.bf16.mxu0 0
        %1946 = vmatpush1.bf16.msra.mxu0 0
        %1947 = vmatprep.subr.bf16.mxu0 0
        %1948 = vmatpush1.bf16.msra.mxu0 0
        %1949 = vmatprep.mubr.bf16.mxu0 0
        %1950 = vmatmul.mubr.bf16.gmra.mrb[0].mxu0 %v1915
        %v1951 = vpop.f32.mrb[0].mxu0
        %v1952 = vadd.f32 0.0, %v1951
        %v1953 = vpop.f32.mrb[0].mxu0
        %v1954 = vpop.f32.mrb[0].mxu0
        %v1955 = vadd.f32 0.0, %v1954
        %v1956 = vpop.f32.mrb[0].mxu0
        %1957 = vdwg.mxu0
        %v1958 = vrcp.pop %v1909
        %v1959 = vrcp.pop %v1912
        %v1960 = vmul.f32 %v1952, %v1958
        %v1961 = vmul.f32 %v1955, %v1959
        %1962 = vmatprep.subr.bf16.mxu0 0
        %1963 = vmatpush1.bf16.xpose.msra.mxu0 %v1841
        %1964 = vmatprep.subr.bf16.mxu0 0
        %1965 = vmatpush1.bf16.xpose.msra.mxu0 0
        %1966 = vmatprep.subr.bf16.mxu0 0
        %1967 = vmatpush1.bf16.xpose.msra.mxu0 0
        %1968 = vmatprep.subr.bf16.mxu0 0
        %1969 = vmatpush1.bf16.xpose.msra.mxu0 0
        %1970 = vmatprep.subr.bf16.mxu0 0
        %1971 = vmatpush1.bf16.xpose.msra.mxu0 0
        %1972 = vmatprep.subr.bf16.mxu0 0
        %1973 = vmatpush1.bf16.xpose.msra.mxu0 0
        %1974 = vmatprep.subr.bf16.mxu0 0
        %1975 = vmatpush1.bf16.xpose.msra.mxu0 0
        %1976 = vmatprep.subr.bf16.mxu0 0
        %1977 = vmatpush1.bf16.xpose.msra.mxu0 0
        %1978 = vmatprep.subr.bf16.mxu0 0
        %1979 = vmatpush1.bf16.xpose.msra.mxu0 0
        %1980 = vmatprep.subr.bf16.mxu0 0
        %1981 = vmatpush1.bf16.xpose.msra.mxu0 0
        %1982 = vmatprep.subr.bf16.mxu0 0
        %1983 = vmatpush1.bf16.xpose.msra.mxu0 0
        %1984 = vmatprep.subr.bf16.mxu0 0
        %1985 = vmatpush1.bf16.xpose.msra.mxu0 0
        %1986 = vmatprep.subr.bf16.mxu0 0
        %1987 = vmatpush1.bf16.xpose.msra.mxu0 0
        %1988 = vmatprep.subr.bf16.mxu0 0
        %1989 = vmatpush1.bf16.xpose.msra.mxu0 0
        %1990 = vmatprep.subr.bf16.mxu0 0
        %1991 = vmatpush1.bf16.xpose.msra.mxu0 0
        %1992 = vmatprep.subr.bf16.mxu0 0
        %1993 = vmatpush1.bf16.xpose.msra.mxu0 0
        %1994 = vmatprep.mubr.bf16.mxu0 0
        %1995 = vmatmul.mubr.bf16.gmra.mrb[0].mxu0 %v1839
        %v1996 = vpop.f32.mrb[0].mxu0
        %v1997 = vadd.f32 0.0, %v1996
        %v1998 = vpop.f32.mrb[0].mxu0
        %v1999 = vpop.f32.mrb[0].mxu0
        %v2000 = vadd.f32 0.0, %v1999
        %v2001 = vpop.f32.mrb[0].mxu0
        %2002 = vdwg.mxu0
        %v2003 = vsel %vm1849, %v1997, -1e+30
        %v2004 = vsel %vm1850, %v2000, -1e+30
        %v2005 = vsel %vm1894, %v2003, -inf
        %2006 = vmax.xlane.f32.xlu0 %v2005
        %v2007 = vpop.xlane.xlu0 %2006
        %v2008 = vsel %vm1894, %v2004, -inf
        %2009 = vmax.xlane.f32.xlu0 %v2008
        %v2010 = vpop.xlane.xlu0 %2009
        %v2011 = vsub.f32 %v2003, %v2007
        %v2012 = vsub.f32 %v2004, %v2010
        %v2013 = vmul.f32 %v2011, 1.442695
        %v2014 = vpow.pop %v2013
        %v2015 = vmul.f32 %v2012, 1.442695
        %v2016 = vpow.pop %v2015
        %v2017 = vsel %vm1894, %v2014, 0.0
        %2018 = vadd.xlane.f32.xlu0 %v2017
        %v2019 = vpop.xlane.xlu0 %2018
        %v2020 = vsel %vm1894, %v2016, 0.0
        %2021 = vadd.xlane.f32.xlu0 %v2020
        %v2022 = vpop.xlane.xlu0 %2021
        %v2023 = vpack.c.bf16 %v2016, %v2014
        %v2025 = vsel %vm1894, %v2023, 0
        %2027 = vmatprep.subr.bf16.mxu0 0
        %2028 = vmatpush1.bf16.msra.mxu0 %v1843
        %2029 = vmatprep.subr.bf16.mxu0 0
        %2030 = vmatpush1.bf16.msra.mxu0 0
        %2031 = vmatprep.subr.bf16.mxu0 0
        %2032 = vmatpush1.bf16.msra.mxu0 0
        %2033 = vmatprep.subr.bf16.mxu0 0
        %2034 = vmatpush1.bf16.msra.mxu0 0
        %2035 = vmatprep.subr.bf16.mxu0 0
        %2036 = vmatpush1.bf16.msra.mxu0 0
        %2037 = vmatprep.subr.bf16.mxu0 0
        %2038 = vmatpush1.bf16.msra.mxu0 0
        %2039 = vmatprep.subr.bf16.mxu0 0
        %2040 = vmatpush1.bf16.msra.mxu0 0
        %2041 = vmatprep.subr.bf16.mxu0 0
        %2042 = vmatpush1.bf16.msra.mxu0 0
        %2043 = vmatprep.subr.bf16.mxu0 0
        %2044 = vmatpush1.bf16.msra.mxu0 0
        %2045 = vmatprep.subr.bf16.mxu0 0
        %2046 = vmatpush1.bf16.msra.mxu0 0
        %2047 = vmatprep.subr.bf16.mxu0 0
        %2048 = vmatpush1.bf16.msra.mxu0 0
        %2049 = vmatprep.subr.bf16.mxu0 0
        %2050 = vmatpush1.bf16.msra.mxu0 0
        %2051 = vmatprep.subr.bf16.mxu0 0
        %2052 = vmatpush1.bf16.msra.mxu0 0
        %2053 = vmatprep.subr.bf16.mxu0 0
        %2054 = vmatpush1.bf16.msra.mxu0 0
        %2055 = vmatprep.subr.bf16.mxu0 0
        %2056 = vmatpush1.bf16.msra.mxu0 0
        %2057 = vmatprep.subr.bf16.mxu0 0
        %2058 = vmatpush1.bf16.msra.mxu0 0
        %2059 = vmatprep.mubr.bf16.mxu0 0
        %2060 = vmatmul.mubr.bf16.gmra.mrb[0].mxu0 %v2025
        %v2061 = vpop.f32.mrb[0].mxu0
        %v2062 = vadd.f32 0.0, %v2061
        %v2063 = vpop.f32.mrb[0].mxu0
        %v2064 = vpop.f32.mrb[0].mxu0
        %v2065 = vadd.f32 0.0, %v2064
        %v2066 = vpop.f32.mrb[0].mxu0
        %2067 = vdwg.mxu0
        %v2068 = vrcp.pop %v2019
        %v2069 = vrcp.pop %v2022
        %v2070 = vmul.f32 %v2062, %v2068
        %v2071 = vmul.f32 %v2065, %v2069
        %v2072 = vpack.c.bf16 %v1961, %v1960
        %v2073 = vpack.c.bf16 %v2071, %v2070
        %v2074 = vunpack.c.l.bf16 %v1164
        %v2076 = vlaneseq
        %v2077 = vshrl.u32 %v2076, 7
        %v2078 = vsub.s32 0, %v2077
        %v2079 = vrot.slane %v2074, %v2078
        %v2080 = vlaneseq
        %v2081 = vshrl.u32 %v2080, 7
        %v2082 = vsub.s32 2, %v2081
        %v2083 = vrot.slane %v2074, %v2082
        %v2086 = vlaneseq
        %v2087 = vshrl.u32 %v2086, 7
        %v2088 = vsub.s32 0, %v2087
        %v2089 = vrot.slane %v2079, %v2088
        %v2090 = vlaneseq
        %v2091 = vshrl.u32 %v2090, 7
        %v2092 = vsub.s32 0, %v2091
        %v2093 = vrot.slane %v2083, %v2092
        %v2126 = vunpack.c.l.b16 %v1132
        %v2127 = vunpack.c.h.b16 %v1132
        %v2128 = vunpack.c.l.b16 %v1133
        %v2129 = vunpack.c.h.b16 %v1133
        %v2130 = vunpack.c.l.b16 %v1134
        %v2131 = vunpack.c.h.b16 %v1134
        %v2132 = vunpack.c.l.b16 %v1135
        %v2133 = vunpack.c.h.b16 %v1135
        %v2134 = vunpack.c.l.b16 %v1136
        %v2135 = vunpack.c.h.b16 %v1136
        %v2136 = vunpack.c.l.b16 %v1137
        %v2137 = vunpack.c.h.b16 %v1137
        %v2138 = vunpack.c.l.b16 %v1138
        %v2139 = vunpack.c.h.b16 %v1138
        %v2140 = vunpack.c.l.b16 %v1139
        %v2141 = vunpack.c.h.b16 %v1139
        %v2142 = vunpack.c.l.b16 %v1140
        %v2143 = vunpack.c.h.b16 %v1140
        %v2144 = vunpack.c.l.b16 %v1141
        %v2145 = vunpack.c.h.b16 %v1141
        %v2146 = vunpack.c.l.b16 %v1142
        %v2147 = vunpack.c.h.b16 %v1142
        %v2148 = vunpack.c.l.b16 %v1143
        %v2149 = vunpack.c.h.b16 %v1143
        %v2150 = vunpack.c.l.b16 %v1144
        %v2151 = vunpack.c.h.b16 %v1144
        %v2152 = vunpack.c.l.b16 %v1145
        %v2153 = vunpack.c.h.b16 %v1145
        %v2154 = vunpack.c.l.b16 %v1146
        %v2155 = vunpack.c.h.b16 %v1146
        %v2156 = vunpack.c.l.b16 %v1147
        %v2157 = vunpack.c.h.b16 %v1147
        %v2158 = vunpack.c.l.b16 %v1148
        %v2159 = vunpack.c.h.b16 %v1148
        %v2160 = vunpack.c.l.b16 %v1149
        %v2161 = vunpack.c.h.b16 %v1149
        %v2162 = vunpack.c.l.b16 %v1150
        %v2163 = vunpack.c.h.b16 %v1150
        %v2164 = vunpack.c.l.b16 %v1151
        %v2165 = vunpack.c.h.b16 %v1151
        %v2166 = vunpack.c.l.b16 %v1152
        %v2167 = vunpack.c.h.b16 %v1152
        %v2168 = vunpack.c.l.b16 %v1153
        %v2169 = vunpack.c.h.b16 %v1153
        %v2170 = vunpack.c.l.b16 %v1154
        %v2171 = vunpack.c.h.b16 %v1154
        %v2172 = vunpack.c.l.b16 %v1155
        %v2173 = vunpack.c.h.b16 %v1155
        %v2174 = vunpack.c.l.b16 %v1156
        %v2175 = vunpack.c.h.b16 %v1156
        %v2176 = vunpack.c.l.b16 %v1157
        %v2177 = vunpack.c.h.b16 %v1157
        %v2178 = vunpack.c.l.b16 %v1158
        %v2179 = vunpack.c.h.b16 %v1158
        %v2180 = vunpack.c.l.b16 %v1159
        %v2181 = vunpack.c.h.b16 %v1159
        %v2182 = vunpack.c.l.b16 %v1160
        %v2183 = vunpack.c.h.b16 %v1160
        %v2184 = vunpack.c.l.b16 %v1161
        %v2185 = vunpack.c.h.b16 %v1161
        %v2186 = vunpack.c.l.b16 %v1162
        %v2187 = vunpack.c.h.b16 %v1162
        %v2188 = vunpack.c.l.b16 %v1163
        %v2189 = vunpack.c.h.b16 %v1163
        %v2190 = vpack.c.b16 %v2128, %v2126
        %v2191 = vpack.c.b16 %v2129, %v2127
        %v2192 = vpack.c.b16 %v2132, %v2130
        %v2193 = vpack.c.b16 %v2133, %v2131
        %v2194 = vpack.c.b16 %v2136, %v2134
        %v2195 = vpack.c.b16 %v2137, %v2135
        %v2196 = vpack.c.b16 %v2140, %v2138
        %v2197 = vpack.c.b16 %v2141, %v2139
        %v2198 = vpack.c.b16 %v2144, %v2142
        %v2199 = vpack.c.b16 %v2145, %v2143
        %v2200 = vpack.c.b16 %v2148, %v2146
        %v2201 = vpack.c.b16 %v2149, %v2147
        %v2202 = vpack.c.b16 %v2152, %v2150
        %v2203 = vpack.c.b16 %v2153, %v2151
        %v2204 = vpack.c.b16 %v2156, %v2154
        %v2205 = vpack.c.b16 %v2157, %v2155
        %v2206 = vpack.c.b16 %v2160, %v2158
        %v2207 = vpack.c.b16 %v2161, %v2159
        %v2208 = vpack.c.b16 %v2164, %v2162
        %v2209 = vpack.c.b16 %v2165, %v2163
        %v2210 = vpack.c.b16 %v2168, %v2166
        %v2211 = vpack.c.b16 %v2169, %v2167
        %v2212 = vpack.c.b16 %v2172, %v2170
        %v2213 = vpack.c.b16 %v2173, %v2171
        %v2214 = vpack.c.b16 %v2176, %v2174
        %v2215 = vpack.c.b16 %v2177, %v2175
        %v2216 = vpack.c.b16 %v2180, %v2178
        %v2217 = vpack.c.b16 %v2181, %v2179
        %v2218 = vpack.c.b16 %v2184, %v2182
        %v2219 = vpack.c.b16 %v2185, %v2183
        %v2220 = vpack.c.b16 %v2188, %v2186
        %v2221 = vpack.c.b16 %v2189, %v2187
        %2254 = vmatprep.subr.bf16.mxu0 %v2191
        %2255 = vmatpush1.bf16.msra.mxu0 %v2190
        %2256 = vmatprep.subr.bf16.mxu0 %v2193
        %2257 = vmatpush1.bf16.msra.mxu0 %v2192
        %2258 = vmatprep.subr.bf16.mxu0 %v2195
        %2259 = vmatpush1.bf16.msra.mxu0 %v2194
        %2260 = vmatprep.subr.bf16.mxu0 %v2197
        %2261 = vmatpush1.bf16.msra.mxu0 %v2196
        %2262 = vmatprep.subr.bf16.mxu0 %v2199
        %2263 = vmatpush1.bf16.msra.mxu0 %v2198
        %2264 = vmatprep.subr.bf16.mxu0 %v2201
        %2265 = vmatpush1.bf16.msra.mxu0 %v2200
        %2266 = vmatprep.subr.bf16.mxu0 %v2203
        %2267 = vmatpush1.bf16.msra.mxu0 %v2202
        %2268 = vmatprep.subr.bf16.mxu0 %v2205
        %2269 = vmatpush1.bf16.msra.mxu0 %v2204
        %2270 = vmatprep.subr.bf16.mxu0 %v2207
        %2271 = vmatpush1.bf16.msra.mxu0 %v2206
        %2272 = vmatprep.subr.bf16.mxu0 %v2209
        %2273 = vmatpush1.bf16.msra.mxu0 %v2208
        %2274 = vmatprep.subr.bf16.mxu0 %v2211
        %2275 = vmatpush1.bf16.msra.mxu0 %v2210
        %2276 = vmatprep.subr.bf16.mxu0 %v2213
        %2277 = vmatpush1.bf16.msra.mxu0 %v2212
        %2278 = vmatprep.subr.bf16.mxu0 %v2215
        %2279 = vmatpush1.bf16.msra.mxu0 %v2214
        %2280 = vmatprep.subr.bf16.mxu0 %v2217
        %2281 = vmatpush1.bf16.msra.mxu0 %v2216
        %2282 = vmatprep.subr.bf16.mxu0 %v2219
        %2283 = vmatpush1.bf16.msra.mxu0 %v2218
        %2284 = vmatprep.subr.bf16.mxu0 %v2221
        %2285 = vmatpush1.bf16.msra.mxu0 %v2220
        %2286 = vmatprep.mubr.bf16.mxu0 %v2073
        %2287 = vmatmul.mubr.bf16.gmra.mrb[0].mxu0 %v2072
        %v2288 = vpop.f32.mrb[0].mxu0
        %v2289 = vadd.f32 %v2089, %v2288
        %v2290 = vpop.f32.mrb[0].mxu0
        %v2291 = vadd.f32 %v2093, %v2290
        %v2292 = vpop.f32.mrb[0].mxu0
        %v2293 = vadd.f32 %v2089, %v2292
        %v2294 = vpop.f32.mrb[0].mxu0
        %v2295 = vadd.f32 %v2093, %v2294
        %2296 = vdwg.mxu0
        %v2297 = vadd.f32 %v944, %v2289
        %v2298 = vadd.f32 %v945, %v2291
        %v2299 = vadd.f32 %v946, %v2293
        %v2300 = vadd.f32 %v947, %v2295
        %v2301 = vld [vmem:[%s11] sm:$0x3]
        %v2302 = vld [vmem:[%s12] sm:$0x3]
        %v2303 = vadd.f32 %v2297, %v2298
        %2304 = vadd.xlane.f32.xlu0 %v2303
        %v2305 = vpop.xlane.xlu0 %2304
        %v2306 = vadd.f32 %v2299, %v2300
        %2307 = vadd.xlane.f32.xlu0 %v2306
        %v2308 = vpop.xlane.xlu0 %2307
        %v2309 = vmul.f32 %v2305, %v956
        %v2310 = vmul.f32 %v2308, %v956
        %v2311 = vsub.f32 %v2297, %v2309
        %v2312 = vsub.f32 %v2298, %v2309
        %v2313 = vsub.f32 %v2299, %v2310
        %v2314 = vsub.f32 %v2300, %v2310
        %v2315 = vmul.f32 %v2311, %v2311
        %v2316 = vmul.f32 %v2312, %v2312
        %v2317 = vmul.f32 %v2313, %v2313
        %v2318 = vmul.f32 %v2314, %v2314
        %v2319 = vadd.f32 %v2315, %v2316
        %2320 = vadd.xlane.f32.xlu0 %v2319
        %v2321 = vpop.xlane.xlu0 %2320
        %v2322 = vadd.f32 %v2317, %v2318
        %2323 = vadd.xlane.f32.xlu0 %v2322
        %v2324 = vpop.xlane.xlu0 %2323
        %v2325 = vmul.f32 %v2321, %v956
        %v2326 = vmul.f32 %v2324, %v956
        %v2327 = vadd.f32 %v2325, 1e-05
        %v2328 = vadd.f32 %v2326, 1e-05
        %v2329 = vrsqrt.pop %v2327
        %v2330 = vrsqrt.pop %v2328
        %v2331 = vmul.f32 %v2311, %v2329
        %v2332 = vmul.f32 %v2312, %v2329
        %v2333 = vmul.f32 %v2313, %v2330
        %v2334 = vmul.f32 %v2314, %v2330
        %v2335 = vunpack.c.l.bf16 %v2301
        %v2337 = vlaneseq
        %v2338 = vshrl.u32 %v2337, 7
        %v2339 = vsub.s32 0, %v2338
        %v2340 = vrot.slane %v2335, %v2339
        %v2341 = vlaneseq
        %v2342 = vshrl.u32 %v2341, 7
        %v2343 = vsub.s32 2, %v2342
        %v2344 = vrot.slane %v2335, %v2343
        %v2347 = vlaneseq
        %v2348 = vshrl.u32 %v2347, 7
        %v2349 = vsub.s32 0, %v2348
        %v2350 = vrot.slane %v2340, %v2349
        %v2351 = vlaneseq
        %v2352 = vshrl.u32 %v2351, 7
        %v2353 = vsub.s32 0, %v2352
        %v2354 = vrot.slane %v2344, %v2353
        %v2355 = vmul.f32 %v2331, %v2350
        %v2356 = vmul.f32 %v2332, %v2354
        %v2357 = vmul.f32 %v2333, %v2350
        %v2358 = vmul.f32 %v2334, %v2354
        %v2359 = vunpack.c.l.bf16 %v2302
        %v2361 = vlaneseq
        %v2362 = vshrl.u32 %v2361, 7
        %v2363 = vsub.s32 0, %v2362
        %v2364 = vrot.slane %v2359, %v2363
        %v2365 = vlaneseq
        %v2366 = vshrl.u32 %v2365, 7
        %v2367 = vsub.s32 2, %v2366
        %v2368 = vrot.slane %v2359, %v2367
        %v2371 = vlaneseq
        %v2372 = vshrl.u32 %v2371, 7
        %v2373 = vsub.s32 0, %v2372
        %v2374 = vrot.slane %v2364, %v2373
        %v2375 = vlaneseq
        %v2376 = vshrl.u32 %v2375, 7
        %v2377 = vsub.s32 0, %v2376
        %v2378 = vrot.slane %v2368, %v2377
        %v2379 = vadd.f32 %v2355, %v2374
        %v2380 = vadd.f32 %v2356, %v2378
        %v2381 = vadd.f32 %v2357, %v2374
        %v2382 = vadd.f32 %v2358, %v2378
        %v2383 = vpack.c.bf16 %v2381, %v2379
        %v2384 = vpack.c.bf16 %v2382, %v2380
        %v2385 = vld [vmem:[#allocation13] sm:$0xff]
        %v2386 = vld [vmem:[#allocation13 + $0x8] sm:$0xff]
        %v2387 = vld [vmem:[#allocation13 + $0x10] sm:$0xff]
        %v2388 = vld [vmem:[#allocation13 + $0x18] sm:$0xff]
        %v2389 = vld [vmem:[#allocation13 + $0x20] sm:$0xff]
        %v2390 = vld [vmem:[#allocation13 + $0x28] sm:$0xff]
        %v2391 = vld [vmem:[#allocation13 + $0x30] sm:$0xff]
        %v2392 = vld [vmem:[#allocation13 + $0x38] sm:$0xff]
        %v2393 = vld [vmem:[#allocation13 + $0x40] sm:$0xff]
        %v2394 = vld [vmem:[#allocation13 + $0x48] sm:$0xff]
        %v2395 = vld [vmem:[#allocation13 + $0x50] sm:$0xff]
        %v2396 = vld [vmem:[#allocation13 + $0x58] sm:$0xff]
        %v2397 = vld [vmem:[#allocation13 + $0x60] sm:$0xff]
        %v2398 = vld [vmem:[#allocation13 + $0x68] sm:$0xff]
        %v2399 = vld [vmem:[#allocation13 + $0x70] sm:$0xff]
        %v2400 = vld [vmem:[#allocation13 + $0x78] sm:$0xff]
        %v2401 = vld [vmem:[#allocation13 + $0x80] sm:$0xff]
        %v2402 = vld [vmem:[#allocation13 + $0x88] sm:$0xff]
        %v2403 = vld [vmem:[#allocation13 + $0x90] sm:$0xff]
        %v2404 = vld [vmem:[#allocation13 + $0x98] sm:$0xff]
        %v2405 = vld [vmem:[#allocation13 + $0xa0] sm:$0xff]
        %v2406 = vld [vmem:[#allocation13 + $0xa8] sm:$0xff]
        %v2407 = vld [vmem:[#allocation13 + $0xb0] sm:$0xff]
        %v2408 = vld [vmem:[#allocation13 + $0xb8] sm:$0xff]
        %v2409 = vld [vmem:[#allocation13 + $0xc0] sm:$0xff]
        %v2410 = vld [vmem:[#allocation13 + $0xc8] sm:$0xff]
        %v2411 = vld [vmem:[#allocation13 + $0xd0] sm:$0xff]
        %v2412 = vld [vmem:[#allocation13 + $0xd8] sm:$0xff]
        %v2413 = vld [vmem:[#allocation13 + $0xe0] sm:$0xff]
        %v2414 = vld [vmem:[#allocation13 + $0xe8] sm:$0xff]
        %v2415 = vld [vmem:[#allocation13 + $0xf0] sm:$0xff]
        %v2416 = vld [vmem:[#allocation13 + $0xf8] sm:$0xff]
        %v2417 = vld [vmem:[%s14] sm:$0x3]
        %v2418 = vld [vmem:[#allocation14] sm:$0xff]
        %v2419 = vld [vmem:[#allocation14 + $0x8] sm:$0xff]
        %v2420 = vld [vmem:[#allocation14 + $0x10] sm:$0xff]
        %v2421 = vld [vmem:[#allocation14 + $0x18] sm:$0xff]
        %v2422 = vld [vmem:[#allocation14 + $0x20] sm:$0xff]
        %v2423 = vld [vmem:[#allocation14 + $0x28] sm:$0xff]
        %v2424 = vld [vmem:[#allocation14 + $0x30] sm:$0xff]
        %v2425 = vld [vmem:[#allocation14 + $0x38] sm:$0xff]
        %v2426 = vld [vmem:[#allocation14 + $0x40] sm:$0xff]
        %v2427 = vld [vmem:[#allocation14 + $0x48] sm:$0xff]
        %v2428 = vld [vmem:[#allocation14 + $0x50] sm:$0xff]
        %v2429 = vld [vmem:[#allocation14 + $0x58] sm:$0xff]
        %v2430 = vld [vmem:[#allocation14 + $0x60] sm:$0xff]
        %v2431 = vld [vmem:[#allocation14 + $0x68] sm:$0xff]
        %v2432 = vld [vmem:[#allocation14 + $0x70] sm:$0xff]
        %v2433 = vld [vmem:[#allocation14 + $0x78] sm:$0xff]
        %v2434 = vld [vmem:[#allocation14 + $0x80] sm:$0xff]
        %v2435 = vld [vmem:[#allocation14 + $0x88] sm:$0xff]
        %v2436 = vld [vmem:[#allocation14 + $0x90] sm:$0xff]
        %v2437 = vld [vmem:[#allocation14 + $0x98] sm:$0xff]
        %v2438 = vld [vmem:[#allocation14 + $0xa0] sm:$0xff]
        %v2439 = vld [vmem:[#allocation14 + $0xa8] sm:$0xff]
        %v2440 = vld [vmem:[#allocation14 + $0xb0] sm:$0xff]
        %v2441 = vld [vmem:[#allocation14 + $0xb8] sm:$0xff]
        %v2442 = vld [vmem:[#allocation14 + $0xc0] sm:$0xff]
        %v2443 = vld [vmem:[#allocation14 + $0xc8] sm:$0xff]
        %v2444 = vld [vmem:[#allocation14 + $0xd0] sm:$0xff]
        %v2445 = vld [vmem:[#allocation14 + $0xd8] sm:$0xff]
        %v2446 = vld [vmem:[#allocation14 + $0xe0] sm:$0xff]
        %v2447 = vld [vmem:[#allocation14 + $0xe8] sm:$0xff]
        %v2448 = vld [vmem:[#allocation14 + $0xf0] sm:$0xff]
        %v2449 = vld [vmem:[#allocation14 + $0xf8] sm:$0xff]
        %v2450 = vld [vmem:[%s16] sm:$0x3]
        %v2451 = vld [vmem:[#allocation16] sm:$0xff]
        %v2452 = vld [vmem:[#allocation16 + $0x8] sm:$0xff]
        %v2453 = vld [vmem:[#allocation16 + $0x10] sm:$0xff]
        %v2454 = vld [vmem:[#allocation16 + $0x18] sm:$0xff]
        %v2455 = vld [vmem:[#allocation16 + $0x20] sm:$0xff]
        %v2456 = vld [vmem:[#allocation16 + $0x28] sm:$0xff]
        %v2457 = vld [vmem:[#allocation16 + $0x30] sm:$0xff]
        %v2458 = vld [vmem:[#allocation16 + $0x38] sm:$0xff]
        %v2459 = vld [vmem:[#allocation16 + $0x40] sm:$0xff]
        %v2460 = vld [vmem:[#allocation16 + $0x48] sm:$0xff]
        %v2461 = vld [vmem:[#allocation16 + $0x50] sm:$0xff]
        %v2462 = vld [vmem:[#allocation16 + $0x58] sm:$0xff]
        %v2463 = vld [vmem:[#allocation16 + $0x60] sm:$0xff]
        %v2464 = vld [vmem:[#allocation16 + $0x68] sm:$0xff]
        %v2465 = vld [vmem:[#allocation16 + $0x70] sm:$0xff]
        %v2466 = vld [vmem:[#allocation16 + $0x78] sm:$0xff]
        %v2467 = vld [vmem:[#allocation16 + $0x80] sm:$0xff]
        %v2468 = vld [vmem:[#allocation16 + $0x88] sm:$0xff]
        %v2469 = vld [vmem:[#allocation16 + $0x90] sm:$0xff]
        %v2470 = vld [vmem:[#allocation16 + $0x98] sm:$0xff]
        %v2471 = vld [vmem:[#allocation16 + $0xa0] sm:$0xff]
        %v2472 = vld [vmem:[#allocation16 + $0xa8] sm:$0xff]
        %v2473 = vld [vmem:[#allocation16 + $0xb0] sm:$0xff]
        %v2474 = vld [vmem:[#allocation16 + $0xb8] sm:$0xff]
        %v2475 = vld [vmem:[#allocation16 + $0xc0] sm:$0xff]
        %v2476 = vld [vmem:[#allocation16 + $0xc8] sm:$0xff]
        %v2477 = vld [vmem:[#allocation16 + $0xd0] sm:$0xff]
        %v2478 = vld [vmem:[#allocation16 + $0xd8] sm:$0xff]
        %v2479 = vld [vmem:[#allocation16 + $0xe0] sm:$0xff]
        %v2480 = vld [vmem:[#allocation16 + $0xe8] sm:$0xff]
        %v2481 = vld [vmem:[#allocation16 + $0xf0] sm:$0xff]
        %v2482 = vld [vmem:[#allocation16 + $0xf8] sm:$0xff]
        %v2483 = vld [vmem:[%s18] sm:$0x3]
        %v2484 = vld [vmem:[#allocation17] sm:$0xff]
        %v2485 = vld [vmem:[#allocation17 + $0x8] sm:$0xff]
        %v2486 = vld [vmem:[#allocation17 + $0x10] sm:$0xff]
        %v2487 = vld [vmem:[#allocation17 + $0x18] sm:$0xff]
        %v2488 = vld [vmem:[#allocation17 + $0x20] sm:$0xff]
        %v2489 = vld [vmem:[#allocation17 + $0x28] sm:$0xff]
        %v2490 = vld [vmem:[#allocation17 + $0x30] sm:$0xff]
        %v2491 = vld [vmem:[#allocation17 + $0x38] sm:$0xff]
        %v2492 = vld [vmem:[#allocation17 + $0x40] sm:$0xff]
        %v2493 = vld [vmem:[#allocation17 + $0x48] sm:$0xff]
        %v2494 = vld [vmem:[#allocation17 + $0x50] sm:$0xff]
        %v2495 = vld [vmem:[#allocation17 + $0x58] sm:$0xff]
        %v2496 = vld [vmem:[#allocation17 + $0x60] sm:$0xff]
        %v2497 = vld [vmem:[#allocation17 + $0x68] sm:$0xff]
        %v2498 = vld [vmem:[#allocation17 + $0x70] sm:$0xff]
        %v2499 = vld [vmem:[#allocation17 + $0x78] sm:$0xff]
        %v2500 = vld [vmem:[#allocation17 + $0x80] sm:$0xff]
        %v2501 = vld [vmem:[#allocation17 + $0x88] sm:$0xff]
        %v2502 = vld [vmem:[#allocation17 + $0x90] sm:$0xff]
        %v2503 = vld [vmem:[#allocation17 + $0x98] sm:$0xff]
        %v2504 = vld [vmem:[#allocation17 + $0xa0] sm:$0xff]
        %v2505 = vld [vmem:[#allocation17 + $0xa8] sm:$0xff]
        %v2506 = vld [vmem:[#allocation17 + $0xb0] sm:$0xff]
        %v2507 = vld [vmem:[#allocation17 + $0xb8] sm:$0xff]
        %v2508 = vld [vmem:[#allocation17 + $0xc0] sm:$0xff]
        %v2509 = vld [vmem:[#allocation17 + $0xc8] sm:$0xff]
        %v2510 = vld [vmem:[#allocation17 + $0xd0] sm:$0xff]
        %v2511 = vld [vmem:[#allocation17 + $0xd8] sm:$0xff]
        %v2512 = vld [vmem:[#allocation17 + $0xe0] sm:$0xff]
        %v2513 = vld [vmem:[#allocation17 + $0xe8] sm:$0xff]
        %v2514 = vld [vmem:[#allocation17 + $0xf0] sm:$0xff]
        %v2515 = vld [vmem:[#allocation17 + $0xf8] sm:$0xff]
        %v2516 = vld [vmem:[%s20] sm:$0x3]
        %v2517 = vunpack.c.l.bf16 %v2417
        %v2519 = vlaneseq
        %v2520 = vshrl.u32 %v2519, 7
        %v2521 = vsub.s32 0, %v2520
        %v2522 = vrot.slane %v2517, %v2521
        %v2523 = vlaneseq
        %v2524 = vshrl.u32 %v2523, 7
        %v2525 = vsub.s32 2, %v2524
        %v2526 = vrot.slane %v2517, %v2525
        %v2529 = vlaneseq
        %v2530 = vshrl.u32 %v2529, 7
        %v2531 = vsub.s32 0, %v2530
        %v2532 = vrot.slane %v2522, %v2531
        %v2533 = vlaneseq
        %v2534 = vshrl.u32 %v2533, 7
        %v2535 = vsub.s32 0, %v2534
        %v2536 = vrot.slane %v2526, %v2535
        %v2569 = vunpack.c.l.b16 %v2385
        %v2570 = vunpack.c.h.b16 %v2385
        %v2571 = vunpack.c.l.b16 %v2386
        %v2572 = vunpack.c.h.b16 %v2386
        %v2573 = vunpack.c.l.b16 %v2387
        %v2574 = vunpack.c.h.b16 %v2387
        %v2575 = vunpack.c.l.b16 %v2388
        %v2576 = vunpack.c.h.b16 %v2388
        %v2577 = vunpack.c.l.b16 %v2389
        %v2578 = vunpack.c.h.b16 %v2389
        %v2579 = vunpack.c.l.b16 %v2390
        %v2580 = vunpack.c.h.b16 %v2390
        %v2581 = vunpack.c.l.b16 %v2391
        %v2582 = vunpack.c.h.b16 %v2391
        %v2583 = vunpack.c.l.b16 %v2392
        %v2584 = vunpack.c.h.b16 %v2392
        %v2585 = vunpack.c.l.b16 %v2393
        %v2586 = vunpack.c.h.b16 %v2393
        %v2587 = vunpack.c.l.b16 %v2394
        %v2588 = vunpack.c.h.b16 %v2394
        %v2589 = vunpack.c.l.b16 %v2395
        %v2590 = vunpack.c.h.b16 %v2395
        %v2591 = vunpack.c.l.b16 %v2396
        %v2592 = vunpack.c.h.b16 %v2396
        %v2593 = vunpack.c.l.b16 %v2397
        %v2594 = vunpack.c.h.b16 %v2397
        %v2595 = vunpack.c.l.b16 %v2398
        %v2596 = vunpack.c.h.b16 %v2398
        %v2597 = vunpack.c.l.b16 %v2399
        %v2598 = vunpack.c.h.b16 %v2399
        %v2599 = vunpack.c.l.b16 %v2400
        %v2600 = vunpack.c.h.b16 %v2400
        %v2601 = vunpack.c.l.b16 %v2401
        %v2602 = vunpack.c.h.b16 %v2401
        %v2603 = vunpack.c.l.b16 %v2402
        %v2604 = vunpack.c.h.b16 %v2402
        %v2605 = vunpack.c.l.b16 %v2403
        %v2606 = vunpack.c.h.b16 %v2403
        %v2607 = vunpack.c.l.b16 %v2404
        %v2608 = vunpack.c.h.b16 %v2404
        %v2609 = vunpack.c.l.b16 %v2405
        %v2610 = vunpack.c.h.b16 %v2405
        %v2611 = vunpack.c.l.b16 %v2406
        %v2612 = vunpack.c.h.b16 %v2406
        %v2613 = vunpack.c.l.b16 %v2407
        %v2614 = vunpack.c.h.b16 %v2407
        %v2615 = vunpack.c.l.b16 %v2408
        %v2616 = vunpack.c.h.b16 %v2408
        %v2617 = vunpack.c.l.b16 %v2409
        %v2618 = vunpack.c.h.b16 %v2409
        %v2619 = vunpack.c.l.b16 %v2410
        %v2620 = vunpack.c.h.b16 %v2410
        %v2621 = vunpack.c.l.b16 %v2411
        %v2622 = vunpack.c.h.b16 %v2411
        %v2623 = vunpack.c.l.b16 %v2412
        %v2624 = vunpack.c.h.b16 %v2412
        %v2625 = vunpack.c.l.b16 %v2413
        %v2626 = vunpack.c.h.b16 %v2413
        %v2627 = vunpack.c.l.b16 %v2414
        %v2628 = vunpack.c.h.b16 %v2414
        %v2629 = vunpack.c.l.b16 %v2415
        %v2630 = vunpack.c.h.b16 %v2415
        %v2631 = vunpack.c.l.b16 %v2416
        %v2632 = vunpack.c.h.b16 %v2416
        %v2633 = vpack.c.b16 %v2571, %v2569
        %v2634 = vpack.c.b16 %v2572, %v2570
        %v2635 = vpack.c.b16 %v2575, %v2573
        %v2636 = vpack.c.b16 %v2576, %v2574
        %v2637 = vpack.c.b16 %v2579, %v2577
        %v2638 = vpack.c.b16 %v2580, %v2578
        %v2639 = vpack.c.b16 %v2583, %v2581
        %v2640 = vpack.c.b16 %v2584, %v2582
        %v2641 = vpack.c.b16 %v2587, %v2585
        %v2642 = vpack.c.b16 %v2588, %v2586
        %v2643 = vpack.c.b16 %v2591, %v2589
        %v2644 = vpack.c.b16 %v2592, %v2590
        %v2645 = vpack.c.b16 %v2595, %v2593
        %v2646 = vpack.c.b16 %v2596, %v2594
        %v2647 = vpack.c.b16 %v2599, %v2597
        %v2648 = vpack.c.b16 %v2600, %v2598
        %v2649 = vpack.c.b16 %v2603, %v2601
        %v2650 = vpack.c.b16 %v2604, %v2602
        %v2651 = vpack.c.b16 %v2607, %v2605
        %v2652 = vpack.c.b16 %v2608, %v2606
        %v2653 = vpack.c.b16 %v2611, %v2609
        %v2654 = vpack.c.b16 %v2612, %v2610
        %v2655 = vpack.c.b16 %v2615, %v2613
        %v2656 = vpack.c.b16 %v2616, %v2614
        %v2657 = vpack.c.b16 %v2619, %v2617
        %v2658 = vpack.c.b16 %v2620, %v2618
        %v2659 = vpack.c.b16 %v2623, %v2621
        %v2660 = vpack.c.b16 %v2624, %v2622
        %v2661 = vpack.c.b16 %v2627, %v2625
        %v2662 = vpack.c.b16 %v2628, %v2626
        %v2663 = vpack.c.b16 %v2631, %v2629
        %v2664 = vpack.c.b16 %v2632, %v2630
        %2697 = vmatprep.subr.bf16.mxu0 %v2634
        %2698 = vmatpush1.bf16.msra.mxu0 %v2633
        %2699 = vmatprep.subr.bf16.mxu0 %v2636
        %2700 = vmatpush1.bf16.msra.mxu0 %v2635
        %2701 = vmatprep.subr.bf16.mxu0 %v2638
        %2702 = vmatpush1.bf16.msra.mxu0 %v2637
        %2703 = vmatprep.subr.bf16.mxu0 %v2640
        %2704 = vmatpush1.bf16.msra.mxu0 %v2639
        %2705 = vmatprep.subr.bf16.mxu0 %v2642
        %2706 = vmatpush1.bf16.msra.mxu0 %v2641
        %2707 = vmatprep.subr.bf16.mxu0 %v2644
        %2708 = vmatpush1.bf16.msra.mxu0 %v2643
        %2709 = vmatprep.subr.bf16.mxu0 %v2646
        %2710 = vmatpush1.bf16.msra.mxu0 %v2645
        %2711 = vmatprep.subr.bf16.mxu0 %v2648
        %2712 = vmatpush1.bf16.msra.mxu0 %v2647
        %2713 = vmatprep.subr.bf16.mxu0 %v2650
        %2714 = vmatpush1.bf16.msra.mxu0 %v2649
        %2715 = vmatprep.subr.bf16.mxu0 %v2652
        %2716 = vmatpush1.bf16.msra.mxu0 %v2651
        %2717 = vmatprep.subr.bf16.mxu0 %v2654
        %2718 = vmatpush1.bf16.msra.mxu0 %v2653
        %2719 = vmatprep.subr.bf16.mxu0 %v2656
        %2720 = vmatpush1.bf16.msra.mxu0 %v2655
        %2721 = vmatprep.subr.bf16.mxu0 %v2658
        %2722 = vmatpush1.bf16.msra.mxu0 %v2657
        %2723 = vmatprep.subr.bf16.mxu0 %v2660
        %2724 = vmatpush1.bf16.msra.mxu0 %v2659
        %2725 = vmatprep.subr.bf16.mxu0 %v2662
        %2726 = vmatpush1.bf16.msra.mxu0 %v2661
        %2727 = vmatprep.subr.bf16.mxu0 %v2664
        %2728 = vmatpush1.bf16.msra.mxu0 %v2663
        %2729 = vmatprep.mubr.bf16.mxu0 %v2384
        %2730 = vmatmul.mubr.bf16.gmra.mrb[0].mxu0 %v2383
        %v2731 = vpop.f32.mrb[0].mxu0
        %v2732 = vadd.f32 %v2532, %v2731
        %v2733 = vpop.f32.mrb[0].mxu0
        %v2734 = vadd.f32 %v2536, %v2733
        %v2735 = vpop.f32.mrb[0].mxu0
        %v2736 = vadd.f32 %v2532, %v2735
        %v2737 = vpop.f32.mrb[0].mxu0
        %v2738 = vadd.f32 %v2536, %v2737
        %2739 = vdwg.mxu0
        %v2740 = vunpack.c.l.bf16 %v2450
        %v2742 = vlaneseq
        %v2743 = vshrl.u32 %v2742, 7
        %v2744 = vsub.s32 0, %v2743
        %v2745 = vrot.slane %v2740, %v2744
        %v2746 = vlaneseq
        %v2747 = vshrl.u32 %v2746, 7
        %v2748 = vsub.s32 2, %v2747
        %v2749 = vrot.slane %v2740, %v2748
        %v2752 = vlaneseq
        %v2753 = vshrl.u32 %v2752, 7
        %v2754 = vsub.s32 0, %v2753
        %v2755 = vrot.slane %v2745, %v2754
        %v2756 = vlaneseq
        %v2757 = vshrl.u32 %v2756, 7
        %v2758 = vsub.s32 0, %v2757
        %v2759 = vrot.slane %v2749, %v2758
        %v2792 = vunpack.c.l.b16 %v2418
        %v2793 = vunpack.c.h.b16 %v2418
        %v2794 = vunpack.c.l.b16 %v2419
        %v2795 = vunpack.c.h.b16 %v2419
        %v2796 = vunpack.c.l.b16 %v2420
        %v2797 = vunpack.c.h.b16 %v2420
        %v2798 = vunpack.c.l.b16 %v2421
        %v2799 = vunpack.c.h.b16 %v2421
        %v2800 = vunpack.c.l.b16 %v2422
        %v2801 = vunpack.c.h.b16 %v2422
        %v2802 = vunpack.c.l.b16 %v2423
        %v2803 = vunpack.c.h.b16 %v2423
        %v2804 = vunpack.c.l.b16 %v2424
        %v2805 = vunpack.c.h.b16 %v2424
        %v2806 = vunpack.c.l.b16 %v2425
        %v2807 = vunpack.c.h.b16 %v2425
        %v2808 = vunpack.c.l.b16 %v2426
        %v2809 = vunpack.c.h.b16 %v2426
        %v2810 = vunpack.c.l.b16 %v2427
        %v2811 = vunpack.c.h.b16 %v2427
        %v2812 = vunpack.c.l.b16 %v2428
        %v2813 = vunpack.c.h.b16 %v2428
        %v2814 = vunpack.c.l.b16 %v2429
        %v2815 = vunpack.c.h.b16 %v2429
        %v2816 = vunpack.c.l.b16 %v2430
        %v2817 = vunpack.c.h.b16 %v2430
        %v2818 = vunpack.c.l.b16 %v2431
        %v2819 = vunpack.c.h.b16 %v2431
        %v2820 = vunpack.c.l.b16 %v2432
        %v2821 = vunpack.c.h.b16 %v2432
        %v2822 = vunpack.c.l.b16 %v2433
        %v2823 = vunpack.c.h.b16 %v2433
        %v2824 = vunpack.c.l.b16 %v2434
        %v2825 = vunpack.c.h.b16 %v2434
        %v2826 = vunpack.c.l.b16 %v2435
        %v2827 = vunpack.c.h.b16 %v2435
        %v2828 = vunpack.c.l.b16 %v2436
        %v2829 = vunpack.c.h.b16 %v2436
        %v2830 = vunpack.c.l.b16 %v2437
        %v2831 = vunpack.c.h.b16 %v2437
        %v2832 = vunpack.c.l.b16 %v2438
        %v2833 = vunpack.c.h.b16 %v2438
        %v2834 = vunpack.c.l.b16 %v2439
        %v2835 = vunpack.c.h.b16 %v2439
        %v2836 = vunpack.c.l.b16 %v2440
        %v2837 = vunpack.c.h.b16 %v2440
        %v2838 = vunpack.c.l.b16 %v2441
        %v2839 = vunpack.c.h.b16 %v2441
        %v2840 = vunpack.c.l.b16 %v2442
        %v2841 = vunpack.c.h.b16 %v2442
        %v2842 = vunpack.c.l.b16 %v2443
        %v2843 = vunpack.c.h.b16 %v2443
        %v2844 = vunpack.c.l.b16 %v2444
        %v2845 = vunpack.c.h.b16 %v2444
        %v2846 = vunpack.c.l.b16 %v2445
        %v2847 = vunpack.c.h.b16 %v2445
        %v2848 = vunpack.c.l.b16 %v2446
        %v2849 = vunpack.c.h.b16 %v2446
        %v2850 = vunpack.c.l.b16 %v2447
        %v2851 = vunpack.c.h.b16 %v2447
        %v2852 = vunpack.c.l.b16 %v2448
        %v2853 = vunpack.c.h.b16 %v2448
        %v2854 = vunpack.c.l.b16 %v2449
        %v2855 = vunpack.c.h.b16 %v2449
        %v2856 = vpack.c.b16 %v2794, %v2792
        %v2857 = vpack.c.b16 %v2795, %v2793
        %v2858 = vpack.c.b16 %v2798, %v2796
        %v2859 = vpack.c.b16 %v2799, %v2797
        %v2860 = vpack.c.b16 %v2802, %v2800
        %v2861 = vpack.c.b16 %v2803, %v2801
        %v2862 = vpack.c.b16 %v2806, %v2804
        %v2863 = vpack.c.b16 %v2807, %v2805
        %v2864 = vpack.c.b16 %v2810, %v2808
        %v2865 = vpack.c.b16 %v2811, %v2809
        %v2866 = vpack.c.b16 %v2814, %v2812
        %v2867 = vpack.c.b16 %v2815, %v2813
        %v2868 = vpack.c.b16 %v2818, %v2816
        %v2869 = vpack.c.b16 %v2819, %v2817
        %v2870 = vpack.c.b16 %v2822, %v2820
        %v2871 = vpack.c.b16 %v2823, %v2821
        %v2872 = vpack.c.b16 %v2826, %v2824
        %v2873 = vpack.c.b16 %v2827, %v2825
        %v2874 = vpack.c.b16 %v2830, %v2828
        %v2875 = vpack.c.b16 %v2831, %v2829
        %v2876 = vpack.c.b16 %v2834, %v2832
        %v2877 = vpack.c.b16 %v2835, %v2833
        %v2878 = vpack.c.b16 %v2838, %v2836
        %v2879 = vpack.c.b16 %v2839, %v2837
        %v2880 = vpack.c.b16 %v2842, %v2840
        %v2881 = vpack.c.b16 %v2843, %v2841
        %v2882 = vpack.c.b16 %v2846, %v2844
        %v2883 = vpack.c.b16 %v2847, %v2845
        %v2884 = vpack.c.b16 %v2850, %v2848
        %v2885 = vpack.c.b16 %v2851, %v2849
        %v2886 = vpack.c.b16 %v2854, %v2852
        %v2887 = vpack.c.b16 %v2855, %v2853
        %2920 = vmatprep.subr.bf16.mxu0 %v2857
        %2921 = vmatpush1.bf16.msra.mxu0 %v2856
        %2922 = vmatprep.subr.bf16.mxu0 %v2859
        %2923 = vmatpush1.bf16.msra.mxu0 %v2858
        %2924 = vmatprep.subr.bf16.mxu0 %v2861
        %2925 = vmatpush1.bf16.msra.mxu0 %v2860
        %2926 = vmatprep.subr.bf16.mxu0 %v2863
        %2927 = vmatpush1.bf16.msra.mxu0 %v2862
        %2928 = vmatprep.subr.bf16.mxu0 %v2865
        %2929 = vmatpush1.bf16.msra.mxu0 %v2864
        %2930 = vmatprep.subr.bf16.mxu0 %v2867
        %2931 = vmatpush1.bf16.msra.mxu0 %v2866
        %2932 = vmatprep.subr.bf16.mxu0 %v2869
        %2933 = vmatpush1.bf16.msra.mxu0 %v2868
        %2934 = vmatprep.subr.bf16.mxu0 %v2871
        %2935 = vmatpush1.bf16.msra.mxu0 %v2870
        %2936 = vmatprep.subr.bf16.mxu0 %v2873
        %2937 = vmatpush1.bf16.msra.mxu0 %v2872
        %2938 = vmatprep.subr.bf16.mxu0 %v2875
        %2939 = vmatpush1.bf16.msra.mxu0 %v2874
        %2940 = vmatprep.subr.bf16.mxu0 %v2877
        %2941 = vmatpush1.bf16.msra.mxu0 %v2876
        %2942 = vmatprep.subr.bf16.mxu0 %v2879
        %2943 = vmatpush1.bf16.msra.mxu0 %v2878
        %2944 = vmatprep.subr.bf16.mxu0 %v2881
        %2945 = vmatpush1.bf16.msra.mxu0 %v2880
        %2946 = vmatprep.subr.bf16.mxu0 %v2883
        %2947 = vmatpush1.bf16.msra.mxu0 %v2882
        %2948 = vmatprep.subr.bf16.mxu0 %v2885
        %2949 = vmatpush1.bf16.msra.mxu0 %v2884
        %2950 = vmatprep.subr.bf16.mxu0 %v2887
        %2951 = vmatpush1.bf16.msra.mxu0 %v2886
        %2952 = vmatprep.mubr.bf16.mxu0 %v2384
        %2953 = vmatmul.mubr.bf16.gmra.mrb[0].mxu0 %v2383
        %v2954 = vpop.f32.mrb[0].mxu0
        %v2955 = vadd.f32 %v2755, %v2954
        %v2956 = vpop.f32.mrb[0].mxu0
        %v2957 = vadd.f32 %v2759, %v2956
        %v2958 = vpop.f32.mrb[0].mxu0
        %v2959 = vadd.f32 %v2755, %v2958
        %v2960 = vpop.f32.mrb[0].mxu0
        %v2961 = vadd.f32 %v2759, %v2960
        %2962 = vdwg.mxu0
        %v2963 = vunpack.c.l.bf16 %v2483
        %v2965 = vlaneseq
        %v2966 = vshrl.u32 %v2965, 7
        %v2967 = vsub.s32 0, %v2966
        %v2968 = vrot.slane %v2963, %v2967
        %v2969 = vlaneseq
        %v2970 = vshrl.u32 %v2969, 7
        %v2971 = vsub.s32 2, %v2970
        %v2972 = vrot.slane %v2963, %v2971
        %v2975 = vlaneseq
        %v2976 = vshrl.u32 %v2975, 7
        %v2977 = vsub.s32 0, %v2976
        %v2978 = vrot.slane %v2968, %v2977
        %v2979 = vlaneseq
        %v2980 = vshrl.u32 %v2979, 7
        %v2981 = vsub.s32 0, %v2980
        %v2982 = vrot.slane %v2972, %v2981
        %v3015 = vunpack.c.l.b16 %v2451
        %v3016 = vunpack.c.h.b16 %v2451
        %v3017 = vunpack.c.l.b16 %v2452
        %v3018 = vunpack.c.h.b16 %v2452
        %v3019 = vunpack.c.l.b16 %v2453
        %v3020 = vunpack.c.h.b16 %v2453
        %v3021 = vunpack.c.l.b16 %v2454
        %v3022 = vunpack.c.h.b16 %v2454
        %v3023 = vunpack.c.l.b16 %v2455
        %v3024 = vunpack.c.h.b16 %v2455
        %v3025 = vunpack.c.l.b16 %v2456
        %v3026 = vunpack.c.h.b16 %v2456
        %v3027 = vunpack.c.l.b16 %v2457
        %v3028 = vunpack.c.h.b16 %v2457
        %v3029 = vunpack.c.l.b16 %v2458
        %v3030 = vunpack.c.h.b16 %v2458
        %v3031 = vunpack.c.l.b16 %v2459
        %v3032 = vunpack.c.h.b16 %v2459
        %v3033 = vunpack.c.l.b16 %v2460
        %v3034 = vunpack.c.h.b16 %v2460
        %v3035 = vunpack.c.l.b16 %v2461
        %v3036 = vunpack.c.h.b16 %v2461
        %v3037 = vunpack.c.l.b16 %v2462
        %v3038 = vunpack.c.h.b16 %v2462
        %v3039 = vunpack.c.l.b16 %v2463
        %v3040 = vunpack.c.h.b16 %v2463
        %v3041 = vunpack.c.l.b16 %v2464
        %v3042 = vunpack.c.h.b16 %v2464
        %v3043 = vunpack.c.l.b16 %v2465
        %v3044 = vunpack.c.h.b16 %v2465
        %v3045 = vunpack.c.l.b16 %v2466
        %v3046 = vunpack.c.h.b16 %v2466
        %v3047 = vunpack.c.l.b16 %v2467
        %v3048 = vunpack.c.h.b16 %v2467
        %v3049 = vunpack.c.l.b16 %v2468
        %v3050 = vunpack.c.h.b16 %v2468
        %v3051 = vunpack.c.l.b16 %v2469
        %v3052 = vunpack.c.h.b16 %v2469
        %v3053 = vunpack.c.l.b16 %v2470
        %v3054 = vunpack.c.h.b16 %v2470
        %v3055 = vunpack.c.l.b16 %v2471
        %v3056 = vunpack.c.h.b16 %v2471
        %v3057 = vunpack.c.l.b16 %v2472
        %v3058 = vunpack.c.h.b16 %v2472
        %v3059 = vunpack.c.l.b16 %v2473
        %v3060 = vunpack.c.h.b16 %v2473
        %v3061 = vunpack.c.l.b16 %v2474
        %v3062 = vunpack.c.h.b16 %v2474
        %v3063 = vunpack.c.l.b16 %v2475
        %v3064 = vunpack.c.h.b16 %v2475
        %v3065 = vunpack.c.l.b16 %v2476
        %v3066 = vunpack.c.h.b16 %v2476
        %v3067 = vunpack.c.l.b16 %v2477
        %v3068 = vunpack.c.h.b16 %v2477
        %v3069 = vunpack.c.l.b16 %v2478
        %v3070 = vunpack.c.h.b16 %v2478
        %v3071 = vunpack.c.l.b16 %v2479
        %v3072 = vunpack.c.h.b16 %v2479
        %v3073 = vunpack.c.l.b16 %v2480
        %v3074 = vunpack.c.h.b16 %v2480
        %v3075 = vunpack.c.l.b16 %v2481
        %v3076 = vunpack.c.h.b16 %v2481
        %v3077 = vunpack.c.l.b16 %v2482
        %v3078 = vunpack.c.h.b16 %v2482
        %v3079 = vpack.c.b16 %v3017, %v3015
        %v3080 = vpack.c.b16 %v3018, %v3016
        %v3081 = vpack.c.b16 %v3021, %v3019
        %v3082 = vpack.c.b16 %v3022, %v3020
        %v3083 = vpack.c.b16 %v3025, %v3023
        %v3084 = vpack.c.b16 %v3026, %v3024
        %v3085 = vpack.c.b16 %v3029, %v3027
        %v3086 = vpack.c.b16 %v3030, %v3028
        %v3087 = vpack.c.b16 %v3033, %v3031
        %v3088 = vpack.c.b16 %v3034, %v3032
        %v3089 = vpack.c.b16 %v3037, %v3035
        %v3090 = vpack.c.b16 %v3038, %v3036
        %v3091 = vpack.c.b16 %v3041, %v3039
        %v3092 = vpack.c.b16 %v3042, %v3040
        %v3093 = vpack.c.b16 %v3045, %v3043
        %v3094 = vpack.c.b16 %v3046, %v3044
        %v3095 = vpack.c.b16 %v3049, %v3047
        %v3096 = vpack.c.b16 %v3050, %v3048
        %v3097 = vpack.c.b16 %v3053, %v3051
        %v3098 = vpack.c.b16 %v3054, %v3052
        %v3099 = vpack.c.b16 %v3057, %v3055
        %v3100 = vpack.c.b16 %v3058, %v3056
        %v3101 = vpack.c.b16 %v3061, %v3059
        %v3102 = vpack.c.b16 %v3062, %v3060
        %v3103 = vpack.c.b16 %v3065, %v3063
        %v3104 = vpack.c.b16 %v3066, %v3064
        %v3105 = vpack.c.b16 %v3069, %v3067
        %v3106 = vpack.c.b16 %v3070, %v3068
        %v3107 = vpack.c.b16 %v3073, %v3071
        %v3108 = vpack.c.b16 %v3074, %v3072
        %v3109 = vpack.c.b16 %v3077, %v3075
        %v3110 = vpack.c.b16 %v3078, %v3076
        %3143 = vmatprep.subr.bf16.mxu0 %v3080
        %3144 = vmatpush1.bf16.msra.mxu0 %v3079
        %3145 = vmatprep.subr.bf16.mxu0 %v3082
        %3146 = vmatpush1.bf16.msra.mxu0 %v3081
        %3147 = vmatprep.subr.bf16.mxu0 %v3084
        %3148 = vmatpush1.bf16.msra.mxu0 %v3083
        %3149 = vmatprep.subr.bf16.mxu0 %v3086
        %3150 = vmatpush1.bf16.msra.mxu0 %v3085
        %3151 = vmatprep.subr.bf16.mxu0 %v3088
        %3152 = vmatpush1.bf16.msra.mxu0 %v3087
        %3153 = vmatprep.subr.bf16.mxu0 %v3090
        %3154 = vmatpush1.bf16.msra.mxu0 %v3089
        %3155 = vmatprep.subr.bf16.mxu0 %v3092
        %3156 = vmatpush1.bf16.msra.mxu0 %v3091
        %3157 = vmatprep.subr.bf16.mxu0 %v3094
        %3158 = vmatpush1.bf16.msra.mxu0 %v3093
        %3159 = vmatprep.subr.bf16.mxu0 %v3096
        %3160 = vmatpush1.bf16.msra.mxu0 %v3095
        %3161 = vmatprep.subr.bf16.mxu0 %v3098
        %3162 = vmatpush1.bf16.msra.mxu0 %v3097
        %3163 = vmatprep.subr.bf16.mxu0 %v3100
        %3164 = vmatpush1.bf16.msra.mxu0 %v3099
        %3165 = vmatprep.subr.bf16.mxu0 %v3102
        %3166 = vmatpush1.bf16.msra.mxu0 %v3101
        %3167 = vmatprep.subr.bf16.mxu0 %v3104
        %3168 = vmatpush1.bf16.msra.mxu0 %v3103
        %3169 = vmatprep.subr.bf16.mxu0 %v3106
        %3170 = vmatpush1.bf16.msra.mxu0 %v3105
        %3171 = vmatprep.subr.bf16.mxu0 %v3108
        %3172 = vmatpush1.bf16.msra.mxu0 %v3107
        %3173 = vmatprep.subr.bf16.mxu0 %v3110
        %3174 = vmatpush1.bf16.msra.mxu0 %v3109
        %3175 = vmatprep.mubr.bf16.mxu0 %v2384
        %3176 = vmatmul.mubr.bf16.gmra.mrb[0].mxu0 %v2383
        %v3177 = vpop.f32.mrb[0].mxu0
        %v3178 = vadd.f32 %v2978, %v3177
        %v3179 = vpop.f32.mrb[0].mxu0
        %v3180 = vadd.f32 %v2982, %v3179
        %v3181 = vpop.f32.mrb[0].mxu0
        %v3182 = vadd.f32 %v2978, %v3181
        %v3183 = vpop.f32.mrb[0].mxu0
        %v3184 = vadd.f32 %v2982, %v3183
        %3185 = vdwg.mxu0
        %v3186 = vmul.f32 %v2732, 0.088388346
        %v3187 = vmul.f32 %v2734, 0.088388346
        %v3188 = vmul.f32 %v2736, 0.088388346
        %v3189 = vmul.f32 %v2738, 0.088388346
        %v3190 = vpack.c.bf16 %v3188, %v3186
        %v3191 = vpack.c.bf16 %v3189, %v3187
        %v3192 = vpack.c.bf16 %v2959, %v2955
        %v3193 = vpack.c.bf16 %v2961, %v2957
        %v3194 = vpack.c.bf16 %v3182, %v3178
        %v3195 = vpack.c.bf16 %v3184, %v3180
        %3196 = vmatprep.subr.bf16.mxu0 0
        %3197 = vmatpush1.bf16.xpose.msra.mxu0 %v3192
        %3198 = vmatprep.subr.bf16.mxu0 0
        %3199 = vmatpush1.bf16.xpose.msra.mxu0 0
        %3200 = vmatprep.subr.bf16.mxu0 0
        %3201 = vmatpush1.bf16.xpose.msra.mxu0 0
        %3202 = vmatprep.subr.bf16.mxu0 0
        %3203 = vmatpush1.bf16.xpose.msra.mxu0 0
        %3204 = vmatprep.subr.bf16.mxu0 0
        %3205 = vmatpush1.bf16.xpose.msra.mxu0 0
        %3206 = vmatprep.subr.bf16.mxu0 0
        %3207 = vmatpush1.bf16.xpose.msra.mxu0 0
        %3208 = vmatprep.subr.bf16.mxu0 0
        %3209 = vmatpush1.bf16.xpose.msra.mxu0 0
        %3210 = vmatprep.subr.bf16.mxu0 0
        %3211 = vmatpush1.bf16.xpose.msra.mxu0 0
        %3212 = vmatprep.subr.bf16.mxu0 0
        %3213 = vmatpush1.bf16.xpose.msra.mxu0 0
        %3214 = vmatprep.subr.bf16.mxu0 0
        %3215 = vmatpush1.bf16.xpose.msra.mxu0 0
        %3216 = vmatprep.subr.bf16.mxu0 0
        %3217 = vmatpush1.bf16.xpose.msra.mxu0 0
        %3218 = vmatprep.subr.bf16.mxu0 0
        %3219 = vmatpush1.bf16.xpose.msra.mxu0 0
        %3220 = vmatprep.subr.bf16.mxu0 0
        %3221 = vmatpush1.bf16.xpose.msra.mxu0 0
        %3222 = vmatprep.subr.bf16.mxu0 0
        %3223 = vmatpush1.bf16.xpose.msra.mxu0 0
        %3224 = vmatprep.subr.bf16.mxu0 0
        %3225 = vmatpush1.bf16.xpose.msra.mxu0 0
        %3226 = vmatprep.subr.bf16.mxu0 0
        %3227 = vmatpush1.bf16.xpose.msra.mxu0 0
        %3228 = vmatprep.mubr.bf16.mxu0 0
        %3229 = vmatmul.mubr.bf16.gmra.mrb[0].mxu0 %v3190
        %v3230 = vpop.f32.mrb[0].mxu0
        %v3231 = vadd.f32 0.0, %v3230
        %v3232 = vpop.f32.mrb[0].mxu0
        %v3233 = vpop.f32.mrb[0].mxu0
        %v3234 = vadd.f32 0.0, %v3233
        %v3235 = vpop.f32.mrb[0].mxu0
        %3236 = vdwg.mxu0
        %v3237 = vsel %vm1849, %v3231, -1e+30
        %v3238 = vsel %vm1850, %v3234, -1e+30
        %v3239 = vsel %vm1894, %v3237, -inf
        %3240 = vmax.xlane.f32.xlu0 %v3239
        %v3241 = vpop.xlane.xlu0 %3240
        %v3242 = vsel %vm1894, %v3238, -inf
        %3243 = vmax.xlane.f32.xlu0 %v3242
        %v3244 = vpop.xlane.xlu0 %3243
        %v3245 = vsub.f32 %v3237, %v3241
        %v3246 = vsub.f32 %v3238, %v3244
        %v3247 = vmul.f32 %v3245, 1.442695
        %v3248 = vpow.pop %v3247
        %v3249 = vmul.f32 %v3246, 1.442695
        %v3250 = vpow.pop %v3249
        %v3251 = vsel %vm1894, %v3248, 0.0
        %3252 = vadd.xlane.f32.xlu0 %v3251
        %v3253 = vpop.xlane.xlu0 %3252
        %v3254 = vsel %vm1894, %v3250, 0.0
        %3255 = vadd.xlane.f32.xlu0 %v3254
        %v3256 = vpop.xlane.xlu0 %3255
        %v3257 = vpack.c.bf16 %v3250, %v3248
        %v3259 = vsel %vm1894, %v3257, 0
        %3261 = vmatprep.subr.bf16.mxu0 0
        %3262 = vmatpush1.bf16.msra.mxu0 %v3194
        %3263 = vmatprep.subr.bf16.mxu0 0
        %3264 = vmatpush1.bf16.msra.mxu0 0
        %3265 = vmatprep.subr.bf16.mxu0 0
        %3266 = vmatpush1.bf16.msra.mxu0 0
        %3267 = vmatprep.subr.bf16.mxu0 0
        %3268 = vmatpush1.bf16.msra.mxu0 0
        %3269 = vmatprep.subr.bf16.mxu0 0
        %3270 = vmatpush1.bf16.msra.mxu0 0
        %3271 = vmatprep.subr.bf16.mxu0 0
        %3272 = vmatpush1.bf16.msra.mxu0 0
        %3273 = vmatprep.subr.bf16.mxu0 0
        %3274 = vmatpush1.bf16.msra.mxu0 0
        %3275 = vmatprep.subr.bf16.mxu0 0
        %3276 = vmatpush1.bf16.msra.mxu0 0
        %3277 = vmatprep.subr.bf16.mxu0 0
        %3278 = vmatpush1.bf16.msra.mxu0 0
        %3279 = vmatprep.subr.bf16.mxu0 0
        %3280 = vmatpush1.bf16.msra.mxu0 0
        %3281 = vmatprep.subr.bf16.mxu0 0
        %3282 = vmatpush1.bf16.msra.mxu0 0
        %3283 = vmatprep.subr.bf16.mxu0 0
        %3284 = vmatpush1.bf16.msra.mxu0 0
        %3285 = vmatprep.subr.bf16.mxu0 0
        %3286 = vmatpush1.bf16.msra.mxu0 0
        %3287 = vmatprep.subr.bf16.mxu0 0
        %3288 = vmatpush1.bf16.msra.mxu0 0
        %3289 = vmatprep.subr.bf16.mxu0 0
        %3290 = vmatpush1.bf16.msra.mxu0 0
        %3291 = vmatprep.subr.bf16.mxu0 0
        %3292 = vmatpush1.bf16.msra.mxu0 0
        %3293 = vmatprep.mubr.bf16.mxu0 0
        %3294 = vmatmul.mubr.bf16.gmra.mrb[0].mxu0 %v3259
        %v3295 = vpop.f32.mrb[0].mxu0
        %v3296 = vadd.f32 0.0, %v3295
        %v3297 = vpop.f32.mrb[0].mxu0
        %v3298 = vpop.f32.mrb[0].mxu0
        %v3299 = vadd.f32 0.0, %v3298
        %v3300 = vpop.f32.mrb[0].mxu0
        %3301 = vdwg.mxu0
        %v3302 = vrcp.pop %v3253
        %v3303 = vrcp.pop %v3256
        %v3304 = vmul.f32 %v3296, %v3302
        %v3305 = vmul.f32 %v3299, %v3303
        %3306 = vmatprep.subr.bf16.mxu0 0
        %3307 = vmatpush1.bf16.xpose.msra.mxu0 %v3193
        %3308 = vmatprep.subr.bf16.mxu0 0
        %3309 = vmatpush1.bf16.xpose.msra.mxu0 0
        %3310 = vmatprep.subr.bf16.mxu0 0
        %3311 = vmatpush1.bf16.xpose.msra.mxu0 0
        %3312 = vmatprep.subr.bf16.mxu0 0
        %3313 = vmatpush1.bf16.xpose.msra.mxu0 0
        %3314 = vmatprep.subr.bf16.mxu0 0
        %3315 = vmatpush1.bf16.xpose.msra.mxu0 0
        %3316 = vmatprep.subr.bf16.mxu0 0
        %3317 = vmatpush1.bf16.xpose.msra.mxu0 0
        %3318 = vmatprep.subr.bf16.mxu0 0
        %3319 = vmatpush1.bf16.xpose.msra.mxu0 0
        %3320 = vmatprep.subr.bf16.mxu0 0
        %3321 = vmatpush1.bf16.xpose.msra.mxu0 0
        %3322 = vmatprep.subr.bf16.mxu0 0
        %3323 = vmatpush1.bf16.xpose.msra.mxu0 0
        %3324 = vmatprep.subr.bf16.mxu0 0
        %3325 = vmatpush1.bf16.xpose.msra.mxu0 0
        %3326 = vmatprep.subr.bf16.mxu0 0
        %3327 = vmatpush1.bf16.xpose.msra.mxu0 0
        %3328 = vmatprep.subr.bf16.mxu0 0
        %3329 = vmatpush1.bf16.xpose.msra.mxu0 0
        %3330 = vmatprep.subr.bf16.mxu0 0
        %3331 = vmatpush1.bf16.xpose.msra.mxu0 0
        %3332 = vmatprep.subr.bf16.mxu0 0
        %3333 = vmatpush1.bf16.xpose.msra.mxu0 0
        %3334 = vmatprep.subr.bf16.mxu0 0
        %3335 = vmatpush1.bf16.xpose.msra.mxu0 0
        %3336 = vmatprep.subr.bf16.mxu0 0
        %3337 = vmatpush1.bf16.xpose.msra.mxu0 0
        %3338 = vmatprep.mubr.bf16.mxu0 0
        %3339 = vmatmul.mubr.bf16.gmra.mrb[0].mxu0 %v3191
        %v3340 = vpop.f32.mrb[0].mxu0
        %v3341 = vadd.f32 0.0, %v3340
        %v3342 = vpop.f32.mrb[0].mxu0
        %v3343 = vpop.f32.mrb[0].mxu0
        %v3344 = vadd.f32 0.0, %v3343
        %v3345 = vpop.f32.mrb[0].mxu0
        %3346 = vdwg.mxu0
        %v3347 = vsel %vm1849, %v3341, -1e+30
        %v3348 = vsel %vm1850, %v3344, -1e+30
        %v3349 = vsel %vm1894, %v3347, -inf
        %3350 = vmax.xlane.f32.xlu0 %v3349
        %v3351 = vpop.xlane.xlu0 %3350
        %v3352 = vsel %vm1894, %v3348, -inf
        %3353 = vmax.xlane.f32.xlu0 %v3352
        %v3354 = vpop.xlane.xlu0 %3353
        %v3355 = vsub.f32 %v3347, %v3351
        %v3356 = vsub.f32 %v3348, %v3354
        %v3357 = vmul.f32 %v3355, 1.442695
        %v3358 = vpow.pop %v3357
        %v3359 = vmul.f32 %v3356, 1.442695
        %v3360 = vpow.pop %v3359
        %v3361 = vsel %vm1894, %v3358, 0.0
        %3362 = vadd.xlane.f32.xlu0 %v3361
        %v3363 = vpop.xlane.xlu0 %3362
        %v3364 = vsel %vm1894, %v3360, 0.0
        %3365 = vadd.xlane.f32.xlu0 %v3364
        %v3366 = vpop.xlane.xlu0 %3365
        %v3367 = vpack.c.bf16 %v3360, %v3358
        %v3369 = vsel %vm1894, %v3367, 0
        %3371 = vmatprep.subr.bf16.mxu0 0
        %3372 = vmatpush1.bf16.msra.mxu0 %v3195
        %3373 = vmatprep.subr.bf16.mxu0 0
        %3374 = vmatpush1.bf16.msra.mxu0 0
        %3375 = vmatprep.subr.bf16.mxu0 0
        %3376 = vmatpush1.bf16.msra.mxu0 0
        %3377 = vmatprep.subr.bf16.mxu0 0
        %3378 = vmatpush1.bf16.msra.mxu0 0
        %3379 = vmatprep.subr.bf16.mxu0 0
        %3380 = vmatpush1.bf16.msra.mxu0 0
        %3381 = vmatprep.subr.bf16.mxu0 0
        %3382 = vmatpush1.bf16.msra.mxu0 0
        %3383 = vmatprep.subr.bf16.mxu0 0
        %3384 = vmatpush1.bf16.msra.mxu0 0
        %3385 = vmatprep.subr.bf16.mxu0 0
        %3386 = vmatpush1.bf16.msra.mxu0 0
        %3387 = vmatprep.subr.bf16.mxu0 0
        %3388 = vmatpush1.bf16.msra.mxu0 0
        %3389 = vmatprep.subr.bf16.mxu0 0
        %3390 = vmatpush1.bf16.msra.mxu0 0
        %3391 = vmatprep.subr.bf16.mxu0 0
        %3392 = vmatpush1.bf16.msra.mxu0 0
        %3393 = vmatprep.subr.bf16.mxu0 0
        %3394 = vmatpush1.bf16.msra.mxu0 0
        %3395 = vmatprep.subr.bf16.mxu0 0
        %3396 = vmatpush1.bf16.msra.mxu0 0
        %3397 = vmatprep.subr.bf16.mxu0 0
        %3398 = vmatpush1.bf16.msra.mxu0 0
        %3399 = vmatprep.subr.bf16.mxu0 0
        %3400 = vmatpush1.bf16.msra.mxu0 0
        %3401 = vmatprep.subr.bf16.mxu0 0
        %3402 = vmatpush1.bf16.msra.mxu0 0
        %3403 = vmatprep.mubr.bf16.mxu0 0
        %3404 = vmatmul.mubr.bf16.gmra.mrb[0].mxu0 %v3369
        %v3405 = vpop.f32.mrb[0].mxu0
        %v3406 = vadd.f32 0.0, %v3405
        %v3407 = vpop.f32.mrb[0].mxu0
        %v3408 = vpop.f32.mrb[0].mxu0
        %v3409 = vadd.f32 0.0, %v3408
        %v3410 = vpop.f32.mrb[0].mxu0
        %3411 = vdwg.mxu0
        %v3412 = vrcp.pop %v3363
        %v3413 = vrcp.pop %v3366
        %v3414 = vmul.f32 %v3406, %v3412
        %v3415 = vmul.f32 %v3409, %v3413
        %v3416 = vpack.c.bf16 %v3305, %v3304
        %v3417 = vpack.c.bf16 %v3415, %v3414
        %v3418 = vunpack.c.l.bf16 %v2516
        %v3420 = vlaneseq
        %v3421 = vshrl.u32 %v3420, 7
        %v3422 = vsub.s32 0, %v3421
        %v3423 = vrot.slane %v3418, %v3422
        %v3424 = vlaneseq
        %v3425 = vshrl.u32 %v3424, 7
        %v3426 = vsub.s32 2, %v3425
        %v3427 = vrot.slane %v3418, %v3426
        %v3430 = vlaneseq
        %v3431 = vshrl.u32 %v3430, 7
        %v3432 = vsub.s32 0, %v3431
        %v3433 = vrot.slane %v3423, %v3432
        %v3434 = vlaneseq
        %v3435 = vshrl.u32 %v3434, 7
        %v3436 = vsub.s32 0, %v3435
        %v3437 = vrot.slane %v3427, %v3436
        %v3470 = vunpack.c.l.b16 %v2484
        %v3471 = vunpack.c.h.b16 %v2484
        %v3472 = vunpack.c.l.b16 %v2485
        %v3473 = vunpack.c.h.b16 %v2485
        %v3474 = vunpack.c.l.b16 %v2486
        %v3475 = vunpack.c.h.b16 %v2486
        %v3476 = vunpack.c.l.b16 %v2487
        %v3477 = vunpack.c.h.b16 %v2487
        %v3478 = vunpack.c.l.b16 %v2488
        %v3479 = vunpack.c.h.b16 %v2488
        %v3480 = vunpack.c.l.b16 %v2489
        %v3481 = vunpack.c.h.b16 %v2489
        %v3482 = vunpack.c.l.b16 %v2490
        %v3483 = vunpack.c.h.b16 %v2490
        %v3484 = vunpack.c.l.b16 %v2491
        %v3485 = vunpack.c.h.b16 %v2491
        %v3486 = vunpack.c.l.b16 %v2492
        %v3487 = vunpack.c.h.b16 %v2492
        %v3488 = vunpack.c.l.b16 %v2493
        %v3489 = vunpack.c.h.b16 %v2493
        %v3490 = vunpack.c.l.b16 %v2494
        %v3491 = vunpack.c.h.b16 %v2494
        %v3492 = vunpack.c.l.b16 %v2495
        %v3493 = vunpack.c.h.b16 %v2495
        %v3494 = vunpack.c.l.b16 %v2496
        %v3495 = vunpack.c.h.b16 %v2496
        %v3496 = vunpack.c.l.b16 %v2497
        %v3497 = vunpack.c.h.b16 %v2497
        %v3498 = vunpack.c.l.b16 %v2498
        %v3499 = vunpack.c.h.b16 %v2498
        %v3500 = vunpack.c.l.b16 %v2499
        %v3501 = vunpack.c.h.b16 %v2499
        %v3502 = vunpack.c.l.b16 %v2500
        %v3503 = vunpack.c.h.b16 %v2500
        %v3504 = vunpack.c.l.b16 %v2501
        %v3505 = vunpack.c.h.b16 %v2501
        %v3506 = vunpack.c.l.b16 %v2502
        %v3507 = vunpack.c.h.b16 %v2502
        %v3508 = vunpack.c.l.b16 %v2503
        %v3509 = vunpack.c.h.b16 %v2503
        %v3510 = vunpack.c.l.b16 %v2504
        %v3511 = vunpack.c.h.b16 %v2504
        %v3512 = vunpack.c.l.b16 %v2505
        %v3513 = vunpack.c.h.b16 %v2505
        %v3514 = vunpack.c.l.b16 %v2506
        %v3515 = vunpack.c.h.b16 %v2506
        %v3516 = vunpack.c.l.b16 %v2507
        %v3517 = vunpack.c.h.b16 %v2507
        %v3518 = vunpack.c.l.b16 %v2508
        %v3519 = vunpack.c.h.b16 %v2508
        %v3520 = vunpack.c.l.b16 %v2509
        %v3521 = vunpack.c.h.b16 %v2509
        %v3522 = vunpack.c.l.b16 %v2510
        %v3523 = vunpack.c.h.b16 %v2510
        %v3524 = vunpack.c.l.b16 %v2511
        %v3525 = vunpack.c.h.b16 %v2511
        %v3526 = vunpack.c.l.b16 %v2512
        %v3527 = vunpack.c.h.b16 %v2512
        %v3528 = vunpack.c.l.b16 %v2513
        %v3529 = vunpack.c.h.b16 %v2513
        %v3530 = vunpack.c.l.b16 %v2514
        %v3531 = vunpack.c.h.b16 %v2514
        %v3532 = vunpack.c.l.b16 %v2515
        %v3533 = vunpack.c.h.b16 %v2515
        %v3534 = vpack.c.b16 %v3472, %v3470
        %v3535 = vpack.c.b16 %v3473, %v3471
        %v3536 = vpack.c.b16 %v3476, %v3474
        %v3537 = vpack.c.b16 %v3477, %v3475
        %v3538 = vpack.c.b16 %v3480, %v3478
        %v3539 = vpack.c.b16 %v3481, %v3479
        %v3540 = vpack.c.b16 %v3484, %v3482
        %v3541 = vpack.c.b16 %v3485, %v3483
        %v3542 = vpack.c.b16 %v3488, %v3486
        %v3543 = vpack.c.b16 %v3489, %v3487
        %v3544 = vpack.c.b16 %v3492, %v3490
        %v3545 = vpack.c.b16 %v3493, %v3491
        %v3546 = vpack.c.b16 %v3496, %v3494
        %v3547 = vpack.c.b16 %v3497, %v3495
        %v3548 = vpack.c.b16 %v3500, %v3498
        %v3549 = vpack.c.b16 %v3501, %v3499
        %v3550 = vpack.c.b16 %v3504, %v3502
        %v3551 = vpack.c.b16 %v3505, %v3503
        %v3552 = vpack.c.b16 %v3508, %v3506
        %v3553 = vpack.c.b16 %v3509, %v3507
        %v3554 = vpack.c.b16 %v3512, %v3510
        %v3555 = vpack.c.b16 %v3513, %v3511
        %v3556 = vpack.c.b16 %v3516, %v3514
        %v3557 = vpack.c.b16 %v3517, %v3515
        %v3558 = vpack.c.b16 %v3520, %v3518
        %v3559 = vpack.c.b16 %v3521, %v3519
        %v3560 = vpack.c.b16 %v3524, %v3522
        %v3561 = vpack.c.b16 %v3525, %v3523
        %v3562 = vpack.c.b16 %v3528, %v3526
        %v3563 = vpack.c.b16 %v3529, %v3527
        %v3564 = vpack.c.b16 %v3532, %v3530
        %v3565 = vpack.c.b16 %v3533, %v3531
        %3598 = vmatprep.subr.bf16.mxu0 %v3535
        %3599 = vmatpush1.bf16.msra.mxu0 %v3534
        %3600 = vmatprep.subr.bf16.mxu0 %v3537
        %3601 = vmatpush1.bf16.msra.mxu0 %v3536
        %3602 = vmatprep.subr.bf16.mxu0 %v3539
        %3603 = vmatpush1.bf16.msra.mxu0 %v3538
        %3604 = vmatprep.subr.bf16.mxu0 %v3541
        %3605 = vmatpush1.bf16.msra.mxu0 %v3540
        %3606 = vmatprep.subr.bf16.mxu0 %v3543
        %3607 = vmatpush1.bf16.msra.mxu0 %v3542
        %3608 = vmatprep.subr.bf16.mxu0 %v3545
        %3609 = vmatpush1.bf16.msra.mxu0 %v3544
        %3610 = vmatprep.subr.bf16.mxu0 %v3547
        %3611 = vmatpush1.bf16.msra.mxu0 %v3546
        %3612 = vmatprep.subr.bf16.mxu0 %v3549
        %3613 = vmatpush1.bf16.msra.mxu0 %v3548
        %3614 = vmatprep.subr.bf16.mxu0 %v3551
        %3615 = vmatpush1.bf16.msra.mxu0 %v3550
        %3616 = vmatprep.subr.bf16.mxu0 %v3553
        %3617 = vmatpush1.bf16.msra.mxu0 %v3552
        %3618 = vmatprep.subr.bf16.mxu0 %v3555
        %3619 = vmatpush1.bf16.msra.mxu0 %v3554
        %3620 = vmatprep.subr.bf16.mxu0 %v3557
        %3621 = vmatpush1.bf16.msra.mxu0 %v3556
        %3622 = vmatprep.subr.bf16.mxu0 %v3559
        %3623 = vmatpush1.bf16.msra.mxu0 %v3558
        %3624 = vmatprep.subr.bf16.mxu0 %v3561
        %3625 = vmatpush1.bf16.msra.mxu0 %v3560
        %3626 = vmatprep.subr.bf16.mxu0 %v3563
        %3627 = vmatpush1.bf16.msra.mxu0 %v3562
        %3628 = vmatprep.subr.bf16.mxu0 %v3565
        %3629 = vmatpush1.bf16.msra.mxu0 %v3564
        %3630 = vmatprep.mubr.bf16.mxu0 %v3417
        %3631 = vmatmul.mubr.bf16.gmra.mrb[0].mxu0 %v3416
        %v3632 = vpop.f32.mrb[0].mxu0
        %v3633 = vadd.f32 %v3433, %v3632
        %v3634 = vpop.f32.mrb[0].mxu0
        %v3635 = vadd.f32 %v3437, %v3634
        %v3636 = vpop.f32.mrb[0].mxu0
        %v3637 = vadd.f32 %v3433, %v3636
        %v3638 = vpop.f32.mrb[0].mxu0
        %v3639 = vadd.f32 %v3437, %v3638
        %3640 = vdwg.mxu0
        %v3641 = vpack.c.bf16 %v3637, %v3633
        %v3642 = vpack.c.bf16 %v3639, %v3635
        %v3643 = vld [vmem:[#allocation19] sm:$0xff]
        %v3644 = vld [vmem:[#allocation19 + $0x8] sm:$0xff]
        %v3645 = vld [vmem:[#allocation19 + $0x10] sm:$0xff]
        %v3646 = vld [vmem:[#allocation19 + $0x18] sm:$0xff]
        %v3647 = vld [vmem:[#allocation19 + $0x20] sm:$0xff]
        %v3648 = vld [vmem:[#allocation19 + $0x28] sm:$0xff]
        %v3649 = vld [vmem:[#allocation19 + $0x30] sm:$0xff]
        %v3650 = vld [vmem:[#allocation19 + $0x38] sm:$0xff]
        %v3651 = vld [vmem:[#allocation19 + $0x40] sm:$0xff]
        %v3652 = vld [vmem:[#allocation19 + $0x48] sm:$0xff]
        %v3653 = vld [vmem:[#allocation19 + $0x50] sm:$0xff]
        %v3654 = vld [vmem:[#allocation19 + $0x58] sm:$0xff]
        %v3655 = vld [vmem:[#allocation19 + $0x60] sm:$0xff]
        %v3656 = vld [vmem:[#allocation19 + $0x68] sm:$0xff]
        %v3657 = vld [vmem:[#allocation19 + $0x70] sm:$0xff]
        %v3658 = vld [vmem:[#allocation19 + $0x78] sm:$0xff]
        %v3659 = vld [vmem:[#allocation19 + $0x80] sm:$0xff]
        %v3660 = vld [vmem:[#allocation19 + $0x88] sm:$0xff]
        %v3661 = vld [vmem:[#allocation19 + $0x90] sm:$0xff]
        %v3662 = vld [vmem:[#allocation19 + $0x98] sm:$0xff]
        %v3663 = vld [vmem:[#allocation19 + $0xa0] sm:$0xff]
        %v3664 = vld [vmem:[#allocation19 + $0xa8] sm:$0xff]
        %v3665 = vld [vmem:[#allocation19 + $0xb0] sm:$0xff]
        %v3666 = vld [vmem:[#allocation19 + $0xb8] sm:$0xff]
        %v3667 = vld [vmem:[#allocation19 + $0xc0] sm:$0xff]
        %v3668 = vld [vmem:[#allocation19 + $0xc8] sm:$0xff]
        %v3669 = vld [vmem:[#allocation19 + $0xd0] sm:$0xff]
        %v3670 = vld [vmem:[#allocation19 + $0xd8] sm:$0xff]
        %v3671 = vld [vmem:[#allocation19 + $0xe0] sm:$0xff]
        %v3672 = vld [vmem:[#allocation19 + $0xe8] sm:$0xff]
        %v3673 = vld [vmem:[#allocation19 + $0xf0] sm:$0xff]
        %v3674 = vld [vmem:[#allocation19 + $0xf8] sm:$0xff]
        %v3675 = vld [vmem:[#allocation19 + $0x100] sm:$0xff]
        %v3676 = vld [vmem:[#allocation19 + $0x108] sm:$0xff]
        %v3677 = vld [vmem:[#allocation19 + $0x110] sm:$0xff]
        %v3678 = vld [vmem:[#allocation19 + $0x118] sm:$0xff]
        %v3679 = vld [vmem:[#allocation19 + $0x120] sm:$0xff]
        %v3680 = vld [vmem:[#allocation19 + $0x128] sm:$0xff]
        %v3681 = vld [vmem:[#allocation19 + $0x130] sm:$0xff]
        %v3682 = vld [vmem:[#allocation19 + $0x138] sm:$0xff]
        %v3683 = vld [vmem:[#allocation19 + $0x140] sm:$0xff]
        %v3684 = vld [vmem:[#allocation19 + $0x148] sm:$0xff]
        %v3685 = vld [vmem:[#allocation19 + $0x150] sm:$0xff]
        %v3686 = vld [vmem:[#allocation19 + $0x158] sm:$0xff]
        %v3687 = vld [vmem:[#allocation19 + $0x160] sm:$0xff]
        %v3688 = vld [vmem:[#allocation19 + $0x168] sm:$0xff]
        %v3689 = vld [vmem:[#allocation19 + $0x170] sm:$0xff]
        %v3690 = vld [vmem:[#allocation19 + $0x178] sm:$0xff]
        %v3691 = vld [vmem:[#allocation19 + $0x180] sm:$0xff]
        %v3692 = vld [vmem:[#allocation19 + $0x188] sm:$0xff]
        %v3693 = vld [vmem:[#allocation19 + $0x190] sm:$0xff]
        %v3694 = vld [vmem:[#allocation19 + $0x198] sm:$0xff]
        %v3695 = vld [vmem:[#allocation19 + $0x1a0] sm:$0xff]
        %v3696 = vld [vmem:[#allocation19 + $0x1a8] sm:$0xff]
        %v3697 = vld [vmem:[#allocation19 + $0x1b0] sm:$0xff]
        %v3698 = vld [vmem:[#allocation19 + $0x1b8] sm:$0xff]
        %v3699 = vld [vmem:[#allocation19 + $0x1c0] sm:$0xff]
        %v3700 = vld [vmem:[#allocation19 + $0x1c8] sm:$0xff]
        %v3701 = vld [vmem:[#allocation19 + $0x1d0] sm:$0xff]
        %v3702 = vld [vmem:[#allocation19 + $0x1d8] sm:$0xff]
        %v3703 = vld [vmem:[#allocation19 + $0x1e0] sm:$0xff]
        %v3704 = vld [vmem:[#allocation19 + $0x1e8] sm:$0xff]
        %v3705 = vld [vmem:[#allocation19 + $0x1f0] sm:$0xff]
        %v3706 = vld [vmem:[#allocation19 + $0x1f8] sm:$0xff]
        %v3707 = vld [vmem:[%s22] sm:$0xf]
        %v3708 = vunpack.c.l.bf16 %v3707
        %v3710 = vlaneseq
        %v3711 = vshrl.u32 %v3710, 7
        %v3712 = vsub.s32 0, %v3711
        %v3713 = vrot.slane %v3708, %v3712
        %v3714 = vlaneseq
        %v3715 = vshrl.u32 %v3714, 7
        %v3716 = vsub.s32 2, %v3715
        %v3717 = vrot.slane %v3708, %v3716
        %v3718 = vlaneseq
        %v3719 = vshrl.u32 %v3718, 7
        %v3720 = vsub.s32 4, %v3719
        %v3721 = vrot.slane %v3708, %v3720
        %v3722 = vlaneseq
        %v3723 = vshrl.u32 %v3722, 7
        %v3724 = vsub.s32 6, %v3723
        %v3725 = vrot.slane %v3708, %v3724
        %v3730 = vlaneseq
        %v3731 = vshrl.u32 %v3730, 7
        %v3732 = vsub.s32 0, %v3731
        %v3733 = vrot.slane %v3713, %v3732
        %v3734 = vlaneseq
        %v3735 = vshrl.u32 %v3734, 7
        %v3736 = vsub.s32 0, %v3735
        %v3737 = vrot.slane %v3717, %v3736
        %v3738 = vlaneseq
        %v3739 = vshrl.u32 %v3738, 7
        %v3740 = vsub.s32 0, %v3739
        %v3741 = vrot.slane %v3721, %v3740
        %v3742 = vlaneseq
        %v3743 = vshrl.u32 %v3742, 7
        %v3744 = vsub.s32 0, %v3743
        %v3745 = vrot.slane %v3725, %v3744
        %v3810 = vunpack.c.l.b16 %v3643
        %v3811 = vunpack.c.h.b16 %v3643
        %v3812 = vunpack.c.l.b16 %v3644
        %v3813 = vunpack.c.h.b16 %v3644
        %v3814 = vunpack.c.l.b16 %v3645
        %v3815 = vunpack.c.h.b16 %v3645
        %v3816 = vunpack.c.l.b16 %v3646
        %v3817 = vunpack.c.h.b16 %v3646
        %v3818 = vunpack.c.l.b16 %v3647
        %v3819 = vunpack.c.h.b16 %v3647
        %v3820 = vunpack.c.l.b16 %v3648
        %v3821 = vunpack.c.h.b16 %v3648
        %v3822 = vunpack.c.l.b16 %v3649
        %v3823 = vunpack.c.h.b16 %v3649
        %v3824 = vunpack.c.l.b16 %v3650
        %v3825 = vunpack.c.h.b16 %v3650
        %v3826 = vunpack.c.l.b16 %v3651
        %v3827 = vunpack.c.h.b16 %v3651
        %v3828 = vunpack.c.l.b16 %v3652
        %v3829 = vunpack.c.h.b16 %v3652
        %v3830 = vunpack.c.l.b16 %v3653
        %v3831 = vunpack.c.h.b16 %v3653
        %v3832 = vunpack.c.l.b16 %v3654
        %v3833 = vunpack.c.h.b16 %v3654
        %v3834 = vunpack.c.l.b16 %v3655
        %v3835 = vunpack.c.h.b16 %v3655
        %v3836 = vunpack.c.l.b16 %v3656
        %v3837 = vunpack.c.h.b16 %v3656
        %v3838 = vunpack.c.l.b16 %v3657
        %v3839 = vunpack.c.h.b16 %v3657
        %v3840 = vunpack.c.l.b16 %v3658
        %v3841 = vunpack.c.h.b16 %v3658
        %v3842 = vunpack.c.l.b16 %v3659
        %v3843 = vunpack.c.h.b16 %v3659
        %v3844 = vunpack.c.l.b16 %v3660
        %v3845 = vunpack.c.h.b16 %v3660
        %v3846 = vunpack.c.l.b16 %v3661
        %v3847 = vunpack.c.h.b16 %v3661
        %v3848 = vunpack.c.l.b16 %v3662
        %v3849 = vunpack.c.h.b16 %v3662
        %v3850 = vunpack.c.l.b16 %v3663
        %v3851 = vunpack.c.h.b16 %v3663
        %v3852 = vunpack.c.l.b16 %v3664
        %v3853 = vunpack.c.h.b16 %v3664
        %v3854 = vunpack.c.l.b16 %v3665
        %v3855 = vunpack.c.h.b16 %v3665
        %v3856 = vunpack.c.l.b16 %v3666
        %v3857 = vunpack.c.h.b16 %v3666
        %v3858 = vunpack.c.l.b16 %v3667
        %v3859 = vunpack.c.h.b16 %v3667
        %v3860 = vunpack.c.l.b16 %v3668
        %v3861 = vunpack.c.h.b16 %v3668
        %v3862 = vunpack.c.l.b16 %v3669
        %v3863 = vunpack.c.h.b16 %v3669
        %v3864 = vunpack.c.l.b16 %v3670
        %v3865 = vunpack.c.h.b16 %v3670
        %v3866 = vunpack.c.l.b16 %v3671
        %v3867 = vunpack.c.h.b16 %v3671
        %v3868 = vunpack.c.l.b16 %v3672
        %v3869 = vunpack.c.h.b16 %v3672
        %v3870 = vunpack.c.l.b16 %v3673
        %v3871 = vunpack.c.h.b16 %v3673
        %v3872 = vunpack.c.l.b16 %v3674
        %v3873 = vunpack.c.h.b16 %v3674
        %v3874 = vunpack.c.l.b16 %v3675
        %v3875 = vunpack.c.h.b16 %v3675
        %v3876 = vunpack.c.l.b16 %v3676
        %v3877 = vunpack.c.h.b16 %v3676
        %v3878 = vunpack.c.l.b16 %v3677
        %v3879 = vunpack.c.h.b16 %v3677
        %v3880 = vunpack.c.l.b16 %v3678
        %v3881 = vunpack.c.h.b16 %v3678
        %v3882 = vunpack.c.l.b16 %v3679
        %v3883 = vunpack.c.h.b16 %v3679
        %v3884 = vunpack.c.l.b16 %v3680
        %v3885 = vunpack.c.h.b16 %v3680
        %v3886 = vunpack.c.l.b16 %v3681
        %v3887 = vunpack.c.h.b16 %v3681
        %v3888 = vunpack.c.l.b16 %v3682
        %v3889 = vunpack.c.h.b16 %v3682
        %v3890 = vunpack.c.l.b16 %v3683
        %v3891 = vunpack.c.h.b16 %v3683
        %v3892 = vunpack.c.l.b16 %v3684
        %v3893 = vunpack.c.h.b16 %v3684
        %v3894 = vunpack.c.l.b16 %v3685
        %v3895 = vunpack.c.h.b16 %v3685
        %v3896 = vunpack.c.l.b16 %v3686
        %v3897 = vunpack.c.h.b16 %v3686
        %v3898 = vunpack.c.l.b16 %v3687
        %v3899 = vunpack.c.h.b16 %v3687
        %v3900 = vunpack.c.l.b16 %v3688
        %v3901 = vunpack.c.h.b16 %v3688
        %v3902 = vunpack.c.l.b16 %v3689
        %v3903 = vunpack.c.h.b16 %v3689
        %v3904 = vunpack.c.l.b16 %v3690
        %v3905 = vunpack.c.h.b16 %v3690
        %v3906 = vunpack.c.l.b16 %v3691
        %v3907 = vunpack.c.h.b16 %v3691
        %v3908 = vunpack.c.l.b16 %v3692
        %v3909 = vunpack.c.h.b16 %v3692
        %v3910 = vunpack.c.l.b16 %v3693
        %v3911 = vunpack.c.h.b16 %v3693
        %v3912 = vunpack.c.l.b16 %v3694
        %v3913 = vunpack.c.h.b16 %v3694
        %v3914 = vunpack.c.l.b16 %v3695
        %v3915 = vunpack.c.h.b16 %v3695
        %v3916 = vunpack.c.l.b16 %v3696
        %v3917 = vunpack.c.h.b16 %v3696
        %v3918 = vunpack.c.l.b16 %v3697
        %v3919 = vunpack.c.h.b16 %v3697
        %v3920 = vunpack.c.l.b16 %v3698
        %v3921 = vunpack.c.h.b16 %v3698
        %v3922 = vunpack.c.l.b16 %v3699
        %v3923 = vunpack.c.h.b16 %v3699
        %v3924 = vunpack.c.l.b16 %v3700
        %v3925 = vunpack.c.h.b16 %v3700
        %v3926 = vunpack.c.l.b16 %v3701
        %v3927 = vunpack.c.h.b16 %v3701
        %v3928 = vunpack.c.l.b16 %v3702
        %v3929 = vunpack.c.h.b16 %v3702
        %v3930 = vunpack.c.l.b16 %v3703
        %v3931 = vunpack.c.h.b16 %v3703
        %v3932 = vunpack.c.l.b16 %v3704
        %v3933 = vunpack.c.h.b16 %v3704
        %v3934 = vunpack.c.l.b16 %v3705
        %v3935 = vunpack.c.h.b16 %v3705
        %v3936 = vunpack.c.l.b16 %v3706
        %v3937 = vunpack.c.h.b16 %v3706
        %v3938 = vpack.c.b16 %v3814, %v3810
        %v3939 = vpack.c.b16 %v3815, %v3811
        %v3940 = vpack.c.b16 %v3816, %v3812
        %v3941 = vpack.c.b16 %v3817, %v3813
        %v3942 = vpack.c.b16 %v3822, %v3818
        %v3943 = vpack.c.b16 %v3823, %v3819
        %v3944 = vpack.c.b16 %v3824, %v3820
        %v3945 = vpack.c.b16 %v3825, %v3821
        %v3946 = vpack.c.b16 %v3830, %v3826
        %v3947 = vpack.c.b16 %v3831, %v3827
        %v3948 = vpack.c.b16 %v3832, %v3828
        %v3949 = vpack.c.b16 %v3833, %v3829
        %v3950 = vpack.c.b16 %v3838, %v3834
        %v3951 = vpack.c.b16 %v3839, %v3835
        %v3952 = vpack.c.b16 %v3840, %v3836
        %v3953 = vpack.c.b16 %v3841, %v3837
        %v3954 = vpack.c.b16 %v3846, %v3842
        %v3955 = vpack.c.b16 %v3847, %v3843
        %v3956 = vpack.c.b16 %v3848, %v3844
        %v3957 = vpack.c.b16 %v3849, %v3845
        %v3958 = vpack.c.b16 %v3854, %v3850
        %v3959 = vpack.c.b16 %v3855, %v3851
        %v3960 = vpack.c.b16 %v3856, %v3852
        %v3961 = vpack.c.b16 %v3857, %v3853
        %v3962 = vpack.c.b16 %v3862, %v3858
        %v3963 = vpack.c.b16 %v3863, %v3859
        %v3964 = vpack.c.b16 %v3864, %v3860
        %v3965 = vpack.c.b16 %v3865, %v3861
        %v3966 = vpack.c.b16 %v3870, %v3866
        %v3967 = vpack.c.b16 %v3871, %v3867
        %v3968 = vpack.c.b16 %v3872, %v3868
        %v3969 = vpack.c.b16 %v3873, %v3869
        %v3970 = vpack.c.b16 %v3878, %v3874
        %v3971 = vpack.c.b16 %v3879, %v3875
        %v3972 = vpack.c.b16 %v3880, %v3876
        %v3973 = vpack.c.b16 %v3881, %v3877
        %v3974 = vpack.c.b16 %v3886, %v3882
        %v3975 = vpack.c.b16 %v3887, %v3883
        %v3976 = vpack.c.b16 %v3888, %v3884
        %v3977 = vpack.c.b16 %v3889, %v3885
        %v3978 = vpack.c.b16 %v3894, %v3890
        %v3979 = vpack.c.b16 %v3895, %v3891
        %v3980 = vpack.c.b16 %v3896, %v3892
        %v3981 = vpack.c.b16 %v3897, %v3893
        %v3982 = vpack.c.b16 %v3902, %v3898
        %v3983 = vpack.c.b16 %v3903, %v3899
        %v3984 = vpack.c.b16 %v3904, %v3900
        %v3985 = vpack.c.b16 %v3905, %v3901
        %v3986 = vpack.c.b16 %v3910, %v3906
        %v3987 = vpack.c.b16 %v3911, %v3907
        %v3988 = vpack.c.b16 %v3912, %v3908
        %v3989 = vpack.c.b16 %v3913, %v3909
        %v3990 = vpack.c.b16 %v3918, %v3914
        %v3991 = vpack.c.b16 %v3919, %v3915
        %v3992 = vpack.c.b16 %v3920, %v3916
        %v3993 = vpack.c.b16 %v3921, %v3917
        %v3994 = vpack.c.b16 %v3926, %v3922
        %v3995 = vpack.c.b16 %v3927, %v3923
        %v3996 = vpack.c.b16 %v3928, %v3924
        %v3997 = vpack.c.b16 %v3929, %v3925
        %v3998 = vpack.c.b16 %v3934, %v3930
        %v3999 = vpack.c.b16 %v3935, %v3931
        %v4000 = vpack.c.b16 %v3936, %v3932
        %v4001 = vpack.c.b16 %v3937, %v3933
        %4066 = vmatprep.subr.bf16.mxu0 %v3939
        %4067 = vmatpush1.bf16.msra.mxu0 %v3938
        %4068 = vmatprep.subr.bf16.mxu0 %v3943
        %4069 = vmatpush1.bf16.msra.mxu0 %v3942
        %4070 = vmatprep.subr.bf16.mxu0 %v3947
        %4071 = vmatpush1.bf16.msra.mxu0 %v3946
        %4072 = vmatprep.subr.bf16.mxu0 %v3951
        %4073 = vmatpush1.bf16.msra.mxu0 %v3950
        %4074 = vmatprep.subr.bf16.mxu0 %v3955
        %4075 = vmatpush1.bf16.msra.mxu0 %v3954
        %4076 = vmatprep.subr.bf16.mxu0 %v3959
        %4077 = vmatpush1.bf16.msra.mxu0 %v3958
        %4078 = vmatprep.subr.bf16.mxu0 %v3963
        %4079 = vmatpush1.bf16.msra.mxu0 %v3962
        %4080 = vmatprep.subr.bf16.mxu0 %v3967
        %4081 = vmatpush1.bf16.msra.mxu0 %v3966
        %4082 = vmatprep.subr.bf16.mxu0 %v3971
        %4083 = vmatpush1.bf16.msra.mxu0 %v3970
        %4084 = vmatprep.subr.bf16.mxu0 %v3975
        %4085 = vmatpush1.bf16.msra.mxu0 %v3974
        %4086 = vmatprep.subr.bf16.mxu0 %v3979
        %4087 = vmatpush1.bf16.msra.mxu0 %v3978
        %4088 = vmatprep.subr.bf16.mxu0 %v3983
        %4089 = vmatpush1.bf16.msra.mxu0 %v3982
        %4090 = vmatprep.subr.bf16.mxu0 %v3987
        %4091 = vmatpush1.bf16.msra.mxu0 %v3986
        %4092 = vmatprep.subr.bf16.mxu0 %v3991
        %4093 = vmatpush1.bf16.msra.mxu0 %v3990
        %4094 = vmatprep.subr.bf16.mxu0 %v3995
        %4095 = vmatpush1.bf16.msra.mxu0 %v3994
        %4096 = vmatprep.subr.bf16.mxu0 %v3999
        %4097 = vmatpush1.bf16.msra.mxu0 %v3998
        %4098 = vmatprep.mubr.bf16.mxu0 %v3642
        %4099 = vmatmul.mubr.bf16.gmra.mrb[0].mxu0 %v3641
        %v4100 = vpop.f32.mrb[0].mxu0
        %v4101 = vadd.f32 %v3733, %v4100
        %v4102 = vpop.f32.mrb[0].mxu0
        %v4103 = vadd.f32 %v3737, %v4102
        %v4104 = vpop.f32.mrb[0].mxu0
        %v4105 = vadd.f32 %v3733, %v4104
        %v4106 = vpop.f32.mrb[0].mxu0
        %v4107 = vadd.f32 %v3737, %v4106
        %4108 = vdwg.mxu0
        %4109 = vmatprep.subr.bf16.mxu0 %v3941
        %4110 = vmatpush1.bf16.msra.mxu0 %v3940
        %4111 = vmatprep.subr.bf16.mxu0 %v3945
        %4112 = vmatpush1.bf16.msra.mxu0 %v3944
        %4113 = vmatprep.subr.bf16.mxu0 %v3949
        %4114 = vmatpush1.bf16.msra.mxu0 %v3948
        %4115 = vmatprep.subr.bf16.mxu0 %v3953
        %4116 = vmatpush1.bf16.msra.mxu0 %v3952
        %4117 = vmatprep.subr.bf16.mxu0 %v3957
        %4118 = vmatpush1.bf16.msra.mxu0 %v3956
        %4119 = vmatprep.subr.bf16.mxu0 %v3961
        %4120 = vmatpush1.bf16.msra.mxu0 %v3960
        %4121 = vmatprep.subr.bf16.mxu0 %v3965
        %4122 = vmatpush1.bf16.msra.mxu0 %v3964
        %4123 = vmatprep.subr.bf16.mxu0 %v3969
        %4124 = vmatpush1.bf16.msra.mxu0 %v3968
        %4125 = vmatprep.subr.bf16.mxu0 %v3973
        %4126 = vmatpush1.bf16.msra.mxu0 %v3972
        %4127 = vmatprep.subr.bf16.mxu0 %v3977
        %4128 = vmatpush1.bf16.msra.mxu0 %v3976
        %4129 = vmatprep.subr.bf16.mxu0 %v3981
        %4130 = vmatpush1.bf16.msra.mxu0 %v3980
        %4131 = vmatprep.subr.bf16.mxu0 %v3985
        %4132 = vmatpush1.bf16.msra.mxu0 %v3984
        %4133 = vmatprep.subr.bf16.mxu0 %v3989
        %4134 = vmatpush1.bf16.msra.mxu0 %v3988
        %4135 = vmatprep.subr.bf16.mxu0 %v3993
        %4136 = vmatpush1.bf16.msra.mxu0 %v3992
        %4137 = vmatprep.subr.bf16.mxu0 %v3997
        %4138 = vmatpush1.bf16.msra.mxu0 %v3996
        %4139 = vmatprep.subr.bf16.mxu0 %v4001
        %4140 = vmatpush1.bf16.msra.mxu0 %v4000
        %4141 = vmatprep.mubr.bf16.mxu0 %v3642
        %4142 = vmatmul.mubr.bf16.gmra.mrb[0].mxu0 %v3641
        %v4143 = vpop.f32.mrb[0].mxu0
        %v4144 = vadd.f32 %v3741, %v4143
        %v4145 = vpop.f32.mrb[0].mxu0
        %v4146 = vadd.f32 %v3745, %v4145
        %v4147 = vpop.f32.mrb[0].mxu0
        %v4148 = vadd.f32 %v3741, %v4147
        %v4149 = vpop.f32.mrb[0].mxu0
        %v4150 = vadd.f32 %v3745, %v4149
        %4151 = vdwg.mxu0
        %v4152 = vmax.f32 %v4101, 0.0
        %v4153 = vmax.f32 %v4103, 0.0
        %v4154 = vmax.f32 %v4144, 0.0
        %v4155 = vmax.f32 %v4146, 0.0
        %v4156 = vmax.f32 %v4105, 0.0
        %v4157 = vmax.f32 %v4107, 0.0
        %v4158 = vmax.f32 %v4148, 0.0
        %v4159 = vmax.f32 %v4150, 0.0
        %v4160 = vpack.c.bf16 %v4156, %v4152
        %v4161 = vpack.c.bf16 %v4157, %v4153
        %v4162 = vpack.c.bf16 %v4158, %v4154
        %v4163 = vpack.c.bf16 %v4159, %v4155
        %v4164 = vld [vmem:[#allocation20] sm:$0xff]
        %v4165 = vld [vmem:[#allocation20 + $0x8] sm:$0xff]
        %v4166 = vld [vmem:[#allocation20 + $0x10] sm:$0xff]
        %v4167 = vld [vmem:[#allocation20 + $0x18] sm:$0xff]
        %v4168 = vld [vmem:[#allocation20 + $0x20] sm:$0xff]
        %v4169 = vld [vmem:[#allocation20 + $0x28] sm:$0xff]
        %v4170 = vld [vmem:[#allocation20 + $0x30] sm:$0xff]
        %v4171 = vld [vmem:[#allocation20 + $0x38] sm:$0xff]
        %v4172 = vld [vmem:[#allocation20 + $0x40] sm:$0xff]
        %v4173 = vld [vmem:[#allocation20 + $0x48] sm:$0xff]
        %v4174 = vld [vmem:[#allocation20 + $0x50] sm:$0xff]
        %v4175 = vld [vmem:[#allocation20 + $0x58] sm:$0xff]
        %v4176 = vld [vmem:[#allocation20 + $0x60] sm:$0xff]
        %v4177 = vld [vmem:[#allocation20 + $0x68] sm:$0xff]
        %v4178 = vld [vmem:[#allocation20 + $0x70] sm:$0xff]
        %v4179 = vld [vmem:[#allocation20 + $0x78] sm:$0xff]
        %v4180 = vld [vmem:[#allocation20 + $0x80] sm:$0xff]
        %v4181 = vld [vmem:[#allocation20 + $0x88] sm:$0xff]
        %v4182 = vld [vmem:[#allocation20 + $0x90] sm:$0xff]
        %v4183 = vld [vmem:[#allocation20 + $0x98] sm:$0xff]
        %v4184 = vld [vmem:[#allocation20 + $0xa0] sm:$0xff]
        %v4185 = vld [vmem:[#allocation20 + $0xa8] sm:$0xff]
        %v4186 = vld [vmem:[#allocation20 + $0xb0] sm:$0xff]
        %v4187 = vld [vmem:[#allocation20 + $0xb8] sm:$0xff]
        %v4188 = vld [vmem:[#allocation20 + $0xc0] sm:$0xff]
        %v4189 = vld [vmem:[#allocation20 + $0xc8] sm:$0xff]
        %v4190 = vld [vmem:[#allocation20 + $0xd0] sm:$0xff]
        %v4191 = vld [vmem:[#allocation20 + $0xd8] sm:$0xff]
        %v4192 = vld [vmem:[#allocation20 + $0xe0] sm:$0xff]
        %v4193 = vld [vmem:[#allocation20 + $0xe8] sm:$0xff]
        %v4194 = vld [vmem:[#allocation20 + $0xf0] sm:$0xff]
        %v4195 = vld [vmem:[#allocation20 + $0xf8] sm:$0xff]
        %v4196 = vld [vmem:[#allocation20 + $0x100] sm:$0xff]
        %v4197 = vld [vmem:[#allocation20 + $0x108] sm:$0xff]
        %v4198 = vld [vmem:[#allocation20 + $0x110] sm:$0xff]
        %v4199 = vld [vmem:[#allocation20 + $0x118] sm:$0xff]
        %v4200 = vld [vmem:[#allocation20 + $0x120] sm:$0xff]
        %v4201 = vld [vmem:[#allocation20 + $0x128] sm:$0xff]
        %v4202 = vld [vmem:[#allocation20 + $0x130] sm:$0xff]
        %v4203 = vld [vmem:[#allocation20 + $0x138] sm:$0xff]
        %v4204 = vld [vmem:[#allocation20 + $0x140] sm:$0xff]
        %v4205 = vld [vmem:[#allocation20 + $0x148] sm:$0xff]
        %v4206 = vld [vmem:[#allocation20 + $0x150] sm:$0xff]
        %v4207 = vld [vmem:[#allocation20 + $0x158] sm:$0xff]
        %v4208 = vld [vmem:[#allocation20 + $0x160] sm:$0xff]
        %v4209 = vld [vmem:[#allocation20 + $0x168] sm:$0xff]
        %v4210 = vld [vmem:[#allocation20 + $0x170] sm:$0xff]
        %v4211 = vld [vmem:[#allocation20 + $0x178] sm:$0xff]
        %v4212 = vld [vmem:[#allocation20 + $0x180] sm:$0xff]
        %v4213 = vld [vmem:[#allocation20 + $0x188] sm:$0xff]
        %v4214 = vld [vmem:[#allocation20 + $0x190] sm:$0xff]
        %v4215 = vld [vmem:[#allocation20 + $0x198] sm:$0xff]
        %v4216 = vld [vmem:[#allocation20 + $0x1a0] sm:$0xff]
        %v4217 = vld [vmem:[#allocation20 + $0x1a8] sm:$0xff]
        %v4218 = vld [vmem:[#allocation20 + $0x1b0] sm:$0xff]
        %v4219 = vld [vmem:[#allocation20 + $0x1b8] sm:$0xff]
        %v4220 = vld [vmem:[#allocation20 + $0x1c0] sm:$0xff]
        %v4221 = vld [vmem:[#allocation20 + $0x1c8] sm:$0xff]
        %v4222 = vld [vmem:[#allocation20 + $0x1d0] sm:$0xff]
        %v4223 = vld [vmem:[#allocation20 + $0x1d8] sm:$0xff]
        %v4224 = vld [vmem:[#allocation20 + $0x1e0] sm:$0xff]
        %v4225 = vld [vmem:[#allocation20 + $0x1e8] sm:$0xff]
        %v4226 = vld [vmem:[#allocation20 + $0x1f0] sm:$0xff]
        %v4227 = vld [vmem:[#allocation20 + $0x1f8] sm:$0xff]
        %v4228 = vld [vmem:[%s24] sm:$0x3]
        %v4229 = vunpack.c.l.bf16 %v4228
        %v4231 = vlaneseq
        %v4232 = vshrl.u32 %v4231, 7
        %v4233 = vsub.s32 0, %v4232
        %v4234 = vrot.slane %v4229, %v4233
        %v4235 = vlaneseq
        %v4236 = vshrl.u32 %v4235, 7
        %v4237 = vsub.s32 2, %v4236
        %v4238 = vrot.slane %v4229, %v4237
        %v4241 = vlaneseq
        %v4242 = vshrl.u32 %v4241, 7
        %v4243 = vsub.s32 0, %v4242
        %v4244 = vrot.slane %v4234, %v4243
        %v4245 = vlaneseq
        %v4246 = vshrl.u32 %v4245, 7
        %v4247 = vsub.s32 0, %v4246
        %v4248 = vrot.slane %v4238, %v4247
        %v4313 = vunpack.c.l.b16 %v4164
        %v4314 = vunpack.c.h.b16 %v4164
        %v4315 = vunpack.c.l.b16 %v4165
        %v4316 = vunpack.c.h.b16 %v4165
        %v4317 = vunpack.c.l.b16 %v4166
        %v4318 = vunpack.c.h.b16 %v4166
        %v4319 = vunpack.c.l.b16 %v4167
        %v4320 = vunpack.c.h.b16 %v4167
        %v4321 = vunpack.c.l.b16 %v4168
        %v4322 = vunpack.c.h.b16 %v4168
        %v4323 = vunpack.c.l.b16 %v4169
        %v4324 = vunpack.c.h.b16 %v4169
        %v4325 = vunpack.c.l.b16 %v4170
        %v4326 = vunpack.c.h.b16 %v4170
        %v4327 = vunpack.c.l.b16 %v4171
        %v4328 = vunpack.c.h.b16 %v4171
        %v4329 = vunpack.c.l.b16 %v4172
        %v4330 = vunpack.c.h.b16 %v4172
        %v4331 = vunpack.c.l.b16 %v4173
        %v4332 = vunpack.c.h.b16 %v4173
        %v4333 = vunpack.c.l.b16 %v4174
        %v4334 = vunpack.c.h.b16 %v4174
        %v4335 = vunpack.c.l.b16 %v4175
        %v4336 = vunpack.c.h.b16 %v4175
        %v4337 = vunpack.c.l.b16 %v4176
        %v4338 = vunpack.c.h.b16 %v4176
        %v4339 = vunpack.c.l.b16 %v4177
        %v4340 = vunpack.c.h.b16 %v4177
        %v4341 = vunpack.c.l.b16 %v4178
        %v4342 = vunpack.c.h.b16 %v4178
        %v4343 = vunpack.c.l.b16 %v4179
        %v4344 = vunpack.c.h.b16 %v4179
        %v4345 = vunpack.c.l.b16 %v4180
        %v4346 = vunpack.c.h.b16 %v4180
        %v4347 = vunpack.c.l.b16 %v4181
        %v4348 = vunpack.c.h.b16 %v4181
        %v4349 = vunpack.c.l.b16 %v4182
        %v4350 = vunpack.c.h.b16 %v4182
        %v4351 = vunpack.c.l.b16 %v4183
        %v4352 = vunpack.c.h.b16 %v4183
        %v4353 = vunpack.c.l.b16 %v4184
        %v4354 = vunpack.c.h.b16 %v4184
        %v4355 = vunpack.c.l.b16 %v4185
        %v4356 = vunpack.c.h.b16 %v4185
        %v4357 = vunpack.c.l.b16 %v4186
        %v4358 = vunpack.c.h.b16 %v4186
        %v4359 = vunpack.c.l.b16 %v4187
        %v4360 = vunpack.c.h.b16 %v4187
        %v4361 = vunpack.c.l.b16 %v4188
        %v4362 = vunpack.c.h.b16 %v4188
        %v4363 = vunpack.c.l.b16 %v4189
        %v4364 = vunpack.c.h.b16 %v4189
        %v4365 = vunpack.c.l.b16 %v4190
        %v4366 = vunpack.c.h.b16 %v4190
        %v4367 = vunpack.c.l.b16 %v4191
        %v4368 = vunpack.c.h.b16 %v4191
        %v4369 = vunpack.c.l.b16 %v4192
        %v4370 = vunpack.c.h.b16 %v4192
        %v4371 = vunpack.c.l.b16 %v4193
        %v4372 = vunpack.c.h.b16 %v4193
        %v4373 = vunpack.c.l.b16 %v4194
        %v4374 = vunpack.c.h.b16 %v4194
        %v4375 = vunpack.c.l.b16 %v4195
        %v4376 = vunpack.c.h.b16 %v4195
        %v4377 = vunpack.c.l.b16 %v4196
        %v4378 = vunpack.c.h.b16 %v4196
        %v4379 = vunpack.c.l.b16 %v4197
        %v4380 = vunpack.c.h.b16 %v4197
        %v4381 = vunpack.c.l.b16 %v4198
        %v4382 = vunpack.c.h.b16 %v4198
        %v4383 = vunpack.c.l.b16 %v4199
        %v4384 = vunpack.c.h.b16 %v4199
        %v4385 = vunpack.c.l.b16 %v4200
        %v4386 = vunpack.c.h.b16 %v4200
        %v4387 = vunpack.c.l.b16 %v4201
        %v4388 = vunpack.c.h.b16 %v4201
        %v4389 = vunpack.c.l.b16 %v4202
        %v4390 = vunpack.c.h.b16 %v4202
        %v4391 = vunpack.c.l.b16 %v4203
        %v4392 = vunpack.c.h.b16 %v4203
        %v4393 = vunpack.c.l.b16 %v4204
        %v4394 = vunpack.c.h.b16 %v4204
        %v4395 = vunpack.c.l.b16 %v4205
        %v4396 = vunpack.c.h.b16 %v4205
        %v4397 = vunpack.c.l.b16 %v4206
        %v4398 = vunpack.c.h.b16 %v4206
        %v4399 = vunpack.c.l.b16 %v4207
        %v4400 = vunpack.c.h.b16 %v4207
        %v4401 = vunpack.c.l.b16 %v4208
        %v4402 = vunpack.c.h.b16 %v4208
        %v4403 = vunpack.c.l.b16 %v4209
        %v4404 = vunpack.c.h.b16 %v4209
        %v4405 = vunpack.c.l.b16 %v4210
        %v4406 = vunpack.c.h.b16 %v4210
        %v4407 = vunpack.c.l.b16 %v4211
        %v4408 = vunpack.c.h.b16 %v4211
        %v4409 = vunpack.c.l.b16 %v4212
        %v4410 = vunpack.c.h.b16 %v4212
        %v4411 = vunpack.c.l.b16 %v4213
        %v4412 = vunpack.c.h.b16 %v4213
        %v4413 = vunpack.c.l.b16 %v4214
        %v4414 = vunpack.c.h.b16 %v4214
        %v4415 = vunpack.c.l.b16 %v4215
        %v4416 = vunpack.c.h.b16 %v4215
        %v4417 = vunpack.c.l.b16 %v4216
        %v4418 = vunpack.c.h.b16 %v4216
        %v4419 = vunpack.c.l.b16 %v4217
        %v4420 = vunpack.c.h.b16 %v4217
        %v4421 = vunpack.c.l.b16 %v4218
        %v4422 = vunpack.c.h.b16 %v4218
        %v4423 = vunpack.c.l.b16 %v4219
        %v4424 = vunpack.c.h.b16 %v4219
        %v4425 = vunpack.c.l.b16 %v4220
        %v4426 = vunpack.c.h.b16 %v4220
        %v4427 = vunpack.c.l.b16 %v4221
        %v4428 = vunpack.c.h.b16 %v4221
        %v4429 = vunpack.c.l.b16 %v4222
        %v4430 = vunpack.c.h.b16 %v4222
        %v4431 = vunpack.c.l.b16 %v4223
        %v4432 = vunpack.c.h.b16 %v4223
        %v4433 = vunpack.c.l.b16 %v4224
        %v4434 = vunpack.c.h.b16 %v4224
        %v4435 = vunpack.c.l.b16 %v4225
        %v4436 = vunpack.c.h.b16 %v4225
        %v4437 = vunpack.c.l.b16 %v4226
        %v4438 = vunpack.c.h.b16 %v4226
        %v4439 = vunpack.c.l.b16 %v4227
        %v4440 = vunpack.c.h.b16 %v4227
        %v4441 = vpack.c.b16 %v4315, %v4313
        %v4442 = vpack.c.b16 %v4316, %v4314
        %v4443 = vpack.c.b16 %v4319, %v4317
        %v4444 = vpack.c.b16 %v4320, %v4318
        %v4445 = vpack.c.b16 %v4323, %v4321
        %v4446 = vpack.c.b16 %v4324, %v4322
        %v4447 = vpack.c.b16 %v4327, %v4325
        %v4448 = vpack.c.b16 %v4328, %v4326
        %v4449 = vpack.c.b16 %v4331, %v4329
        %v4450 = vpack.c.b16 %v4332, %v4330
        %v4451 = vpack.c.b16 %v4335, %v4333
        %v4452 = vpack.c.b16 %v4336, %v4334
        %v4453 = vpack.c.b16 %v4339, %v4337
        %v4454 = vpack.c.b16 %v4340, %v4338
        %v4455 = vpack.c.b16 %v4343, %v4341
        %v4456 = vpack.c.b16 %v4344, %v4342
        %v4457 = vpack.c.b16 %v4347, %v4345
        %v4458 = vpack.c.b16 %v4348, %v4346
        %v4459 = vpack.c.b16 %v4351, %v4349
        %v4460 = vpack.c.b16 %v4352, %v4350
        %v4461 = vpack.c.b16 %v4355, %v4353
        %v4462 = vpack.c.b16 %v4356, %v4354
        %v4463 = vpack.c.b16 %v4359, %v4357
        %v4464 = vpack.c.b16 %v4360, %v4358
        %v4465 = vpack.c.b16 %v4363, %v4361
        %v4466 = vpack.c.b16 %v4364, %v4362
        %v4467 = vpack.c.b16 %v4367, %v4365
        %v4468 = vpack.c.b16 %v4368, %v4366
        %v4469 = vpack.c.b16 %v4371, %v4369
        %v4470 = vpack.c.b16 %v4372, %v4370
        %v4471 = vpack.c.b16 %v4375, %v4373
        %v4472 = vpack.c.b16 %v4376, %v4374
        %v4473 = vpack.c.b16 %v4379, %v4377
        %v4474 = vpack.c.b16 %v4380, %v4378
        %v4475 = vpack.c.b16 %v4383, %v4381
        %v4476 = vpack.c.b16 %v4384, %v4382
        %v4477 = vpack.c.b16 %v4387, %v4385
        %v4478 = vpack.c.b16 %v4388, %v4386
        %v4479 = vpack.c.b16 %v4391, %v4389
        %v4480 = vpack.c.b16 %v4392, %v4390
        %v4481 = vpack.c.b16 %v4395, %v4393
        %v4482 = vpack.c.b16 %v4396, %v4394
        %v4483 = vpack.c.b16 %v4399, %v4397
        %v4484 = vpack.c.b16 %v4400, %v4398
        %v4485 = vpack.c.b16 %v4403, %v4401
        %v4486 = vpack.c.b16 %v4404, %v4402
        %v4487 = vpack.c.b16 %v4407, %v4405
        %v4488 = vpack.c.b16 %v4408, %v4406
        %v4489 = vpack.c.b16 %v4411, %v4409
        %v4490 = vpack.c.b16 %v4412, %v4410
        %v4491 = vpack.c.b16 %v4415, %v4413
        %v4492 = vpack.c.b16 %v4416, %v4414
        %v4493 = vpack.c.b16 %v4419, %v4417
        %v4494 = vpack.c.b16 %v4420, %v4418
        %v4495 = vpack.c.b16 %v4423, %v4421
        %v4496 = vpack.c.b16 %v4424, %v4422
        %v4497 = vpack.c.b16 %v4427, %v4425
        %v4498 = vpack.c.b16 %v4428, %v4426
        %v4499 = vpack.c.b16 %v4431, %v4429
        %v4500 = vpack.c.b16 %v4432, %v4430
        %v4501 = vpack.c.b16 %v4435, %v4433
        %v4502 = vpack.c.b16 %v4436, %v4434
        %v4503 = vpack.c.b16 %v4439, %v4437
        %v4504 = vpack.c.b16 %v4440, %v4438
        %4569 = vmatprep.subr.bf16.mxu0 %v4442
        %4570 = vmatpush1.bf16.msra.mxu0 %v4441
        %4571 = vmatprep.subr.bf16.mxu0 %v4444
        %4572 = vmatpush1.bf16.msra.mxu0 %v4443
        %4573 = vmatprep.subr.bf16.mxu0 %v4446
        %4574 = vmatpush1.bf16.msra.mxu0 %v4445
        %4575 = vmatprep.subr.bf16.mxu0 %v4448
        %4576 = vmatpush1.bf16.msra.mxu0 %v4447
        %4577 = vmatprep.subr.bf16.mxu0 %v4450
        %4578 = vmatpush1.bf16.msra.mxu0 %v4449
        %4579 = vmatprep.subr.bf16.mxu0 %v4452
        %4580 = vmatpush1.bf16.msra.mxu0 %v4451
        %4581 = vmatprep.subr.bf16.mxu0 %v4454
        %4582 = vmatpush1.bf16.msra.mxu0 %v4453
        %4583 = vmatprep.subr.bf16.mxu0 %v4456
        %4584 = vmatpush1.bf16.msra.mxu0 %v4455
        %4585 = vmatprep.subr.bf16.mxu0 %v4458
        %4586 = vmatpush1.bf16.msra.mxu0 %v4457
        %4587 = vmatprep.subr.bf16.mxu0 %v4460
        %4588 = vmatpush1.bf16.msra.mxu0 %v4459
        %4589 = vmatprep.subr.bf16.mxu0 %v4462
        %4590 = vmatpush1.bf16.msra.mxu0 %v4461
        %4591 = vmatprep.subr.bf16.mxu0 %v4464
        %4592 = vmatpush1.bf16.msra.mxu0 %v4463
        %4593 = vmatprep.subr.bf16.mxu0 %v4466
        %4594 = vmatpush1.bf16.msra.mxu0 %v4465
        %4595 = vmatprep.subr.bf16.mxu0 %v4468
        %4596 = vmatpush1.bf16.msra.mxu0 %v4467
        %4597 = vmatprep.subr.bf16.mxu0 %v4470
        %4598 = vmatpush1.bf16.msra.mxu0 %v4469
        %4599 = vmatprep.subr.bf16.mxu0 %v4472
        %4600 = vmatpush1.bf16.msra.mxu0 %v4471
        %4601 = vmatprep.mubr.bf16.mxu0 %v4161
        %4602 = vmatmul.mubr.bf16.gmra.mrb[0].mxu0 %v4160
        %v4603 = vpop.f32.mrb[0].mxu0
        %v4604 = vadd.f32 %v4244, %v4603
        %v4605 = vpop.f32.mrb[0].mxu0
        %v4606 = vadd.f32 %v4248, %v4605
        %v4607 = vpop.f32.mrb[0].mxu0
        %v4608 = vadd.f32 %v4244, %v4607
        %v4609 = vpop.f32.mrb[0].mxu0
        %v4610 = vadd.f32 %v4248, %v4609
        %4611 = vdwg.mxu0
        %4612 = vmatprep.subr.bf16.mxu0 %v4474
        %4613 = vmatpush1.bf16.msra.mxu0 %v4473
        %4614 = vmatprep.subr.bf16.mxu0 %v4476
        %4615 = vmatpush1.bf16.msra.mxu0 %v4475
        %4616 = vmatprep.subr.bf16.mxu0 %v4478
        %4617 = vmatpush1.bf16.msra.mxu0 %v4477
        %4618 = vmatprep.subr.bf16.mxu0 %v4480
        %4619 = vmatpush1.bf16.msra.mxu0 %v4479
        %4620 = vmatprep.subr.bf16.mxu0 %v4482
        %4621 = vmatpush1.bf16.msra.mxu0 %v4481
        %4622 = vmatprep.subr.bf16.mxu0 %v4484
        %4623 = vmatpush1.bf16.msra.mxu0 %v4483
        %4624 = vmatprep.subr.bf16.mxu0 %v4486
        %4625 = vmatpush1.bf16.msra.mxu0 %v4485
        %4626 = vmatprep.subr.bf16.mxu0 %v4488
        %4627 = vmatpush1.bf16.msra.mxu0 %v4487
        %4628 = vmatprep.subr.bf16.mxu0 %v4490
        %4629 = vmatpush1.bf16.msra.mxu0 %v4489
        %4630 = vmatprep.subr.bf16.mxu0 %v4492
        %4631 = vmatpush1.bf16.msra.mxu0 %v4491
        %4632 = vmatprep.subr.bf16.mxu0 %v4494
        %4633 = vmatpush1.bf16.msra.mxu0 %v4493
        %4634 = vmatprep.subr.bf16.mxu0 %v4496
        %4635 = vmatpush1.bf16.msra.mxu0 %v4495
        %4636 = vmatprep.subr.bf16.mxu0 %v4498
        %4637 = vmatpush1.bf16.msra.mxu0 %v4497
        %4638 = vmatprep.subr.bf16.mxu0 %v4500
        %4639 = vmatpush1.bf16.msra.mxu0 %v4499
        %4640 = vmatprep.subr.bf16.mxu0 %v4502
        %4641 = vmatpush1.bf16.msra.mxu0 %v4501
        %4642 = vmatprep.subr.bf16.mxu0 %v4504
        %4643 = vmatpush1.bf16.msra.mxu0 %v4503
        %4644 = vmatprep.mubr.bf16.mxu0 %v4163
        %4645 = vmatmul.mubr.bf16.gmra.mrb[0].mxu0 %v4162
        %v4646 = vpop.f32.mrb[0].mxu0
        %v4647 = vadd.f32 %v4604, %v4646
        %v4648 = vpop.f32.mrb[0].mxu0
        %v4649 = vadd.f32 %v4606, %v4648
        %v4650 = vpop.f32.mrb[0].mxu0
        %v4651 = vadd.f32 %v4608, %v4650
        %v4652 = vpop.f32.mrb[0].mxu0
        %v4653 = vadd.f32 %v4610, %v4652
        %4654 = vdwg.mxu0
        %v4655 = vadd.f32 %v2297, %v4647
        %v4656 = vadd.f32 %v2298, %v4649
        %v4657 = vadd.f32 %v2299, %v4651
        %v4658 = vadd.f32 %v2300, %v4653
        %v4659 = vpack.c.bf16 %v4657, %v4655
        %v4660 = vpack.c.bf16 %v4658, %v4656
        %v4663 = vunpack.c.l.b16 %v4659
        %v4664 = vunpack.c.l.b16 %v4660
        %v4665 = vunpack.c.h.b16 %v4659
        %v4666 = vunpack.c.h.b16 %v4660
        %v4667 = vpack.c.b16 %v4664, %v4663
        %v4668 = vpack.c.b16 %v4666, %v4665
        %4671 = vst [vmem:[%s940] sm:$0xff] %v4667
        %4672 = vst [vmem:[%s940 + $0x8] sm:$0xff] %v4668
        %s4673 = sand.u32 %s586, 1
        %s4674 = scalar_lea.sflag [#allocation4], %s4673
        %s4675 = sand.u32 %s586, 1
        %s4676 = smul.addr %s4675, 16
        %s4677 = scalar_lea.vmem [#allocation22], %s4676
        // Predicated region
        $region169: #{tpu_custom_call.1} parent=119 // pred_check
          %p4678 = pneg %p596
        $region170: #{tpu_custom_call.1} parent=119 // pred_check_branch
          %4680 = sbr.rel (%p4678) target = $region172
        $region171: #{tpu_custom_call.1} parent=119 // pred_region
          %s4682 = ssub.s32 256, 256
          %4683 = vsyncadd %s4674, %s4682
          %s4684 = smul.addr %s48, 4
          %s4685 = smul.addr %s4684, 64
          %s4686 = scalar_lea.hbm %s25, %s4685
          %s4687 = sshll.u32 %s4677, 4
          %s4688 = int_to_ptr.vmem [resolvable:$true] %s4687
          %4693 = dma.vmem_to_hbm [thread:$0]  %s4688, 256, %s4686, %s4674, 128, 128, 8
        $region172: #{tpu_custom_call.1} parent=119 // pred_fallthru
          _
      $region120: #{tpu_custom_call.1} parent=5 // pred_fallthru
        _
      %p4694 = scmp.le.s32.totalorder 2, %s43
      // Predicated region
      $region173: #{tpu_custom_call.1} parent=5 // pred_check
        %p4695 = pneg %p4694
      $region174: #{tpu_custom_call.1} parent=5 // pred_check_branch
        %4697 = sbr.rel (%p4695) target = $region176
      $region175: #{tpu_custom_call.1} parent=5 // pred_region
        %s4698 = ssub.s32 %s43, 2
        // Predicated region
        $region177: #{tpu_custom_call.1} parent=175 // pred_check
          %p4699 = pneg %p602
        $region178: #{tpu_custom_call.1} parent=175 // pred_check_branch
          %4701 = sbr.rel (%p4699) target = $region180
        $region179: #{tpu_custom_call.1} parent=175 // pred_region
          %s4702 = sand.u32 %s587, 1
          %s4703 = scalar_lea.sflag [#allocation4], %s4702
          %s4704 = sand.u32 %s587, 1
          %s4705 = smul.addr %s4704, 16
          %s4706 = scalar_lea.vmem [#allocation22], %s4705
          %4707 = dma.done %s4703, 256
        $region180: #{tpu_custom_call.1} parent=175 // pred_fallthru
          _
      $region176: #{tpu_custom_call.1} parent=5 // pred_fallthru
        _
    $region6: #{tpu_custom_call.1} parent=1 // loop_footer
      %s47 = sadd.s32 1, %s43
    $region7: #{tpu_custom_call.1} parent=1 // loop_footer_branch
      %42 = sbr.rel target = $region3
    $region8: #{tpu_custom_call.1} parent=1 // loop_exit
      _
    %4708 = vsyncpa [#allocation3], 1
    %s4709 = scalar_lea.sflag [#allocation3], 1
    %4710 = vsyncpa %s4709, 1
    %4711 = vsyncpa [#allocation6], 1
    %4712 = vsyncpa [#allocation9], 1
    %4713 = vsyncpa [#allocation12], 1
    %4714 = vsyncpa [#allocation15], 1
    %4715 = vsyncpa [#allocation18], 1
    %4716 = vsyncpa [#allocation21], 1
    %4717 = vsyncpa [#allocation4], 1
    %s4718 = scalar_lea.sflag [#allocation4], 1
    %4719 = vsyncpa %s4718, 1

</llo_original>
